<compile_context>
chip_gen: v7x
topology: tpu7x:2x2x1
jax: 0.10.0
libtpu: 0.0.40
codegen_flags: <defaults>
</compile_context>

<pallas_src>
import random

import jax
import jax.numpy as jnp
from jax import lax
from jax.experimental import pallas as pl
from jax.experimental.pallas import tpu as pltpu

# ----------------------------- model sizes (small, synthetic) -----------------------------
BATCH = 2
SRC_LEN = 8
TRG_LEN = 8
SRC_VOCAB = 16
TRG_VOCAB = 16          # decoder.output_dim
EMB = 16
HID = 32
NUM_LAYERS = 1          # decoder.num_layers
B_PAD = 8               # sublane-padded batch (full 8-sublane vregs, unmasked ops)
V_PAD = 128             # lane-padded width for one-hots / gate blocks / logits


# ===================================== fused kernel =====================================

def seq2seq_fused_kernel(tf_ref, src_ref, trg_ref,
                         egi_ref, ewhh_ref, ebhh_ref,
                         w1_ref, wic_ref, woc_ref, woh_ref,
                         logits_ref):
    """Encoder + full decode loop in one kernel invocation (no grid).

    tf_ref    : (T,)            int32 SMEM  pre-drawn teacher-forcing flags
    src_ref   : (S*B_PAD, 1)    int32       src tokens, time-major rows
    trg_ref   : (T, B_PAD, 1)   int32       trg tokens, time-major
    egi_ref   : (V_PAD, V_PAD)  f32         encoder one-hot -> gates table (b_ih folded)
    ewhh_ref  : (H, V_PAD)      f32         encoder hidden -> gates (lane padded)
    ebhh_ref  : (1, V_PAD)      f32         encoder hidden bias
    w1_ref    : (V_PAD+H, 3*V_PAD) f32      fused decoder step matrix:
                                            [one-hot | h] @ W1 = gi | gh | token-logits
                                            (embed, b_ih, b_hh, b_o all folded in)
    wic_ref   : (H, V_PAD)      f32         ctx -> gates
    woc_ref   : (H, V_PAD)      f32         ctx -> logits
    woh_ref   : (H, V_PAD)      f32         hidden -> logits
    logits_ref: (T, B_PAD, V_PAD) f32       per-step logits (row 0 left zero, like ref)
    """
    T, BP, VP = logits_ref.shape
    SBP = src_ref.shape[0]
    S = SBP // BP
    H = ewhh_ref.shape[0]

    # --------------------------------- encoder ---------------------------------
    # one-hot(src) @ gate-table: ALL time steps' input projections in ONE matmul
    # (hoisted off the serial recurrence; b_ih is folded into the table rows).
    iota_src = lax.broadcasted_iota(jnp.int32, (SBP, VP), 1)
    src_1h = (iota_src == src_ref[...]).astype(jnp.float32)                   # (S*BP, 128)
    gi_all = jnp.dot(src_1h, egi_ref[...], preferred_element_type=jnp.float32)

    ewhh = ewhh_ref[...]
    ebhh = ebhh_ref[...]
    h = jnp.zeros((BP, H), jnp.float32)
    for t in range(S):                                   # static trip count -> unrolled
        gi = gi_all[t * BP:(t + 1) * BP, :]              # (BP, 128), aligned slice
        gh = jnp.dot(h, ewhh, preferred_element_type=jnp.float32) + ebhh      # 1 push
        rz = jax.nn.sigmoid(gi + gh)                     # full-width; pad lanes unused
        r = rz[:, :H]
        z = rz[:, H:2 * H]
        n = jnp.tanh(gi[:, 2 * H:3 * H] + r * gh[:, 2 * H:3 * H])
        h = (1.0 - z) * n + z * h
    ctx = h                                              # context vector, stays in-kernel

    # ----------------------------- decoder prologue -----------------------------
    w1 = w1_ref[...]
    woh = woh_ref[...]
    # time-invariant context projections, computed once and reused every step
    gi_ctx = jnp.dot(ctx, wic_ref[...], preferred_element_type=jnp.float32)   # (BP, 128)
    out_ctx = jnp.dot(ctx, woc_ref[...], preferred_element_type=jnp.float32)  # (BP, 128)

    iota = lax.broadcasted_iota(jnp.int32, (BP, VP), 1)
    inp_1h = (iota == trg_ref[0]).astype(jnp.float32)    # one-hot of trg[:, 0]

    h = ctx                                              # hidden init = context (L = 1)
    steps = [jnp.zeros((BP, VP), jnp.float32)]           # reference leaves outputs[:,0]=0
    for t in range(1, T):                                # static trip count -> unrolled
        # --- MXU push #1: fused [one-hot | h] @ W1 -> gi | gh | token-logit part ---
        xc = jnp.concatenate([inp_1h, h], axis=1)        # (BP, 128+H), vreg-aligned
        m1 = jnp.dot(xc, w1, preferred_element_type=jnp.float32)              # (BP, 384)
        gi = m1[:, :VP] + gi_ctx                         # aligned 128-lane blocks
        gh = m1[:, VP:2 * VP]
        tok_logit = m1[:, 2 * VP:3 * VP]

        rz = jax.nn.sigmoid(gi + gh)
        r = rz[:, :H]
        z = rz[:, H:2 * H]
        n = jnp.tanh(gi[:, 2 * H:3 * H] + r * gh[:, 2 * H:3 * H])
        h = (1.0 - z) * n + z * h

        # --- MXU push #2: output head on the new hidden state ---
        logits = jnp.dot(h, woh, preferred_element_type=jnp.float32) + tok_logit + out_ctx
        steps.append(logits)

        # Greedy argmax over the real vocab (first max wins); padded lanes masked out.
        lv = jnp.where(iota < TRG_VOCAB, logits, -jnp.inf)
        mx = jnp.max(lv, axis=-1, keepdims=True)
        cand = jnp.where(lv >= mx, iota, VP)
        first = jnp.min(cand, axis=-1, keepdims=True)
        top1_1h = (iota == first).astype(jnp.float32)

        # Teacher-forcing decision (pre-drawn on host, read from SMEM).
        trg_1h = (iota == trg_ref[t]).astype(jnp.float32)
        inp_1h = jnp.where(tf_ref[t] > 0, trg_1h, top1_1h)

    # Single bulk, fully lane/sublane-dense store of the whole logits slab.
    logits_ref[...] = jnp.stack(steps, axis=0)


# ===================================== wrappers =====================================

_VMEM = pl.BlockSpec(memory_space=pltpu.MemorySpace.VMEM)
_SMEM = pl.BlockSpec(memory_space=pltpu.MemorySpace.SMEM)


@jax.jit
def _seq2seq_forward(src_batch, trg_batch, tf_flags, params):
    egi, ewhh, ebhh, w1, wic, woc, woh = params
    B, S = src_batch.shape
    T = trg_batch.shape[1]

    # Sublane-pad the batch to 8 and go time-major (padded rows use token 0;
    # their garbage results are sliced away below).
    src_p = jnp.zeros((B_PAD, S), jnp.int32).at[:B].set(src_batch)
    trg_p = jnp.zeros((B_PAD, T), jnp.int32).at[:B].set(trg_batch)
    src_tm = jnp.transpose(src_p).reshape(S * B_PAD, 1)          # (S*B_PAD, 1)
    trg_tm = jnp.transpose(trg_p)[:, :, None]                    # (T, B_PAD, 1)

    logits = pl.pallas_call(
        seq2seq_fused_kernel,
        out_shape=jax.ShapeDtypeStruct((T, B_PAD, V_PAD), jnp.float32),
        in_specs=[_SMEM] + [_VMEM] * 9,
        out_specs=_VMEM,
    )(tf_flags, src_tm, trg_tm, egi, ewhh, ebhh, w1, wic, woc, woh)

    return jnp.transpose(logits[:, :B, :TRG_VOCAB], (1, 0, 2))   # (B, T, V)


def _pad2(a, rows, cols):
    return jnp.pad(a, ((0, rows - a.shape[0]), (0, cols - a.shape[1])))


class Seq2SeqPallas:
    """Mirrors the PyTorch Seq2Seq wrapper's forward pass."""

    def __init__(self, enc_params, dec_params, teacher_forcing_ratio=0.5):
        enc, dec = enc_params, dec_params
        H, G = HID, 3 * HID

        # --- encoder: fold embedding + b_ih into a one-hot -> gates table ---
        egi = enc["embed"] @ enc["w_ih"] + enc["b_ih"]               # (SRC_VOCAB, 3H)
        self.egi = _pad2(egi, V_PAD, V_PAD)                          # (128, 128)
        self.ewhh = _pad2(enc["w_hh"], H, V_PAD)                     # (32, 128)
        self.ebhh = _pad2(enc["b_hh"], 1, V_PAD)                     # (1, 128)

        # --- decoder: fold embedding / biases into one fused step matrix W1 ---
        # Row blocks: [0:128) = token one-hot lanes, [128:160) = hidden h.
        # Col blocks: [0:128) gi, [128:256) gh, [256:384) token part of logits.
        e_ix = dec["embed"] @ dec["w_ix"] + dec["b_ih"]              # (V, 3H)
        e_bhh = jnp.broadcast_to(dec["b_hh"], (TRG_VOCAB, G))        # b_hh via one-hot sum
        e_ox = _pad2(dec["embed"] @ dec["wo_x"] + dec["b_o"], TRG_VOCAB, V_PAD)
        w1 = jnp.zeros((V_PAD + H, 3 * V_PAD), jnp.float32)
        w1 = w1.at[:TRG_VOCAB, 0:G].set(e_ix)
        w1 = w1.at[:TRG_VOCAB, V_PAD:V_PAD + G].set(e_bhh)
        w1 = w1.at[:TRG_VOCAB, 2 * V_PAD:3 * V_PAD].set(e_ox)
        w1 = w1.at[V_PAD:V_PAD + H, V_PAD:V_PAD + G].set(dec["w_hh"])
        self.w1 = w1
        self.wic = _pad2(dec["w_ic"], H, V_PAD)                      # ctx -> gates
        self.woc = _pad2(dec["wo_c"], H, V_PAD)                      # ctx -> logits
        self.woh = _pad2(dec["wo_h"], H, V_PAD)                      # hidden -> logits

        self.num_layers = NUM_LAYERS
        self.output_dim = TRG_VOCAB
        # The reference __init__ hard-codes 0.01 regardless of the argument.
        self.teacher_forcing_ratio = 0.01

    def forward(self, src_batch, trg_batch, context_batch=None):
        if context_batch is not None:
            # TODO(synk): the concat path needs a decoder sized for 2*HID hidden; only
            # the context_batch=None path is exercised here.
            raise NotImplementedError("context_batch path requires a 2*HID decoder")

        trg_len = trg_batch.shape[1]
        # Pre-draw the per-step teacher-forcing decisions on the host (same draw order
        # as the reference loop), then run everything under a single jit.
        flags = [0] * trg_len
        for t in range(1, trg_len):
            flags[t] = 1 if random.random() < self.teacher_forcing_ratio else 0
        tf_flags = jnp.asarray(flags, dtype=jnp.int32)

        params = (self.egi, self.ewhh, self.ebhh, self.w1, self.wic, self.woc, self.woh)
        return _seq2seq_forward(src_batch, trg_batch, tf_flags, params)


# ===================================== param init =====================================

def init_params(key):
    ks = jax.random.split(key, 16)
    s = 1.0 / jnp.sqrt(HID)

    def u(k, shape):
        return jax.random.uniform(k, shape, jnp.float32, -s, s)

    # Gate weights stacked gate-major along the OUTPUT axis: (in, 3H), order (r, z, n),
    # matching torch.nn.GRU.
    enc = dict(
        embed=u(ks[0], (SRC_VOCAB, EMB)),
        w_ih=u(ks[1], (EMB, 3 * HID)),
        w_hh=u(ks[2], (HID, 3 * HID)),
        b_ih=u(ks[3], (1, 3 * HID)),
        b_hh=u(ks[4], (1, 3 * HID)),
    )
    dec = dict(
        embed=u(ks[5], (TRG_VOCAB, EMB)),
        w_ix=u(ks[6], (EMB, 3 * HID)),
        w_ic=u(ks[7], (HID, 3 * HID)),
        w_hh=u(ks[8], (HID, 3 * HID)),
        b_ih=u(ks[9], (1, 3 * HID)),
        b_hh=u(ks[10], (1, 3 * HID)),
        wo_h=u(ks[11], (HID, TRG_VOCAB)),
        wo_c=u(ks[12], (HID, TRG_VOCAB)),
        wo_x=u(ks[13], (EMB, TRG_VOCAB)),
        b_o=u(ks[14], (1, TRG_VOCAB)),
    )
    return enc, dec


# ===================================== main =====================================

if __name__ == "__main__":
    random.seed(0)                                  # deterministic teacher-forcing draws
    key = jax.random.PRNGKey(0)
    k_params, k_src, k_trg = jax.random.split(key, 3)

    enc_params, dec_params = init_params(k_params)
    src_batch = jax.random.randint(k_src, (BATCH, SRC_LEN), 0, SRC_VOCAB, jnp.int32)
    trg_batch = jax.random.randint(k_trg, (BATCH, TRG_LEN), 0, TRG_VOCAB, jnp.int32)

    model = Seq2SeqPallas(enc_params, dec_params)
    outputs = model.forward(src_batch, trg_batch)
    outputs = jax.block_until_ready(outputs)

    assert outputs.shape == (BATCH, TRG_LEN, TRG_VOCAB)
    assert bool(jnp.all(jnp.isfinite(outputs)))
    print("KERNEL_OK")
</pallas_src>

<mosaic_0001>
module attributes {stable_mosaic.version = 11 : i64} {
  func.func @seq2seq_fused_kernel(%arg0: memref<8xi32, #tpu.memory_space<smem>>, %arg1: memref<64x1xi32, #tpu.memory_space<vmem>>, %arg2: memref<8x8x1xi32, #tpu.memory_space<vmem>>, %arg3: memref<128x128xf32, #tpu.memory_space<vmem>>, %arg4: memref<32x128xf32, #tpu.memory_space<vmem>>, %arg5: memref<1x128xf32, #tpu.memory_space<vmem>>, %arg6: memref<160x384xf32, #tpu.memory_space<vmem>>, %arg7: memref<32x128xf32, #tpu.memory_space<vmem>>, %arg8: memref<32x128xf32, #tpu.memory_space<vmem>>, %arg9: memref<32x128xf32, #tpu.memory_space<vmem>>, %arg10: memref<8x8x128xf32, #tpu.memory_space<vmem>>) attributes {dimension_semantics = [], scalar_prefetch = 0 : i64, scratch_operands = 0 : i64, tpu.core_type = #tpu.core_type<tc>} {
    %0 = tpu.iota {dimensions = array<i32: 1>} : vector<64x128xi32>
    %c0 = arith.constant 0 : index
    %c0_0 = arith.constant 0 : index
    %1 = vector.load %arg1[%c0, %c0_0] : memref<64x1xi32, #tpu.memory_space<vmem>>, vector<64x1xi32>
    %2 = vector.broadcast %1 : vector<64x1xi32> to vector<64x128xi32>
    %3 = arith.cmpi eq, %0, %2 : vector<64x128xi32>
    %4 = arith.extui %3 : vector<64x128xi1> to vector<64x128xi32>
    %5 = arith.sitofp %4 : vector<64x128xi32> to vector<64x128xf32>
    %c0_1 = arith.constant 0 : index
    %c0_2 = arith.constant 0 : index
    %6 = vector.load %arg3[%c0_1, %c0_2] : memref<128x128xf32, #tpu.memory_space<vmem>>, vector<128x128xf32>
    %cst = arith.constant dense<0.000000e+00> : vector<64x128xf32>
    %7 = tpu.matmul %5, %6, %cst {dimension_numbers = #tpu.dot_dimension_numbers<[1], [0], [0], [1], [0, 0, 1, 1], [], []>} : vector<64x128xf32>, vector<128x128xf32>, vector<64x128xf32> -> vector<64x128xf32>
    %c0_3 = arith.constant 0 : index
    %c0_4 = arith.constant 0 : index
    %8 = vector.load %arg4[%c0_3, %c0_4] : memref<32x128xf32, #tpu.memory_space<vmem>>, vector<32x128xf32>
    %c0_5 = arith.constant 0 : index
    %c0_6 = arith.constant 0 : index
    %9 = vector.load %arg5[%c0_5, %c0_6] : memref<1x128xf32, #tpu.memory_space<vmem>>, vector<1x128xf32>
    %cst_7 = arith.constant 0.000000e+00 : f32
    %10 = vector.broadcast %cst_7 : f32 to vector<8x32xf32>
    %11 = vector.extract_strided_slice %7 {offsets = [0, 0], sizes = [8, 128], strides = [1, 1]} : vector<64x128xf32> to vector<8x128xf32>
    %cst_8 = arith.constant dense<0.000000e+00> : vector<8x128xf32>
    %12 = tpu.matmul %10, %8, %cst_8 {dimension_numbers = #tpu.dot_dimension_numbers<[1], [0], [0], [1], [0, 0, 1, 1], [], []>} : vector<8x32xf32>, vector<32x128xf32>, vector<8x128xf32> -> vector<8x128xf32>
    %13 = vector.broadcast %9 : vector<1x128xf32> to vector<8x128xf32>
    %14 = arith.addf %12, %13 : vector<8x128xf32>
    %15 = arith.addf %11, %14 : vector<8x128xf32>
    %16 = arith.negf %15 : vector<8x128xf32>
    %17 = math.exp %16 : vector<8x128xf32>
    %cst_9 = arith.constant 1.000000e+00 : f32
    %18 = vector.broadcast %cst_9 : f32 to vector<8x128xf32>
    %19 = arith.addf %18, %17 : vector<8x128xf32>
    %20 = arith.divf %18, %19 : vector<8x128xf32>
    %21 = vector.extract_strided_slice %20 {offsets = [0, 0], sizes = [8, 32], strides = [1, 1]} : vector<8x128xf32> to vector<8x32xf32>
    %22 = vector.extract_strided_slice %20 {offsets = [0, 32], sizes = [8, 32], strides = [1, 1]} : vector<8x128xf32> to vector<8x32xf32>
    %23 = vector.extract_strided_slice %11 {offsets = [0, 64], sizes = [8, 32], strides = [1, 1]} : vector<8x128xf32> to vector<8x32xf32>
    %24 = vector.extract_strided_slice %14 {offsets = [0, 64], sizes = [8, 32], strides = [1, 1]} : vector<8x128xf32> to vector<8x32xf32>
    %25 = arith.mulf %21, %24 : vector<8x32xf32>
    %26 = arith.addf %23, %25 : vector<8x32xf32>
    %27 = math.tanh %26 : vector<8x32xf32>
    %cst_10 = arith.constant 1.000000e+00 : f32
    %28 = vector.broadcast %cst_10 : f32 to vector<8x32xf32>
    %29 = arith.subf %28, %22 : vector<8x32xf32>
    %30 = arith.mulf %29, %27 : vector<8x32xf32>
    %31 = arith.mulf %22, %10 : vector<8x32xf32>
    %32 = arith.addf %30, %31 : vector<8x32xf32>
    %33 = vector.extract_strided_slice %7 {offsets = [8, 0], sizes = [8, 128], strides = [1, 1]} : vector<64x128xf32> to vector<8x128xf32>
    %cst_11 = arith.constant dense<0.000000e+00> : vector<8x128xf32>
    %34 = tpu.matmul %32, %8, %cst_11 {dimension_numbers = #tpu.dot_dimension_numbers<[1], [0], [0], [1], [0, 0, 1, 1], [], []>} : vector<8x32xf32>, vector<32x128xf32>, vector<8x128xf32> -> vector<8x128xf32>
    %35 = vector.broadcast %9 : vector<1x128xf32> to vector<8x128xf32>
    %36 = arith.addf %34, %35 : vector<8x128xf32>
    %37 = arith.addf %33, %36 : vector<8x128xf32>
    %38 = arith.negf %37 : vector<8x128xf32>
    %39 = math.exp %38 : vector<8x128xf32>
    %cst_12 = arith.constant 1.000000e+00 : f32
    %40 = vector.broadcast %cst_12 : f32 to vector<8x128xf32>
    %41 = arith.addf %40, %39 : vector<8x128xf32>
    %42 = arith.divf %40, %41 : vector<8x128xf32>
    %43 = vector.extract_strided_slice %42 {offsets = [0, 0], sizes = [8, 32], strides = [1, 1]} : vector<8x128xf32> to vector<8x32xf32>
    %44 = vector.extract_strided_slice %42 {offsets = [0, 32], sizes = [8, 32], strides = [1, 1]} : vector<8x128xf32> to vector<8x32xf32>
    %45 = vector.extract_strided_slice %33 {offsets = [0, 64], sizes = [8, 32], strides = [1, 1]} : vector<8x128xf32> to vector<8x32xf32>
    %46 = vector.extract_strided_slice %36 {offsets = [0, 64], sizes = [8, 32], strides = [1, 1]} : vector<8x128xf32> to vector<8x32xf32>
    %47 = arith.mulf %43, %46 : vector<8x32xf32>
    %48 = arith.addf %45, %47 : vector<8x32xf32>
    %49 = math.tanh %48 : vector<8x32xf32>
    %cst_13 = arith.constant 1.000000e+00 : f32
    %50 = vector.broadcast %cst_13 : f32 to vector<8x32xf32>
    %51 = arith.subf %50, %44 : vector<8x32xf32>
    %52 = arith.mulf %51, %49 : vector<8x32xf32>
    %53 = arith.mulf %44, %32 : vector<8x32xf32>
    %54 = arith.addf %52, %53 : vector<8x32xf32>
    %55 = vector.extract_strided_slice %7 {offsets = [16, 0], sizes = [8, 128], strides = [1, 1]} : vector<64x128xf32> to vector<8x128xf32>
    %cst_14 = arith.constant dense<0.000000e+00> : vector<8x128xf32>
    %56 = tpu.matmul %54, %8, %cst_14 {dimension_numbers = #tpu.dot_dimension_numbers<[1], [0], [0], [1], [0, 0, 1, 1], [], []>} : vector<8x32xf32>, vector<32x128xf32>, vector<8x128xf32> -> vector<8x128xf32>
    %57 = vector.broadcast %9 : vector<1x128xf32> to vector<8x128xf32>
    %58 = arith.addf %56, %57 : vector<8x128xf32>
    %59 = arith.addf %55, %58 : vector<8x128xf32>
    %60 = arith.negf %59 : vector<8x128xf32>
    %61 = math.exp %60 : vector<8x128xf32>
    %cst_15 = arith.constant 1.000000e+00 : f32
    %62 = vector.broadcast %cst_15 : f32 to vector<8x128xf32>
    %63 = arith.addf %62, %61 : vector<8x128xf32>
    %64 = arith.divf %62, %63 : vector<8x128xf32>
    %65 = vector.extract_strided_slice %64 {offsets = [0, 0], sizes = [8, 32], strides = [1, 1]} : vector<8x128xf32> to vector<8x32xf32>
    %66 = vector.extract_strided_slice %64 {offsets = [0, 32], sizes = [8, 32], strides = [1, 1]} : vector<8x128xf32> to vector<8x32xf32>
    %67 = vector.extract_strided_slice %55 {offsets = [0, 64], sizes = [8, 32], strides = [1, 1]} : vector<8x128xf32> to vector<8x32xf32>
    %68 = vector.extract_strided_slice %58 {offsets = [0, 64], sizes = [8, 32], strides = [1, 1]} : vector<8x128xf32> to vector<8x32xf32>
    %69 = arith.mulf %65, %68 : vector<8x32xf32>
    %70 = arith.addf %67, %69 : vector<8x32xf32>
    %71 = math.tanh %70 : vector<8x32xf32>
    %cst_16 = arith.constant 1.000000e+00 : f32
    %72 = vector.broadcast %cst_16 : f32 to vector<8x32xf32>
    %73 = arith.subf %72, %66 : vector<8x32xf32>
    %74 = arith.mulf %73, %71 : vector<8x32xf32>
    %75 = arith.mulf %66, %54 : vector<8x32xf32>
    %76 = arith.addf %74, %75 : vector<8x32xf32>
    %77 = vector.extract_strided_slice %7 {offsets = [24, 0], sizes = [8, 128], strides = [1, 1]} : vector<64x128xf32> to vector<8x128xf32>
    %cst_17 = arith.constant dense<0.000000e+00> : vector<8x128xf32>
    %78 = tpu.matmul %76, %8, %cst_17 {dimension_numbers = #tpu.dot_dimension_numbers<[1], [0], [0], [1], [0, 0, 1, 1], [], []>} : vector<8x32xf32>, vector<32x128xf32>, vector<8x128xf32> -> vector<8x128xf32>
    %79 = vector.broadcast %9 : vector<1x128xf32> to vector<8x128xf32>
    %80 = arith.addf %78, %79 : vector<8x128xf32>
    %81 = arith.addf %77, %80 : vector<8x128xf32>
    %82 = arith.negf %81 : vector<8x128xf32>
    %83 = math.exp %82 : vector<8x128xf32>
    %cst_18 = arith.constant 1.000000e+00 : f32
    %84 = vector.broadcast %cst_18 : f32 to vector<8x128xf32>
    %85 = arith.addf %84, %83 : vector<8x128xf32>
    %86 = arith.divf %84, %85 : vector<8x128xf32>
    %87 = vector.extract_strided_slice %86 {offsets = [0, 0], sizes = [8, 32], strides = [1, 1]} : vector<8x128xf32> to vector<8x32xf32>
    %88 = vector.extract_strided_slice %86 {offsets = [0, 32], sizes = [8, 32], strides = [1, 1]} : vector<8x128xf32> to vector<8x32xf32>
    %89 = vector.extract_strided_slice %77 {offsets = [0, 64], sizes = [8, 32], strides = [1, 1]} : vector<8x128xf32> to vector<8x32xf32>
    %90 = vector.extract_strided_slice %80 {offsets = [0, 64], sizes = [8, 32], strides = [1, 1]} : vector<8x128xf32> to vector<8x32xf32>
    %91 = arith.mulf %87, %90 : vector<8x32xf32>
    %92 = arith.addf %89, %91 : vector<8x32xf32>
    %93 = math.tanh %92 : vector<8x32xf32>
    %cst_19 = arith.constant 1.000000e+00 : f32
    %94 = vector.broadcast %cst_19 : f32 to vector<8x32xf32>
    %95 = arith.subf %94, %88 : vector<8x32xf32>
    %96 = arith.mulf %95, %93 : vector<8x32xf32>
    %97 = arith.mulf %88, %76 : vector<8x32xf32>
    %98 = arith.addf %96, %97 : vector<8x32xf32>
    %99 = vector.extract_strided_slice %7 {offsets = [32, 0], sizes = [8, 128], strides = [1, 1]} : vector<64x128xf32> to vector<8x128xf32>
    %cst_20 = arith.constant dense<0.000000e+00> : vector<8x128xf32>
    %100 = tpu.matmul %98, %8, %cst_20 {dimension_numbers = #tpu.dot_dimension_numbers<[1], [0], [0], [1], [0, 0, 1, 1], [], []>} : vector<8x32xf32>, vector<32x128xf32>, vector<8x128xf32> -> vector<8x128xf32>
    %101 = vector.broadcast %9 : vector<1x128xf32> to vector<8x128xf32>
    %102 = arith.addf %100, %101 : vector<8x128xf32>
    %103 = arith.addf %99, %102 : vector<8x128xf32>
    %104 = arith.negf %103 : vector<8x128xf32>
    %105 = math.exp %104 : vector<8x128xf32>
    %cst_21 = arith.constant 1.000000e+00 : f32
    %106 = vector.broadcast %cst_21 : f32 to vector<8x128xf32>
    %107 = arith.addf %106, %105 : vector<8x128xf32>
    %108 = arith.divf %106, %107 : vector<8x128xf32>
    %109 = vector.extract_strided_slice %108 {offsets = [0, 0], sizes = [8, 32], strides = [1, 1]} : vector<8x128xf32> to vector<8x32xf32>
    %110 = vector.extract_strided_slice %108 {offsets = [0, 32], sizes = [8, 32], strides = [1, 1]} : vector<8x128xf32> to vector<8x32xf32>
    %111 = vector.extract_strided_slice %99 {offsets = [0, 64], sizes = [8, 32], strides = [1, 1]} : vector<8x128xf32> to vector<8x32xf32>
    %112 = vector.extract_strided_slice %102 {offsets = [0, 64], sizes = [8, 32], strides = [1, 1]} : vector<8x128xf32> to vector<8x32xf32>
    %113 = arith.mulf %109, %112 : vector<8x32xf32>
    %114 = arith.addf %111, %113 : vector<8x32xf32>
    %115 = math.tanh %114 : vector<8x32xf32>
    %cst_22 = arith.constant 1.000000e+00 : f32
    %116 = vector.broadcast %cst_22 : f32 to vector<8x32xf32>
    %117 = arith.subf %116, %110 : vector<8x32xf32>
    %118 = arith.mulf %117, %115 : vector<8x32xf32>
    %119 = arith.mulf %110, %98 : vector<8x32xf32>
    %120 = arith.addf %118, %119 : vector<8x32xf32>
    %121 = vector.extract_strided_slice %7 {offsets = [40, 0], sizes = [8, 128], strides = [1, 1]} : vector<64x128xf32> to vector<8x128xf32>
    %cst_23 = arith.constant dense<0.000000e+00> : vector<8x128xf32>
    %122 = tpu.matmul %120, %8, %cst_23 {dimension_numbers = #tpu.dot_dimension_numbers<[1], [0], [0], [1], [0, 0, 1, 1], [], []>} : vector<8x32xf32>, vector<32x128xf32>, vector<8x128xf32> -> vector<8x128xf32>
    %123 = vector.broadcast %9 : vector<1x128xf32> to vector<8x128xf32>
    %124 = arith.addf %122, %123 : vector<8x128xf32>
    %125 = arith.addf %121, %124 : vector<8x128xf32>
    %126 = arith.negf %125 : vector<8x128xf32>
    %127 = math.exp %126 : vector<8x128xf32>
    %cst_24 = arith.constant 1.000000e+00 : f32
    %128 = vector.broadcast %cst_24 : f32 to vector<8x128xf32>
    %129 = arith.addf %128, %127 : vector<8x128xf32>
    %130 = arith.divf %128, %129 : vector<8x128xf32>
    %131 = vector.extract_strided_slice %130 {offsets = [0, 0], sizes = [8, 32], strides = [1, 1]} : vector<8x128xf32> to vector<8x32xf32>
    %132 = vector.extract_strided_slice %130 {offsets = [0, 32], sizes = [8, 32], strides = [1, 1]} : vector<8x128xf32> to vector<8x32xf32>
    %133 = vector.extract_strided_slice %121 {offsets = [0, 64], sizes = [8, 32], strides = [1, 1]} : vector<8x128xf32> to vector<8x32xf32>
    %134 = vector.extract_strided_slice %124 {offsets = [0, 64], sizes = [8, 32], strides = [1, 1]} : vector<8x128xf32> to vector<8x32xf32>
    %135 = arith.mulf %131, %134 : vector<8x32xf32>
    %136 = arith.addf %133, %135 : vector<8x32xf32>
    %137 = math.tanh %136 : vector<8x32xf32>
    %cst_25 = arith.constant 1.000000e+00 : f32
    %138 = vector.broadcast %cst_25 : f32 to vector<8x32xf32>
    %139 = arith.subf %138, %132 : vector<8x32xf32>
    %140 = arith.mulf %139, %137 : vector<8x32xf32>
    %141 = arith.mulf %132, %120 : vector<8x32xf32>
    %142 = arith.addf %140, %141 : vector<8x32xf32>
    %143 = vector.extract_strided_slice %7 {offsets = [48, 0], sizes = [8, 128], strides = [1, 1]} : vector<64x128xf32> to vector<8x128xf32>
    %cst_26 = arith.constant dense<0.000000e+00> : vector<8x128xf32>
    %144 = tpu.matmul %142, %8, %cst_26 {dimension_numbers = #tpu.dot_dimension_numbers<[1], [0], [0], [1], [0, 0, 1, 1], [], []>} : vector<8x32xf32>, vector<32x128xf32>, vector<8x128xf32> -> vector<8x128xf32>
    %145 = vector.broadcast %9 : vector<1x128xf32> to vector<8x128xf32>
    %146 = arith.addf %144, %145 : vector<8x128xf32>
    %147 = arith.addf %143, %146 : vector<8x128xf32>
    %148 = arith.negf %147 : vector<8x128xf32>
    %149 = math.exp %148 : vector<8x128xf32>
    %cst_27 = arith.constant 1.000000e+00 : f32
    %150 = vector.broadcast %cst_27 : f32 to vector<8x128xf32>
    %151 = arith.addf %150, %149 : vector<8x128xf32>
    %152 = arith.divf %150, %151 : vector<8x128xf32>
    %153 = vector.extract_strided_slice %152 {offsets = [0, 0], sizes = [8, 32], strides = [1, 1]} : vector<8x128xf32> to vector<8x32xf32>
    %154 = vector.extract_strided_slice %152 {offsets = [0, 32], sizes = [8, 32], strides = [1, 1]} : vector<8x128xf32> to vector<8x32xf32>
    %155 = vector.extract_strided_slice %143 {offsets = [0, 64], sizes = [8, 32], strides = [1, 1]} : vector<8x128xf32> to vector<8x32xf32>
    %156 = vector.extract_strided_slice %146 {offsets = [0, 64], sizes = [8, 32], strides = [1, 1]} : vector<8x128xf32> to vector<8x32xf32>
    %157 = arith.mulf %153, %156 : vector<8x32xf32>
    %158 = arith.addf %155, %157 : vector<8x32xf32>
    %159 = math.tanh %158 : vector<8x32xf32>
    %cst_28 = arith.constant 1.000000e+00 : f32
    %160 = vector.broadcast %cst_28 : f32 to vector<8x32xf32>
    %161 = arith.subf %160, %154 : vector<8x32xf32>
    %162 = arith.mulf %161, %159 : vector<8x32xf32>
    %163 = arith.mulf %154, %142 : vector<8x32xf32>
    %164 = arith.addf %162, %163 : vector<8x32xf32>
    %165 = vector.extract_strided_slice %7 {offsets = [56, 0], sizes = [8, 128], strides = [1, 1]} : vector<64x128xf32> to vector<8x128xf32>
    %cst_29 = arith.constant dense<0.000000e+00> : vector<8x128xf32>
    %166 = tpu.matmul %164, %8, %cst_29 {dimension_numbers = #tpu.dot_dimension_numbers<[1], [0], [0], [1], [0, 0, 1, 1], [], []>} : vector<8x32xf32>, vector<32x128xf32>, vector<8x128xf32> -> vector<8x128xf32>
    %167 = vector.broadcast %9 : vector<1x128xf32> to vector<8x128xf32>
    %168 = arith.addf %166, %167 : vector<8x128xf32>
    %169 = arith.addf %165, %168 : vector<8x128xf32>
    %170 = arith.negf %169 : vector<8x128xf32>
    %171 = math.exp %170 : vector<8x128xf32>
    %cst_30 = arith.constant 1.000000e+00 : f32
    %172 = vector.broadcast %cst_30 : f32 to vector<8x128xf32>
    %173 = arith.addf %172, %171 : vector<8x128xf32>
    %174 = arith.divf %172, %173 : vector<8x128xf32>
    %175 = vector.extract_strided_slice %174 {offsets = [0, 0], sizes = [8, 32], strides = [1, 1]} : vector<8x128xf32> to vector<8x32xf32>
    %176 = vector.extract_strided_slice %174 {offsets = [0, 32], sizes = [8, 32], strides = [1, 1]} : vector<8x128xf32> to vector<8x32xf32>
    %177 = vector.extract_strided_slice %165 {offsets = [0, 64], sizes = [8, 32], strides = [1, 1]} : vector<8x128xf32> to vector<8x32xf32>
    %178 = vector.extract_strided_slice %168 {offsets = [0, 64], sizes = [8, 32], strides = [1, 1]} : vector<8x128xf32> to vector<8x32xf32>
    %179 = arith.mulf %175, %178 : vector<8x32xf32>
    %180 = arith.addf %177, %179 : vector<8x32xf32>
    %181 = math.tanh %180 : vector<8x32xf32>
    %cst_31 = arith.constant 1.000000e+00 : f32
    %182 = vector.broadcast %cst_31 : f32 to vector<8x32xf32>
    %183 = arith.subf %182, %176 : vector<8x32xf32>
    %184 = arith.mulf %183, %181 : vector<8x32xf32>
    %185 = arith.mulf %176, %164 : vector<8x32xf32>
    %186 = arith.addf %184, %185 : vector<8x32xf32>
    %c0_32 = arith.constant 0 : index
    %c0_33 = arith.constant 0 : index
    %187 = vector.load %arg6[%c0_32, %c0_33] : memref<160x384xf32, #tpu.memory_space<vmem>>, vector<160x384xf32>
    %c0_34 = arith.constant 0 : index
    %c0_35 = arith.constant 0 : index
    %188 = vector.load %arg9[%c0_34, %c0_35] : memref<32x128xf32, #tpu.memory_space<vmem>>, vector<32x128xf32>
    %c0_36 = arith.constant 0 : index
    %c0_37 = arith.constant 0 : index
    %189 = vector.load %arg7[%c0_36, %c0_37] : memref<32x128xf32, #tpu.memory_space<vmem>>, vector<32x128xf32>
    %cst_38 = arith.constant dense<0.000000e+00> : vector<8x128xf32>
    %190 = tpu.matmul %186, %189, %cst_38 {dimension_numbers = #tpu.dot_dimension_numbers<[1], [0], [0], [1], [0, 0, 1, 1], [], []>} : vector<8x32xf32>, vector<32x128xf32>, vector<8x128xf32> -> vector<8x128xf32>
    %c0_39 = arith.constant 0 : index
    %c0_40 = arith.constant 0 : index
    %191 = vector.load %arg8[%c0_39, %c0_40] : memref<32x128xf32, #tpu.memory_space<vmem>>, vector<32x128xf32>
    %cst_41 = arith.constant dense<0.000000e+00> : vector<8x128xf32>
    %192 = tpu.matmul %186, %191, %cst_41 {dimension_numbers = #tpu.dot_dimension_numbers<[1], [0], [0], [1], [0, 0, 1, 1], [], []>} : vector<8x32xf32>, vector<32x128xf32>, vector<8x128xf32> -> vector<8x128xf32>
    %193 = tpu.iota {dimensions = array<i32: 1>} : vector<8x128xi32>
    %c0_42 = arith.constant 0 : index
    %c0_43 = arith.constant 0 : index
    %c0_44 = arith.constant 0 : index
    %194 = vector.load %arg2[%c0_42, %c0_43, %c0_44] : memref<8x8x1xi32, #tpu.memory_space<vmem>>, vector<1x8x1xi32>
    %195 = vector.shape_cast %194 : vector<1x8x1xi32> to vector<8x1xi32>
    %196 = vector.broadcast %195 : vector<8x1xi32> to vector<8x128xi32>
    %197 = arith.cmpi eq, %193, %196 : vector<8x128xi32>
    %198 = arith.extui %197 : vector<8x128xi1> to vector<8x128xi32>
    %199 = arith.sitofp %198 : vector<8x128xi32> to vector<8x128xf32>
    %cst_45 = arith.constant 0.000000e+00 : f32
    %200 = vector.broadcast %cst_45 : f32 to vector<8x128xf32>
    %201 = tpu.concatenate %199, %186 in 1 : vector<8x128xf32>, vector<8x32xf32> -> vector<8x160xf32>
    %cst_46 = arith.constant dense<0.000000e+00> : vector<8x384xf32>
    %202 = tpu.matmul %201, %187, %cst_46 {dimension_numbers = #tpu.dot_dimension_numbers<[1], [0], [0], [1], [0, 0, 1, 1], [], []>} : vector<8x160xf32>, vector<160x384xf32>, vector<8x384xf32> -> vector<8x384xf32>
    %203 = vector.extract_strided_slice %202 {offsets = [0, 0], sizes = [8, 128], strides = [1, 1]} : vector<8x384xf32> to vector<8x128xf32>
    %204 = arith.addf %203, %190 : vector<8x128xf32>
    %205 = vector.extract_strided_slice %202 {offsets = [0, 128], sizes = [8, 128], strides = [1, 1]} : vector<8x384xf32> to vector<8x128xf32>
    %206 = vector.extract_strided_slice %202 {offsets = [0, 256], sizes = [8, 128], strides = [1, 1]} : vector<8x384xf32> to vector<8x128xf32>
    %207 = arith.addf %204, %205 : vector<8x128xf32>
    %208 = arith.negf %207 : vector<8x128xf32>
    %209 = math.exp %208 : vector<8x128xf32>
    %cst_47 = arith.constant 1.000000e+00 : f32
    %210 = vector.broadcast %cst_47 : f32 to vector<8x128xf32>
    %211 = arith.addf %210, %209 : vector<8x128xf32>
    %212 = arith.divf %210, %211 : vector<8x128xf32>
    %213 = vector.extract_strided_slice %212 {offsets = [0, 0], sizes = [8, 32], strides = [1, 1]} : vector<8x128xf32> to vector<8x32xf32>
    %214 = vector.extract_strided_slice %212 {offsets = [0, 32], sizes = [8, 32], strides = [1, 1]} : vector<8x128xf32> to vector<8x32xf32>
    %215 = vector.extract_strided_slice %204 {offsets = [0, 64], sizes = [8, 32], strides = [1, 1]} : vector<8x128xf32> to vector<8x32xf32>
    %216 = vector.extract_strided_slice %205 {offsets = [0, 64], sizes = [8, 32], strides = [1, 1]} : vector<8x128xf32> to vector<8x32xf32>
    %217 = arith.mulf %213, %216 : vector<8x32xf32>
    %218 = arith.addf %215, %217 : vector<8x32xf32>
    %219 = math.tanh %218 : vector<8x32xf32>
    %cst_48 = arith.constant 1.000000e+00 : f32
    %220 = vector.broadcast %cst_48 : f32 to vector<8x32xf32>
    %221 = arith.subf %220, %214 : vector<8x32xf32>
    %222 = arith.mulf %221, %219 : vector<8x32xf32>
    %223 = arith.mulf %214, %186 : vector<8x32xf32>
    %224 = arith.addf %222, %223 : vector<8x32xf32>
    %cst_49 = arith.constant dense<0.000000e+00> : vector<8x128xf32>
    %225 = tpu.matmul %224, %188, %cst_49 {dimension_numbers = #tpu.dot_dimension_numbers<[1], [0], [0], [1], [0, 0, 1, 1], [], []>} : vector<8x32xf32>, vector<32x128xf32>, vector<8x128xf32> -> vector<8x128xf32>
    %226 = arith.addf %225, %206 : vector<8x128xf32>
    %227 = arith.addf %226, %192 : vector<8x128xf32>
    %c16_i32 = arith.constant 16 : i32
    %228 = vector.broadcast %c16_i32 : i32 to vector<8x128xi32>
    %229 = arith.cmpi slt, %193, %228 : vector<8x128xi32>
    %cst_50 = arith.constant 0xFF800000 : f32
    %230 = vector.broadcast %cst_50 : f32 to vector<8x128xf32>
    %231 = arith.select %229, %227, %230 : vector<8x128xi1>, vector<8x128xf32>
    %cst_51 = arith.constant dense<0xFF800000> : vector<8xf32>
    %232 = vector.multi_reduction <maximumf>, %231, %cst_51 [1] : vector<8x128xf32> to vector<8xf32>
    %233 = vector.shape_cast %232 : vector<8xf32> to vector<8x1xf32>
    %234 = vector.broadcast %233 : vector<8x1xf32> to vector<8x128xf32>
    %235 = arith.cmpf oge, %231, %234 : vector<8x128xf32>
    %c128_i32 = arith.constant 128 : i32
    %236 = vector.broadcast %c128_i32 : i32 to vector<8x128xi32>
    %237 = arith.select %235, %193, %236 : vector<8x128xi1>, vector<8x128xi32>
    %cst_52 = arith.constant dense<2147483647> : vector<8xi32>
    %238 = vector.multi_reduction <minsi>, %237, %cst_52 [1] : vector<8x128xi32> to vector<8xi32>
    %239 = vector.shape_cast %238 : vector<8xi32> to vector<8x1xi32>
    %240 = vector.broadcast %239 : vector<8x1xi32> to vector<8x128xi32>
    %241 = arith.cmpi eq, %193, %240 : vector<8x128xi32>
    %242 = arith.extui %241 : vector<8x128xi1> to vector<8x128xi32>
    %243 = arith.sitofp %242 : vector<8x128xi32> to vector<8x128xf32>
    %c1 = arith.constant 1 : index
    %c0_53 = arith.constant 0 : index
    %c0_54 = arith.constant 0 : index
    %244 = vector.load %arg2[%c1, %c0_53, %c0_54] : memref<8x8x1xi32, #tpu.memory_space<vmem>>, vector<1x8x1xi32>
    %245 = vector.shape_cast %244 : vector<1x8x1xi32> to vector<8x1xi32>
    %246 = vector.broadcast %245 : vector<8x1xi32> to vector<8x128xi32>
    %247 = arith.cmpi eq, %193, %246 : vector<8x128xi32>
    %248 = arith.extui %247 : vector<8x128xi1> to vector<8x128xi32>
    %249 = arith.sitofp %248 : vector<8x128xi32> to vector<8x128xf32>
    %c1_55 = arith.constant 1 : index
    %250 = memref.load %arg0[%c1_55] : memref<8xi32, #tpu.memory_space<smem>>
    %c0_i32 = arith.constant 0 : i32
    %251 = arith.cmpi sgt, %250, %c0_i32 : i32
    %252 = arith.select %251, %249, %243 : vector<8x128xf32>
    %253 = tpu.concatenate %252, %224 in 1 : vector<8x128xf32>, vector<8x32xf32> -> vector<8x160xf32>
    %cst_56 = arith.constant dense<0.000000e+00> : vector<8x384xf32>
    %254 = tpu.matmul %253, %187, %cst_56 {dimension_numbers = #tpu.dot_dimension_numbers<[1], [0], [0], [1], [0, 0, 1, 1], [], []>} : vector<8x160xf32>, vector<160x384xf32>, vector<8x384xf32> -> vector<8x384xf32>
    %255 = vector.extract_strided_slice %254 {offsets = [0, 0], sizes = [8, 128], strides = [1, 1]} : vector<8x384xf32> to vector<8x128xf32>
    %256 = arith.addf %255, %190 : vector<8x128xf32>
    %257 = vector.extract_strided_slice %254 {offsets = [0, 128], sizes = [8, 128], strides = [1, 1]} : vector<8x384xf32> to vector<8x128xf32>
    %258 = vector.extract_strided_slice %254 {offsets = [0, 256], sizes = [8, 128], strides = [1, 1]} : vector<8x384xf32> to vector<8x128xf32>
    %259 = arith.addf %256, %257 : vector<8x128xf32>
    %260 = arith.negf %259 : vector<8x128xf32>
    %261 = math.exp %260 : vector<8x128xf32>
    %cst_57 = arith.constant 1.000000e+00 : f32
    %262 = vector.broadcast %cst_57 : f32 to vector<8x128xf32>
    %263 = arith.addf %262, %261 : vector<8x128xf32>
    %264 = arith.divf %262, %263 : vector<8x128xf32>
    %265 = vector.extract_strided_slice %264 {offsets = [0, 0], sizes = [8, 32], strides = [1, 1]} : vector<8x128xf32> to vector<8x32xf32>
    %266 = vector.extract_strided_slice %264 {offsets = [0, 32], sizes = [8, 32], strides = [1, 1]} : vector<8x128xf32> to vector<8x32xf32>
    %267 = vector.extract_strided_slice %256 {offsets = [0, 64], sizes = [8, 32], strides = [1, 1]} : vector<8x128xf32> to vector<8x32xf32>
    %268 = vector.extract_strided_slice %257 {offsets = [0, 64], sizes = [8, 32], strides = [1, 1]} : vector<8x128xf32> to vector<8x32xf32>
    %269 = arith.mulf %265, %268 : vector<8x32xf32>
    %270 = arith.addf %267, %269 : vector<8x32xf32>
    %271 = math.tanh %270 : vector<8x32xf32>
    %cst_58 = arith.constant 1.000000e+00 : f32
    %272 = vector.broadcast %cst_58 : f32 to vector<8x32xf32>
    %273 = arith.subf %272, %266 : vector<8x32xf32>
    %274 = arith.mulf %273, %271 : vector<8x32xf32>
    %275 = arith.mulf %266, %224 : vector<8x32xf32>
    %276 = arith.addf %274, %275 : vector<8x32xf32>
    %cst_59 = arith.constant dense<0.000000e+00> : vector<8x128xf32>
    %277 = tpu.matmul %276, %188, %cst_59 {dimension_numbers = #tpu.dot_dimension_numbers<[1], [0], [0], [1], [0, 0, 1, 1], [], []>} : vector<8x32xf32>, vector<32x128xf32>, vector<8x128xf32> -> vector<8x128xf32>
    %278 = arith.addf %277, %258 : vector<8x128xf32>
    %279 = arith.addf %278, %192 : vector<8x128xf32>
    %c16_i32_60 = arith.constant 16 : i32
    %280 = vector.broadcast %c16_i32_60 : i32 to vector<8x128xi32>
    %281 = arith.cmpi slt, %193, %280 : vector<8x128xi32>
    %cst_61 = arith.constant 0xFF800000 : f32
    %282 = vector.broadcast %cst_61 : f32 to vector<8x128xf32>
    %283 = arith.select %281, %279, %282 : vector<8x128xi1>, vector<8x128xf32>
    %cst_62 = arith.constant dense<0xFF800000> : vector<8xf32>
    %284 = vector.multi_reduction <maximumf>, %283, %cst_62 [1] : vector<8x128xf32> to vector<8xf32>
    %285 = vector.shape_cast %284 : vector<8xf32> to vector<8x1xf32>
    %286 = vector.broadcast %285 : vector<8x1xf32> to vector<8x128xf32>
    %287 = arith.cmpf oge, %283, %286 : vector<8x128xf32>
    %c128_i32_63 = arith.constant 128 : i32
    %288 = vector.broadcast %c128_i32_63 : i32 to vector<8x128xi32>
    %289 = arith.select %287, %193, %288 : vector<8x128xi1>, vector<8x128xi32>
    %cst_64 = arith.constant dense<2147483647> : vector<8xi32>
    %290 = vector.multi_reduction <minsi>, %289, %cst_64 [1] : vector<8x128xi32> to vector<8xi32>
    %291 = vector.shape_cast %290 : vector<8xi32> to vector<8x1xi32>
    %292 = vector.broadcast %291 : vector<8x1xi32> to vector<8x128xi32>
    %293 = arith.cmpi eq, %193, %292 : vector<8x128xi32>
    %294 = arith.extui %293 : vector<8x128xi1> to vector<8x128xi32>
    %295 = arith.sitofp %294 : vector<8x128xi32> to vector<8x128xf32>
    %c2 = arith.constant 2 : index
    %c0_65 = arith.constant 0 : index
    %c0_66 = arith.constant 0 : index
    %296 = vector.load %arg2[%c2, %c0_65, %c0_66] : memref<8x8x1xi32, #tpu.memory_space<vmem>>, vector<1x8x1xi32>
    %297 = vector.shape_cast %296 : vector<1x8x1xi32> to vector<8x1xi32>
    %298 = vector.broadcast %297 : vector<8x1xi32> to vector<8x128xi32>
    %299 = arith.cmpi eq, %193, %298 : vector<8x128xi32>
    %300 = arith.extui %299 : vector<8x128xi1> to vector<8x128xi32>
    %301 = arith.sitofp %300 : vector<8x128xi32> to vector<8x128xf32>
    %c2_67 = arith.constant 2 : index
    %302 = memref.load %arg0[%c2_67] : memref<8xi32, #tpu.memory_space<smem>>
    %c0_i32_68 = arith.constant 0 : i32
    %303 = arith.cmpi sgt, %302, %c0_i32_68 : i32
    %304 = arith.select %303, %301, %295 : vector<8x128xf32>
    %305 = tpu.concatenate %304, %276 in 1 : vector<8x128xf32>, vector<8x32xf32> -> vector<8x160xf32>
    %cst_69 = arith.constant dense<0.000000e+00> : vector<8x384xf32>
    %306 = tpu.matmul %305, %187, %cst_69 {dimension_numbers = #tpu.dot_dimension_numbers<[1], [0], [0], [1], [0, 0, 1, 1], [], []>} : vector<8x160xf32>, vector<160x384xf32>, vector<8x384xf32> -> vector<8x384xf32>
    %307 = vector.extract_strided_slice %306 {offsets = [0, 0], sizes = [8, 128], strides = [1, 1]} : vector<8x384xf32> to vector<8x128xf32>
    %308 = arith.addf %307, %190 : vector<8x128xf32>
    %309 = vector.extract_strided_slice %306 {offsets = [0, 128], sizes = [8, 128], strides = [1, 1]} : vector<8x384xf32> to vector<8x128xf32>
    %310 = vector.extract_strided_slice %306 {offsets = [0, 256], sizes = [8, 128], strides = [1, 1]} : vector<8x384xf32> to vector<8x128xf32>
    %311 = arith.addf %308, %309 : vector<8x128xf32>
    %312 = arith.negf %311 : vector<8x128xf32>
    %313 = math.exp %312 : vector<8x128xf32>
    %cst_70 = arith.constant 1.000000e+00 : f32
    %314 = vector.broadcast %cst_70 : f32 to vector<8x128xf32>
    %315 = arith.addf %314, %313 : vector<8x128xf32>
    %316 = arith.divf %314, %315 : vector<8x128xf32>
    %317 = vector.extract_strided_slice %316 {offsets = [0, 0], sizes = [8, 32], strides = [1, 1]} : vector<8x128xf32> to vector<8x32xf32>
    %318 = vector.extract_strided_slice %316 {offsets = [0, 32], sizes = [8, 32], strides = [1, 1]} : vector<8x128xf32> to vector<8x32xf32>
    %319 = vector.extract_strided_slice %308 {offsets = [0, 64], sizes = [8, 32], strides = [1, 1]} : vector<8x128xf32> to vector<8x32xf32>
    %320 = vector.extract_strided_slice %309 {offsets = [0, 64], sizes = [8, 32], strides = [1, 1]} : vector<8x128xf32> to vector<8x32xf32>
    %321 = arith.mulf %317, %320 : vector<8x32xf32>
    %322 = arith.addf %319, %321 : vector<8x32xf32>
    %323 = math.tanh %322 : vector<8x32xf32>
    %cst_71 = arith.constant 1.000000e+00 : f32
    %324 = vector.broadcast %cst_71 : f32 to vector<8x32xf32>
    %325 = arith.subf %324, %318 : vector<8x32xf32>
    %326 = arith.mulf %325, %323 : vector<8x32xf32>
    %327 = arith.mulf %318, %276 : vector<8x32xf32>
    %328 = arith.addf %326, %327 : vector<8x32xf32>
    %cst_72 = arith.constant dense<0.000000e+00> : vector<8x128xf32>
    %329 = tpu.matmul %328, %188, %cst_72 {dimension_numbers = #tpu.dot_dimension_numbers<[1], [0], [0], [1], [0, 0, 1, 1], [], []>} : vector<8x32xf32>, vector<32x128xf32>, vector<8x128xf32> -> vector<8x128xf32>
    %330 = arith.addf %329, %310 : vector<8x128xf32>
    %331 = arith.addf %330, %192 : vector<8x128xf32>
    %c16_i32_73 = arith.constant 16 : i32
    %332 = vector.broadcast %c16_i32_73 : i32 to vector<8x128xi32>
    %333 = arith.cmpi slt, %193, %332 : vector<8x128xi32>
    %cst_74 = arith.constant 0xFF800000 : f32
    %334 = vector.broadcast %cst_74 : f32 to vector<8x128xf32>
    %335 = arith.select %333, %331, %334 : vector<8x128xi1>, vector<8x128xf32>
    %cst_75 = arith.constant dense<0xFF800000> : vector<8xf32>
    %336 = vector.multi_reduction <maximumf>, %335, %cst_75 [1] : vector<8x128xf32> to vector<8xf32>
    %337 = vector.shape_cast %336 : vector<8xf32> to vector<8x1xf32>
    %338 = vector.broadcast %337 : vector<8x1xf32> to vector<8x128xf32>
    %339 = arith.cmpf oge, %335, %338 : vector<8x128xf32>
    %c128_i32_76 = arith.constant 128 : i32
    %340 = vector.broadcast %c128_i32_76 : i32 to vector<8x128xi32>
    %341 = arith.select %339, %193, %340 : vector<8x128xi1>, vector<8x128xi32>
    %cst_77 = arith.constant dense<2147483647> : vector<8xi32>
    %342 = vector.multi_reduction <minsi>, %341, %cst_77 [1] : vector<8x128xi32> to vector<8xi32>
    %343 = vector.shape_cast %342 : vector<8xi32> to vector<8x1xi32>
    %344 = vector.broadcast %343 : vector<8x1xi32> to vector<8x128xi32>
    %345 = arith.cmpi eq, %193, %344 : vector<8x128xi32>
    %346 = arith.extui %345 : vector<8x128xi1> to vector<8x128xi32>
    %347 = arith.sitofp %346 : vector<8x128xi32> to vector<8x128xf32>
    %c3 = arith.constant 3 : index
    %c0_78 = arith.constant 0 : index
    %c0_79 = arith.constant 0 : index
    %348 = vector.load %arg2[%c3, %c0_78, %c0_79] : memref<8x8x1xi32, #tpu.memory_space<vmem>>, vector<1x8x1xi32>
    %349 = vector.shape_cast %348 : vector<1x8x1xi32> to vector<8x1xi32>
    %350 = vector.broadcast %349 : vector<8x1xi32> to vector<8x128xi32>
    %351 = arith.cmpi eq, %193, %350 : vector<8x128xi32>
    %352 = arith.extui %351 : vector<8x128xi1> to vector<8x128xi32>
    %353 = arith.sitofp %352 : vector<8x128xi32> to vector<8x128xf32>
    %c3_80 = arith.constant 3 : index
    %354 = memref.load %arg0[%c3_80] : memref<8xi32, #tpu.memory_space<smem>>
    %c0_i32_81 = arith.constant 0 : i32
    %355 = arith.cmpi sgt, %354, %c0_i32_81 : i32
    %356 = arith.select %355, %353, %347 : vector<8x128xf32>
    %357 = tpu.concatenate %356, %328 in 1 : vector<8x128xf32>, vector<8x32xf32> -> vector<8x160xf32>
    %cst_82 = arith.constant dense<0.000000e+00> : vector<8x384xf32>
    %358 = tpu.matmul %357, %187, %cst_82 {dimension_numbers = #tpu.dot_dimension_numbers<[1], [0], [0], [1], [0, 0, 1, 1], [], []>} : vector<8x160xf32>, vector<160x384xf32>, vector<8x384xf32> -> vector<8x384xf32>
    %359 = vector.extract_strided_slice %358 {offsets = [0, 0], sizes = [8, 128], strides = [1, 1]} : vector<8x384xf32> to vector<8x128xf32>
    %360 = arith.addf %359, %190 : vector<8x128xf32>
    %361 = vector.extract_strided_slice %358 {offsets = [0, 128], sizes = [8, 128], strides = [1, 1]} : vector<8x384xf32> to vector<8x128xf32>
    %362 = vector.extract_strided_slice %358 {offsets = [0, 256], sizes = [8, 128], strides = [1, 1]} : vector<8x384xf32> to vector<8x128xf32>
    %363 = arith.addf %360, %361 : vector<8x128xf32>
    %364 = arith.negf %363 : vector<8x128xf32>
    %365 = math.exp %364 : vector<8x128xf32>
    %cst_83 = arith.constant 1.000000e+00 : f32
    %366 = vector.broadcast %cst_83 : f32 to vector<8x128xf32>
    %367 = arith.addf %366, %365 : vector<8x128xf32>
    %368 = arith.divf %366, %367 : vector<8x128xf32>
    %369 = vector.extract_strided_slice %368 {offsets = [0, 0], sizes = [8, 32], strides = [1, 1]} : vector<8x128xf32> to vector<8x32xf32>
    %370 = vector.extract_strided_slice %368 {offsets = [0, 32], sizes = [8, 32], strides = [1, 1]} : vector<8x128xf32> to vector<8x32xf32>
    %371 = vector.extract_strided_slice %360 {offsets = [0, 64], sizes = [8, 32], strides = [1, 1]} : vector<8x128xf32> to vector<8x32xf32>
    %372 = vector.extract_strided_slice %361 {offsets = [0, 64], sizes = [8, 32], strides = [1, 1]} : vector<8x128xf32> to vector<8x32xf32>
    %373 = arith.mulf %369, %372 : vector<8x32xf32>
    %374 = arith.addf %371, %373 : vector<8x32xf32>
    %375 = math.tanh %374 : vector<8x32xf32>
    %cst_84 = arith.constant 1.000000e+00 : f32
    %376 = vector.broadcast %cst_84 : f32 to vector<8x32xf32>
    %377 = arith.subf %376, %370 : vector<8x32xf32>
    %378 = arith.mulf %377, %375 : vector<8x32xf32>
    %379 = arith.mulf %370, %328 : vector<8x32xf32>
    %380 = arith.addf %378, %379 : vector<8x32xf32>
    %cst_85 = arith.constant dense<0.000000e+00> : vector<8x128xf32>
    %381 = tpu.matmul %380, %188, %cst_85 {dimension_numbers = #tpu.dot_dimension_numbers<[1], [0], [0], [1], [0, 0, 1, 1], [], []>} : vector<8x32xf32>, vector<32x128xf32>, vector<8x128xf32> -> vector<8x128xf32>
    %382 = arith.addf %381, %362 : vector<8x128xf32>
    %383 = arith.addf %382, %192 : vector<8x128xf32>
    %c16_i32_86 = arith.constant 16 : i32
    %384 = vector.broadcast %c16_i32_86 : i32 to vector<8x128xi32>
    %385 = arith.cmpi slt, %193, %384 : vector<8x128xi32>
    %cst_87 = arith.constant 0xFF800000 : f32
    %386 = vector.broadcast %cst_87 : f32 to vector<8x128xf32>
    %387 = arith.select %385, %383, %386 : vector<8x128xi1>, vector<8x128xf32>
    %cst_88 = arith.constant dense<0xFF800000> : vector<8xf32>
    %388 = vector.multi_reduction <maximumf>, %387, %cst_88 [1] : vector<8x128xf32> to vector<8xf32>
    %389 = vector.shape_cast %388 : vector<8xf32> to vector<8x1xf32>
    %390 = vector.broadcast %389 : vector<8x1xf32> to vector<8x128xf32>
    %391 = arith.cmpf oge, %387, %390 : vector<8x128xf32>
    %c128_i32_89 = arith.constant 128 : i32
    %392 = vector.broadcast %c128_i32_89 : i32 to vector<8x128xi32>
    %393 = arith.select %391, %193, %392 : vector<8x128xi1>, vector<8x128xi32>
    %cst_90 = arith.constant dense<2147483647> : vector<8xi32>
    %394 = vector.multi_reduction <minsi>, %393, %cst_90 [1] : vector<8x128xi32> to vector<8xi32>
    %395 = vector.shape_cast %394 : vector<8xi32> to vector<8x1xi32>
    %396 = vector.broadcast %395 : vector<8x1xi32> to vector<8x128xi32>
    %397 = arith.cmpi eq, %193, %396 : vector<8x128xi32>
    %398 = arith.extui %397 : vector<8x128xi1> to vector<8x128xi32>
    %399 = arith.sitofp %398 : vector<8x128xi32> to vector<8x128xf32>
    %c4 = arith.constant 4 : index
    %c0_91 = arith.constant 0 : index
    %c0_92 = arith.constant 0 : index
    %400 = vector.load %arg2[%c4, %c0_91, %c0_92] : memref<8x8x1xi32, #tpu.memory_space<vmem>>, vector<1x8x1xi32>
    %401 = vector.shape_cast %400 : vector<1x8x1xi32> to vector<8x1xi32>
    %402 = vector.broadcast %401 : vector<8x1xi32> to vector<8x128xi32>
    %403 = arith.cmpi eq, %193, %402 : vector<8x128xi32>
    %404 = arith.extui %403 : vector<8x128xi1> to vector<8x128xi32>
    %405 = arith.sitofp %404 : vector<8x128xi32> to vector<8x128xf32>
    %c4_93 = arith.constant 4 : index
    %406 = memref.load %arg0[%c4_93] : memref<8xi32, #tpu.memory_space<smem>>
    %c0_i32_94 = arith.constant 0 : i32
    %407 = arith.cmpi sgt, %406, %c0_i32_94 : i32
    %408 = arith.select %407, %405, %399 : vector<8x128xf32>
    %409 = tpu.concatenate %408, %380 in 1 : vector<8x128xf32>, vector<8x32xf32> -> vector<8x160xf32>
    %cst_95 = arith.constant dense<0.000000e+00> : vector<8x384xf32>
    %410 = tpu.matmul %409, %187, %cst_95 {dimension_numbers = #tpu.dot_dimension_numbers<[1], [0], [0], [1], [0, 0, 1, 1], [], []>} : vector<8x160xf32>, vector<160x384xf32>, vector<8x384xf32> -> vector<8x384xf32>
    %411 = vector.extract_strided_slice %410 {offsets = [0, 0], sizes = [8, 128], strides = [1, 1]} : vector<8x384xf32> to vector<8x128xf32>
    %412 = arith.addf %411, %190 : vector<8x128xf32>
    %413 = vector.extract_strided_slice %410 {offsets = [0, 128], sizes = [8, 128], strides = [1, 1]} : vector<8x384xf32> to vector<8x128xf32>
    %414 = vector.extract_strided_slice %410 {offsets = [0, 256], sizes = [8, 128], strides = [1, 1]} : vector<8x384xf32> to vector<8x128xf32>
    %415 = arith.addf %412, %413 : vector<8x128xf32>
    %416 = arith.negf %415 : vector<8x128xf32>
    %417 = math.exp %416 : vector<8x128xf32>
    %cst_96 = arith.constant 1.000000e+00 : f32
    %418 = vector.broadcast %cst_96 : f32 to vector<8x128xf32>
    %419 = arith.addf %418, %417 : vector<8x128xf32>
    %420 = arith.divf %418, %419 : vector<8x128xf32>
    %421 = vector.extract_strided_slice %420 {offsets = [0, 0], sizes = [8, 32], strides = [1, 1]} : vector<8x128xf32> to vector<8x32xf32>
    %422 = vector.extract_strided_slice %420 {offsets = [0, 32], sizes = [8, 32], strides = [1, 1]} : vector<8x128xf32> to vector<8x32xf32>
    %423 = vector.extract_strided_slice %412 {offsets = [0, 64], sizes = [8, 32], strides = [1, 1]} : vector<8x128xf32> to vector<8x32xf32>
    %424 = vector.extract_strided_slice %413 {offsets = [0, 64], sizes = [8, 32], strides = [1, 1]} : vector<8x128xf32> to vector<8x32xf32>
    %425 = arith.mulf %421, %424 : vector<8x32xf32>
    %426 = arith.addf %423, %425 : vector<8x32xf32>
    %427 = math.tanh %426 : vector<8x32xf32>
    %cst_97 = arith.constant 1.000000e+00 : f32
    %428 = vector.broadcast %cst_97 : f32 to vector<8x32xf32>
    %429 = arith.subf %428, %422 : vector<8x32xf32>
    %430 = arith.mulf %429, %427 : vector<8x32xf32>
    %431 = arith.mulf %422, %380 : vector<8x32xf32>
    %432 = arith.addf %430, %431 : vector<8x32xf32>
    %cst_98 = arith.constant dense<0.000000e+00> : vector<8x128xf32>
    %433 = tpu.matmul %432, %188, %cst_98 {dimension_numbers = #tpu.dot_dimension_numbers<[1], [0], [0], [1], [0, 0, 1, 1], [], []>} : vector<8x32xf32>, vector<32x128xf32>, vector<8x128xf32> -> vector<8x128xf32>
    %434 = arith.addf %433, %414 : vector<8x128xf32>
    %435 = arith.addf %434, %192 : vector<8x128xf32>
    %c16_i32_99 = arith.constant 16 : i32
    %436 = vector.broadcast %c16_i32_99 : i32 to vector<8x128xi32>
    %437 = arith.cmpi slt, %193, %436 : vector<8x128xi32>
    %cst_100 = arith.constant 0xFF800000 : f32
    %438 = vector.broadcast %cst_100 : f32 to vector<8x128xf32>
    %439 = arith.select %437, %435, %438 : vector<8x128xi1>, vector<8x128xf32>
    %cst_101 = arith.constant dense<0xFF800000> : vector<8xf32>
    %440 = vector.multi_reduction <maximumf>, %439, %cst_101 [1] : vector<8x128xf32> to vector<8xf32>
    %441 = vector.shape_cast %440 : vector<8xf32> to vector<8x1xf32>
    %442 = vector.broadcast %441 : vector<8x1xf32> to vector<8x128xf32>
    %443 = arith.cmpf oge, %439, %442 : vector<8x128xf32>
    %c128_i32_102 = arith.constant 128 : i32
    %444 = vector.broadcast %c128_i32_102 : i32 to vector<8x128xi32>
    %445 = arith.select %443, %193, %444 : vector<8x128xi1>, vector<8x128xi32>
    %cst_103 = arith.constant dense<2147483647> : vector<8xi32>
    %446 = vector.multi_reduction <minsi>, %445, %cst_103 [1] : vector<8x128xi32> to vector<8xi32>
    %447 = vector.shape_cast %446 : vector<8xi32> to vector<8x1xi32>
    %448 = vector.broadcast %447 : vector<8x1xi32> to vector<8x128xi32>
    %449 = arith.cmpi eq, %193, %448 : vector<8x128xi32>
    %450 = arith.extui %449 : vector<8x128xi1> to vector<8x128xi32>
    %451 = arith.sitofp %450 : vector<8x128xi32> to vector<8x128xf32>
    %c5 = arith.constant 5 : index
    %c0_104 = arith.constant 0 : index
    %c0_105 = arith.constant 0 : index
    %452 = vector.load %arg2[%c5, %c0_104, %c0_105] : memref<8x8x1xi32, #tpu.memory_space<vmem>>, vector<1x8x1xi32>
    %453 = vector.shape_cast %452 : vector<1x8x1xi32> to vector<8x1xi32>
    %454 = vector.broadcast %453 : vector<8x1xi32> to vector<8x128xi32>
    %455 = arith.cmpi eq, %193, %454 : vector<8x128xi32>
    %456 = arith.extui %455 : vector<8x128xi1> to vector<8x128xi32>
    %457 = arith.sitofp %456 : vector<8x128xi32> to vector<8x128xf32>
    %c5_106 = arith.constant 5 : index
    %458 = memref.load %arg0[%c5_106] : memref<8xi32, #tpu.memory_space<smem>>
    %c0_i32_107 = arith.constant 0 : i32
    %459 = arith.cmpi sgt, %458, %c0_i32_107 : i32
    %460 = arith.select %459, %457, %451 : vector<8x128xf32>
    %461 = tpu.concatenate %460, %432 in 1 : vector<8x128xf32>, vector<8x32xf32> -> vector<8x160xf32>
    %cst_108 = arith.constant dense<0.000000e+00> : vector<8x384xf32>
    %462 = tpu.matmul %461, %187, %cst_108 {dimension_numbers = #tpu.dot_dimension_numbers<[1], [0], [0], [1], [0, 0, 1, 1], [], []>} : vector<8x160xf32>, vector<160x384xf32>, vector<8x384xf32> -> vector<8x384xf32>
    %463 = vector.extract_strided_slice %462 {offsets = [0, 0], sizes = [8, 128], strides = [1, 1]} : vector<8x384xf32> to vector<8x128xf32>
    %464 = arith.addf %463, %190 : vector<8x128xf32>
    %465 = vector.extract_strided_slice %462 {offsets = [0, 128], sizes = [8, 128], strides = [1, 1]} : vector<8x384xf32> to vector<8x128xf32>
    %466 = vector.extract_strided_slice %462 {offsets = [0, 256], sizes = [8, 128], strides = [1, 1]} : vector<8x384xf32> to vector<8x128xf32>
    %467 = arith.addf %464, %465 : vector<8x128xf32>
    %468 = arith.negf %467 : vector<8x128xf32>
    %469 = math.exp %468 : vector<8x128xf32>
    %cst_109 = arith.constant 1.000000e+00 : f32
    %470 = vector.broadcast %cst_109 : f32 to vector<8x128xf32>
    %471 = arith.addf %470, %469 : vector<8x128xf32>
    %472 = arith.divf %470, %471 : vector<8x128xf32>
    %473 = vector.extract_strided_slice %472 {offsets = [0, 0], sizes = [8, 32], strides = [1, 1]} : vector<8x128xf32> to vector<8x32xf32>
    %474 = vector.extract_strided_slice %472 {offsets = [0, 32], sizes = [8, 32], strides = [1, 1]} : vector<8x128xf32> to vector<8x32xf32>
    %475 = vector.extract_strided_slice %464 {offsets = [0, 64], sizes = [8, 32], strides = [1, 1]} : vector<8x128xf32> to vector<8x32xf32>
    %476 = vector.extract_strided_slice %465 {offsets = [0, 64], sizes = [8, 32], strides = [1, 1]} : vector<8x128xf32> to vector<8x32xf32>
    %477 = arith.mulf %473, %476 : vector<8x32xf32>
    %478 = arith.addf %475, %477 : vector<8x32xf32>
    %479 = math.tanh %478 : vector<8x32xf32>
    %cst_110 = arith.constant 1.000000e+00 : f32
    %480 = vector.broadcast %cst_110 : f32 to vector<8x32xf32>
    %481 = arith.subf %480, %474 : vector<8x32xf32>
    %482 = arith.mulf %481, %479 : vector<8x32xf32>
    %483 = arith.mulf %474, %432 : vector<8x32xf32>
    %484 = arith.addf %482, %483 : vector<8x32xf32>
    %cst_111 = arith.constant dense<0.000000e+00> : vector<8x128xf32>
    %485 = tpu.matmul %484, %188, %cst_111 {dimension_numbers = #tpu.dot_dimension_numbers<[1], [0], [0], [1], [0, 0, 1, 1], [], []>} : vector<8x32xf32>, vector<32x128xf32>, vector<8x128xf32> -> vector<8x128xf32>
    %486 = arith.addf %485, %466 : vector<8x128xf32>
    %487 = arith.addf %486, %192 : vector<8x128xf32>
    %c16_i32_112 = arith.constant 16 : i32
    %488 = vector.broadcast %c16_i32_112 : i32 to vector<8x128xi32>
    %489 = arith.cmpi slt, %193, %488 : vector<8x128xi32>
    %cst_113 = arith.constant 0xFF800000 : f32
    %490 = vector.broadcast %cst_113 : f32 to vector<8x128xf32>
    %491 = arith.select %489, %487, %490 : vector<8x128xi1>, vector<8x128xf32>
    %cst_114 = arith.constant dense<0xFF800000> : vector<8xf32>
    %492 = vector.multi_reduction <maximumf>, %491, %cst_114 [1] : vector<8x128xf32> to vector<8xf32>
    %493 = vector.shape_cast %492 : vector<8xf32> to vector<8x1xf32>
    %494 = vector.broadcast %493 : vector<8x1xf32> to vector<8x128xf32>
    %495 = arith.cmpf oge, %491, %494 : vector<8x128xf32>
    %c128_i32_115 = arith.constant 128 : i32
    %496 = vector.broadcast %c128_i32_115 : i32 to vector<8x128xi32>
    %497 = arith.select %495, %193, %496 : vector<8x128xi1>, vector<8x128xi32>
    %cst_116 = arith.constant dense<2147483647> : vector<8xi32>
    %498 = vector.multi_reduction <minsi>, %497, %cst_116 [1] : vector<8x128xi32> to vector<8xi32>
    %499 = vector.shape_cast %498 : vector<8xi32> to vector<8x1xi32>
    %500 = vector.broadcast %499 : vector<8x1xi32> to vector<8x128xi32>
    %501 = arith.cmpi eq, %193, %500 : vector<8x128xi32>
    %502 = arith.extui %501 : vector<8x128xi1> to vector<8x128xi32>
    %503 = arith.sitofp %502 : vector<8x128xi32> to vector<8x128xf32>
    %c6 = arith.constant 6 : index
    %c0_117 = arith.constant 0 : index
    %c0_118 = arith.constant 0 : index
    %504 = vector.load %arg2[%c6, %c0_117, %c0_118] : memref<8x8x1xi32, #tpu.memory_space<vmem>>, vector<1x8x1xi32>
    %505 = vector.shape_cast %504 : vector<1x8x1xi32> to vector<8x1xi32>
    %506 = vector.broadcast %505 : vector<8x1xi32> to vector<8x128xi32>
    %507 = arith.cmpi eq, %193, %506 : vector<8x128xi32>
    %508 = arith.extui %507 : vector<8x128xi1> to vector<8x128xi32>
    %509 = arith.sitofp %508 : vector<8x128xi32> to vector<8x128xf32>
    %c6_119 = arith.constant 6 : index
    %510 = memref.load %arg0[%c6_119] : memref<8xi32, #tpu.memory_space<smem>>
    %c0_i32_120 = arith.constant 0 : i32
    %511 = arith.cmpi sgt, %510, %c0_i32_120 : i32
    %512 = arith.select %511, %509, %503 : vector<8x128xf32>
    %513 = tpu.concatenate %512, %484 in 1 : vector<8x128xf32>, vector<8x32xf32> -> vector<8x160xf32>
    %cst_121 = arith.constant dense<0.000000e+00> : vector<8x384xf32>
    %514 = tpu.matmul %513, %187, %cst_121 {dimension_numbers = #tpu.dot_dimension_numbers<[1], [0], [0], [1], [0, 0, 1, 1], [], []>} : vector<8x160xf32>, vector<160x384xf32>, vector<8x384xf32> -> vector<8x384xf32>
    %515 = vector.extract_strided_slice %514 {offsets = [0, 0], sizes = [8, 128], strides = [1, 1]} : vector<8x384xf32> to vector<8x128xf32>
    %516 = arith.addf %515, %190 : vector<8x128xf32>
    %517 = vector.extract_strided_slice %514 {offsets = [0, 128], sizes = [8, 128], strides = [1, 1]} : vector<8x384xf32> to vector<8x128xf32>
    %518 = vector.extract_strided_slice %514 {offsets = [0, 256], sizes = [8, 128], strides = [1, 1]} : vector<8x384xf32> to vector<8x128xf32>
    %519 = arith.addf %516, %517 : vector<8x128xf32>
    %520 = arith.negf %519 : vector<8x128xf32>
    %521 = math.exp %520 : vector<8x128xf32>
    %cst_122 = arith.constant 1.000000e+00 : f32
    %522 = vector.broadcast %cst_122 : f32 to vector<8x128xf32>
    %523 = arith.addf %522, %521 : vector<8x128xf32>
    %524 = arith.divf %522, %523 : vector<8x128xf32>
    %525 = vector.extract_strided_slice %524 {offsets = [0, 0], sizes = [8, 32], strides = [1, 1]} : vector<8x128xf32> to vector<8x32xf32>
    %526 = vector.extract_strided_slice %524 {offsets = [0, 32], sizes = [8, 32], strides = [1, 1]} : vector<8x128xf32> to vector<8x32xf32>
    %527 = vector.extract_strided_slice %516 {offsets = [0, 64], sizes = [8, 32], strides = [1, 1]} : vector<8x128xf32> to vector<8x32xf32>
    %528 = vector.extract_strided_slice %517 {offsets = [0, 64], sizes = [8, 32], strides = [1, 1]} : vector<8x128xf32> to vector<8x32xf32>
    %529 = arith.mulf %525, %528 : vector<8x32xf32>
    %530 = arith.addf %527, %529 : vector<8x32xf32>
    %531 = math.tanh %530 : vector<8x32xf32>
    %cst_123 = arith.constant 1.000000e+00 : f32
    %532 = vector.broadcast %cst_123 : f32 to vector<8x32xf32>
    %533 = arith.subf %532, %526 : vector<8x32xf32>
    %534 = arith.mulf %533, %531 : vector<8x32xf32>
    %535 = arith.mulf %526, %484 : vector<8x32xf32>
    %536 = arith.addf %534, %535 : vector<8x32xf32>
    %cst_124 = arith.constant dense<0.000000e+00> : vector<8x128xf32>
    %537 = tpu.matmul %536, %188, %cst_124 {dimension_numbers = #tpu.dot_dimension_numbers<[1], [0], [0], [1], [0, 0, 1, 1], [], []>} : vector<8x32xf32>, vector<32x128xf32>, vector<8x128xf32> -> vector<8x128xf32>
    %538 = arith.addf %537, %518 : vector<8x128xf32>
    %539 = arith.addf %538, %192 : vector<8x128xf32>
    %540 = vector.shape_cast %200 : vector<8x128xf32> to vector<1x8x128xf32>
    %541 = vector.shape_cast %227 : vector<8x128xf32> to vector<1x8x128xf32>
    %542 = vector.shape_cast %279 : vector<8x128xf32> to vector<1x8x128xf32>
    %543 = vector.shape_cast %331 : vector<8x128xf32> to vector<1x8x128xf32>
    %544 = vector.shape_cast %383 : vector<8x128xf32> to vector<1x8x128xf32>
    %545 = vector.shape_cast %435 : vector<8x128xf32> to vector<1x8x128xf32>
    %546 = vector.shape_cast %487 : vector<8x128xf32> to vector<1x8x128xf32>
    %547 = vector.shape_cast %539 : vector<8x128xf32> to vector<1x8x128xf32>
    %548 = tpu.concatenate %540, %541, %542, %543, %544, %545, %546, %547 in 0 : vector<1x8x128xf32>, vector<1x8x128xf32>, vector<1x8x128xf32>, vector<1x8x128xf32>, vector<1x8x128xf32>, vector<1x8x128xf32>, vector<1x8x128xf32>, vector<1x8x128xf32> -> vector<8x8x128xf32>
    %c0_125 = arith.constant 0 : index
    %c0_126 = arith.constant 0 : index
    %c0_127 = arith.constant 0 : index
    %549 = vector.load %arg10[%c0_125, %c0_126, %c0_127] : memref<8x8x128xf32, #tpu.memory_space<vmem>>, vector<8x8x128xf32>
    tpu.vector_store %arg10[%c0_125, %c0_126, %c0_127], %548 {strides = array<i32>} : memref<8x8x128xf32, #tpu.memory_space<vmem>>, vector<8x8x128xf32>,
    return
  }
}

</mosaic_0001>

<llo_original>
// kernel: _seq2seq_forward.1
$region0: #{_seq2seq_forward.1}
  #allocation0 [shape = 'u32[]', space=smem, size = 0x4, offset = 0x4, fixed_abs, tag = 'smem constant byte address 0x4 - core index']
  #allocation1 [shape = 'u32[144,128]{1,0:T(1,128)}', space=vmem, size = 0x12000, scoped, tag = 'internal scratch']
  %s0 = inlined_call_operand.vmem [shape: s32[8], index: 0, kind: input, shape index: {}]
  %s1 = inlined_call_operand.vmem [shape: s32[64,1], index: 1, kind: input, shape index: {}]
  %s2 = inlined_call_operand.vmem [shape: s32[8,8,1], index: 2, kind: input, shape index: {}]
  %s3 = inlined_call_operand.vmem [shape: f32[128,128], index: 3, kind: input, shape index: {}]
  %s4 = inlined_call_operand.vmem [shape: f32[32,128], index: 4, kind: input, shape index: {}]
  %s5 = inlined_call_operand.vmem [shape: f32[1,128], index: 5, kind: input, shape index: {}]
  %s6 = inlined_call_operand.hbm [shape: f32[160,384], index: 6, kind: input, shape index: {}]
  %s7 = inlined_call_operand.vmem [shape: f32[32,128], index: 7, kind: input, shape index: {}]
  %s8 = inlined_call_operand.vmem [shape: f32[32,128], index: 8, kind: input, shape index: {}]
  %s9 = inlined_call_operand.hbm [shape: f32[32,128], index: 9, kind: input, shape index: {}]
  %s10 = inlined_call_operand.vmem [shape: f32[8,8,128], index: 10, kind: output, shape index: {}]
  %s11 = sld [smem:[#allocation0]]
  $region62: #{_seq2seq_forward.1} parent=0
    _
  %s13 = ssub.s32 1, %s11
  %s14 = scalar_select 0, %s13, %s11
  $region1: #{_seq2seq_forward.1} parent=0
    #allocation2 [shape = 'u8[512]{0}', space=smem, size = 0x200, scoped, tag = 'input window, operand 0, single buffered']
    #allocation3 [shape = 's32[1]{0}', space=sflag, size = 0x4, scoped, tag = 'scoped memory for _seq2seq_forward.1']
    #allocation4 [shape = 's32[1]{0}', space=sflag, size = 0x4, scoped, tag = 'scoped memory for _seq2seq_forward.1']
    #allocation5 [shape = 'u8[245760]{0}', space=vmem, size = 0x3c000, scoped, tag = 'input window, operand 6, single buffered']
    #allocation6 [shape = 'u8[16384]{0}', space=vmem, size = 0x4000, scoped, tag = 'input window, operand 9, single buffered']
    #allocation7 [shape = 's32[1]{0}', space=sflag, size = 0x4, scoped, tag = 'scoped memory for _seq2seq_forward.1']
    %15 = vsyncpa [#allocation4], 0
    %16 = vsyncpa [#allocation3], 0
    %17 = vsyncpa [#allocation7], 0
    // Predicated region
    $region2: #{_seq2seq_forward.1} parent=1 // pred_check
      _
    $region3: #{_seq2seq_forward.1} parent=1 // pred_check_branch
      %19 = sbr.rel (0) target = $region5
    $region4: #{_seq2seq_forward.1} parent=1 // pred_region
      %s21 = ssub.s32 16, 16
      %22 = vsyncadd [#allocation4], %s21
      %s24 = sshll.u32 %s0, 4
      %s25 = int_to_ptr.vmem [resolvable:$true] %s24
      %27 = dma.vmem_to_smem %s25, 16, [#allocation2], [#allocation4]
    $region5: #{_seq2seq_forward.1} parent=1 // pred_fallthru
      _
    // Predicated region
    $region6: #{_seq2seq_forward.1} parent=1 // pred_check
      _
    $region7: #{_seq2seq_forward.1} parent=1 // pred_check_branch
      %29 = sbr.rel (0) target = $region9
    $region8: #{_seq2seq_forward.1} parent=1 // pred_region
      _
    $region9: #{_seq2seq_forward.1} parent=1 // pred_fallthru
      _
    // Predicated region
    $region10: #{_seq2seq_forward.1} parent=1 // pred_check
      _
    $region11: #{_seq2seq_forward.1} parent=1 // pred_check_branch
      %31 = sbr.rel (0) target = $region13
    $region12: #{_seq2seq_forward.1} parent=1 // pred_region
      _
    $region13: #{_seq2seq_forward.1} parent=1 // pred_fallthru
      _
    // Predicated region
    $region14: #{_seq2seq_forward.1} parent=1 // pred_check
      _
    $region15: #{_seq2seq_forward.1} parent=1 // pred_check_branch
      %33 = sbr.rel (0) target = $region17
    $region16: #{_seq2seq_forward.1} parent=1 // pred_region
      _
    $region17: #{_seq2seq_forward.1} parent=1 // pred_fallthru
      _
    // Predicated region
    $region18: #{_seq2seq_forward.1} parent=1 // pred_check
      _
    $region19: #{_seq2seq_forward.1} parent=1 // pred_check_branch
      %35 = sbr.rel (0) target = $region21
    $region20: #{_seq2seq_forward.1} parent=1 // pred_region
      _
    $region21: #{_seq2seq_forward.1} parent=1 // pred_fallthru
      _
    // Predicated region
    $region22: #{_seq2seq_forward.1} parent=1 // pred_check
      _
    $region23: #{_seq2seq_forward.1} parent=1 // pred_check_branch
      %37 = sbr.rel (0) target = $region25
    $region24: #{_seq2seq_forward.1} parent=1 // pred_region
      _
    $region25: #{_seq2seq_forward.1} parent=1 // pred_fallthru
      _
    // Predicated region
    $region26: #{_seq2seq_forward.1} parent=1 // pred_check
      _
    $region27: #{_seq2seq_forward.1} parent=1 // pred_check_branch
      %39 = sbr.rel (0) target = $region29
    $region28: #{_seq2seq_forward.1} parent=1 // pred_region
      %s41 = ssub.s32 7680, 7680
      %42 = vsyncadd [#allocation3], %s41
      %s43 = sshll.u32 [#allocation5], 4
      %s44 = int_to_ptr.vmem [resolvable:$true] %s43
      %49 = dma.hbm_to_vmem [thread:$0]  %s6, 7680, %s44, [#allocation3], 384, 384, 24
    $region29: #{_seq2seq_forward.1} parent=1 // pred_fallthru
      _
    // Predicated region
    $region30: #{_seq2seq_forward.1} parent=1 // pred_check
      _
    $region31: #{_seq2seq_forward.1} parent=1 // pred_check_branch
      %51 = sbr.rel (0) target = $region33
    $region32: #{_seq2seq_forward.1} parent=1 // pred_region
      _
    $region33: #{_seq2seq_forward.1} parent=1 // pred_fallthru
      _
    // Predicated region
    $region34: #{_seq2seq_forward.1} parent=1 // pred_check
      _
    $region35: #{_seq2seq_forward.1} parent=1 // pred_check_branch
      %53 = sbr.rel (0) target = $region37
    $region36: #{_seq2seq_forward.1} parent=1 // pred_region
      _
    $region37: #{_seq2seq_forward.1} parent=1 // pred_fallthru
      _
    // Predicated region
    $region38: #{_seq2seq_forward.1} parent=1 // pred_check
      _
    $region39: #{_seq2seq_forward.1} parent=1 // pred_check_branch
      %55 = sbr.rel (0) target = $region41
    $region40: #{_seq2seq_forward.1} parent=1 // pred_region
      %s57 = ssub.s32 512, 512
      %58 = vsyncadd [#allocation7], %s57
      %s59 = sshll.u32 [#allocation6], 4
      %s60 = int_to_ptr.vmem [resolvable:$true] %s59
      %65 = dma.hbm_to_vmem [thread:$0]  %s9, 512, %s60, [#allocation7], 128, 128, 8
    $region41: #{_seq2seq_forward.1} parent=1 // pred_fallthru
      _
    // Predicated region
    $region42: #{_seq2seq_forward.1} parent=1 // pred_check
      _
    $region43: #{_seq2seq_forward.1} parent=1 // pred_check_branch
      %67 = sbr.rel (0) target = $region45
    $region44: #{_seq2seq_forward.1} parent=1 // pred_region
      %68 = dma.done [#allocation4], 16
    $region45: #{_seq2seq_forward.1} parent=1 // pred_fallthru
      _
    // Predicated region
    $region46: #{_seq2seq_forward.1} parent=1 // pred_check
      _
    $region47: #{_seq2seq_forward.1} parent=1 // pred_check_branch
      %70 = sbr.rel (0) target = $region49
    $region48: #{_seq2seq_forward.1} parent=1 // pred_region
      %71 = dma.done [#allocation3], 7680
    $region49: #{_seq2seq_forward.1} parent=1 // pred_fallthru
      _
    // Predicated region
    $region50: #{_seq2seq_forward.1} parent=1 // pred_check
      _
    $region51: #{_seq2seq_forward.1} parent=1 // pred_check_branch
      %73 = sbr.rel (0) target = $region53
    $region52: #{_seq2seq_forward.1} parent=1 // pred_region
      %74 = dma.done [#allocation7], 512
    $region53: #{_seq2seq_forward.1} parent=1 // pred_fallthru
      _
    %75 = sfence
    %v76 = vlaneseq
    %v77 = vand.u32 %v76, 127
    %v78 = vld [vmem:[%s1] sm:$0xff]
    %v79 = vld [vmem:[%s1 + $0x8] sm:$0xff]
    %v80 = vld [vmem:[%s1 + $0x10] sm:$0xff]
    %v81 = vld [vmem:[%s1 + $0x18] sm:$0xff]
    %v82 = vld [vmem:[%s1 + $0x20] sm:$0xff]
    %v83 = vld [vmem:[%s1 + $0x28] sm:$0xff]
    %v84 = vld [vmem:[%s1 + $0x30] sm:$0xff]
    %v85 = vld [vmem:[%s1 + $0x38] sm:$0xff]
    %86 = vset.pattern.permute.xlu0 0
    %87 = vperm.xlu0 %86, %v78
    %v88 = vpop.permute.xlu0 %87
    %89 = vset.pattern.permute.xlu0 0
    %90 = vperm.xlu0 %89, %v79
    %v91 = vpop.permute.xlu0 %90
    %92 = vset.pattern.permute.xlu0 0
    %93 = vperm.xlu0 %92, %v80
    %v94 = vpop.permute.xlu0 %93
    %95 = vset.pattern.permute.xlu0 0
    %96 = vperm.xlu0 %95, %v81
    %v97 = vpop.permute.xlu0 %96
    %98 = vset.pattern.permute.xlu0 0
    %99 = vperm.xlu0 %98, %v82
    %v100 = vpop.permute.xlu0 %99
    %101 = vset.pattern.permute.xlu0 0
    %102 = vperm.xlu0 %101, %v83
    %v103 = vpop.permute.xlu0 %102
    %104 = vset.pattern.permute.xlu0 0
    %105 = vperm.xlu0 %104, %v84
    %v106 = vpop.permute.xlu0 %105
    %107 = vset.pattern.permute.xlu0 0
    %108 = vperm.xlu0 %107, %v85
    %v109 = vpop.permute.xlu0 %108
    %vm110 = vcmp.eq.s32.totalorder %v77, %v88
    %vm111 = vcmp.eq.s32.totalorder %v77, %v91
    %vm112 = vcmp.eq.s32.totalorder %v77, %v94
    %vm113 = vcmp.eq.s32.totalorder %v77, %v97
    %vm114 = vcmp.eq.s32.totalorder %v77, %v100
    %vm115 = vcmp.eq.s32.totalorder %v77, %v103
    %vm116 = vcmp.eq.s32.totalorder %v77, %v106
    %vm117 = vcmp.eq.s32.totalorder %v77, %v109
    %v118 = vsel %vm110, 1, 0
    %v119 = vsel %vm111, 1, 0
    %v120 = vsel %vm112, 1, 0
    %v121 = vsel %vm113, 1, 0
    %v122 = vsel %vm114, 1, 0
    %v123 = vsel %vm115, 1, 0
    %v124 = vsel %vm116, 1, 0
    %v125 = vsel %vm117, 1, 0
    %v126 = vcvt.s32.f32 %v118
    %v127 = vcvt.s32.f32 %v119
    %v128 = vcvt.s32.f32 %v120
    %v129 = vcvt.s32.f32 %v121
    %v130 = vcvt.s32.f32 %v122
    %v131 = vcvt.s32.f32 %v123
    %v132 = vcvt.s32.f32 %v124
    %v133 = vcvt.s32.f32 %v125
    %v134 = vld [vmem:[%s3] sm:$0xff]
    %v135 = vld [vmem:[%s3 + $0x8] sm:$0xff]
    %v136 = vld [vmem:[%s3 + $0x10] sm:$0xff]
    %v137 = vld [vmem:[%s3 + $0x18] sm:$0xff]
    %v138 = vld [vmem:[%s3 + $0x20] sm:$0xff]
    %v139 = vld [vmem:[%s3 + $0x28] sm:$0xff]
    %v140 = vld [vmem:[%s3 + $0x30] sm:$0xff]
    %v141 = vld [vmem:[%s3 + $0x38] sm:$0xff]
    %v142 = vld [vmem:[%s3 + $0x40] sm:$0xff]
    %v143 = vld [vmem:[%s3 + $0x48] sm:$0xff]
    %v144 = vld [vmem:[%s3 + $0x50] sm:$0xff]
    %v145 = vld [vmem:[%s3 + $0x58] sm:$0xff]
    %v146 = vld [vmem:[%s3 + $0x60] sm:$0xff]
    %v147 = vld [vmem:[%s3 + $0x68] sm:$0xff]
    %v148 = vld [vmem:[%s3 + $0x70] sm:$0xff]
    %v149 = vld [vmem:[%s3 + $0x78] sm:$0xff]
    %150 = vmatprep.subr.mxu0 0.0
    %151 = vmatpush1.msra.mxu0 %v134
    %152 = vmatprep.subr.mxu0 0.0
    %153 = vmatpush1.msra.mxu0 %v135
    %154 = vmatprep.subr.mxu0 0.0
    %155 = vmatpush1.msra.mxu0 %v136
    %156 = vmatprep.subr.mxu0 0.0
    %157 = vmatpush1.msra.mxu0 %v137
    %158 = vmatprep.subr.mxu0 0.0
    %159 = vmatpush1.msra.mxu0 %v138
    %160 = vmatprep.subr.mxu0 0.0
    %161 = vmatpush1.msra.mxu0 %v139
    %162 = vmatprep.subr.mxu0 0.0
    %163 = vmatpush1.msra.mxu0 %v140
    %164 = vmatprep.subr.mxu0 0.0
    %165 = vmatpush1.msra.mxu0 %v141
    %166 = vmatprep.subr.mxu0 0.0
    %167 = vmatpush1.msra.mxu0 %v142
    %168 = vmatprep.subr.mxu0 0.0
    %169 = vmatpush1.msra.mxu0 %v143
    %170 = vmatprep.subr.mxu0 0.0
    %171 = vmatpush1.msra.mxu0 %v144
    %172 = vmatprep.subr.mxu0 0.0
    %173 = vmatpush1.msra.mxu0 %v145
    %174 = vmatprep.subr.mxu0 0.0
    %175 = vmatpush1.msra.mxu0 %v146
    %176 = vmatprep.subr.mxu0 0.0
    %177 = vmatpush1.msra.mxu0 %v147
    %178 = vmatprep.subr.mxu0 0.0
    %179 = vmatpush1.msra.mxu0 %v148
    %180 = vmatprep.subr.mxu0 0.0
    %181 = vmatpush1.msra.mxu0 %v149
    %182 = vmatprep.subr.mxu0 0.0
    %183 = vmatpush1.msra.mxu0 0.0
    %184 = vmatprep.subr.mxu0 0.0
    %185 = vmatpush1.msra.mxu0 0.0
    %186 = vmatprep.subr.mxu0 0.0
    %187 = vmatpush1.msra.mxu0 0.0
    %188 = vmatprep.subr.mxu0 0.0
    %189 = vmatpush1.msra.mxu0 0.0
    %190 = vmatprep.subr.mxu0 0.0
    %191 = vmatpush1.msra.mxu0 0.0
    %192 = vmatprep.subr.mxu0 0.0
    %193 = vmatpush1.msra.mxu0 0.0
    %194 = vmatprep.subr.mxu0 0.0
    %195 = vmatpush1.msra.mxu0 0.0
    %196 = vmatprep.subr.mxu0 0.0
    %197 = vmatpush1.msra.mxu0 0.0
    %198 = vmatprep.subr.mxu0 0.0
    %199 = vmatpush1.msra.mxu0 0.0
    %200 = vmatprep.subr.mxu0 0.0
    %201 = vmatpush1.msra.mxu0 0.0
    %202 = vmatprep.subr.mxu0 0.0
    %203 = vmatpush1.msra.mxu0 0.0
    %204 = vmatprep.subr.mxu0 0.0
    %205 = vmatpush1.msra.mxu0 0.0
    %206 = vmatprep.subr.mxu0 0.0
    %207 = vmatpush1.msra.mxu0 0.0
    %208 = vmatprep.subr.mxu0 0.0
    %209 = vmatpush1.msra.mxu0 0.0
    %210 = vmatprep.subr.mxu0 0.0
    %211 = vmatpush1.msra.mxu0 0.0
    %212 = vmatprep.subr.mxu0 0.0
    %213 = vmatpush1.msra.mxu0 0.0
    %214 = vmatprep.mubr.f32.mxu0 0.0
    %215 = vmatmul.mubr.f32.gmra.mrb[0].mxu0 %v126
    %v216 = vpop.f32.mrb[0].mxu0
    %v217 = vadd.f32 0.0, %v216
    %v218 = vpop.f32.mrb[0].mxu0
    %219 = vmatprep.mubr.f32.mxu0 0.0
    %220 = vmatmul.mubr.f32.gmra.mrb[0].mxu0 %v127
    %v221 = vpop.f32.mrb[0].mxu0
    %v222 = vadd.f32 0.0, %v221
    %v223 = vpop.f32.mrb[0].mxu0
    %224 = vmatprep.mubr.f32.mxu0 0.0
    %225 = vmatmul.mubr.f32.gmra.mrb[0].mxu0 %v128
    %v226 = vpop.f32.mrb[0].mxu0
    %v227 = vadd.f32 0.0, %v226
    %v228 = vpop.f32.mrb[0].mxu0
    %229 = vmatprep.mubr.f32.mxu0 0.0
    %230 = vmatmul.mubr.f32.gmra.mrb[0].mxu0 %v129
    %v231 = vpop.f32.mrb[0].mxu0
    %v232 = vadd.f32 0.0, %v231
    %v233 = vpop.f32.mrb[0].mxu0
    %234 = vmatprep.mubr.f32.mxu0 0.0
    %235 = vmatmul.mubr.f32.gmra.mrb[0].mxu0 %v130
    %v236 = vpop.f32.mrb[0].mxu0
    %v237 = vadd.f32 0.0, %v236
    %v238 = vpop.f32.mrb[0].mxu0
    %239 = vmatprep.mubr.f32.mxu0 0.0
    %240 = vmatmul.mubr.f32.gmra.mrb[0].mxu0 %v131
    %v241 = vpop.f32.mrb[0].mxu0
    %v242 = vadd.f32 0.0, %v241
    %v243 = vpop.f32.mrb[0].mxu0
    %244 = vmatprep.mubr.f32.mxu0 0.0
    %245 = vmatmul.mubr.f32.gmra.mrb[0].mxu0 %v132
    %v246 = vpop.f32.mrb[0].mxu0
    %v247 = vadd.f32 0.0, %v246
    %v248 = vpop.f32.mrb[0].mxu0
    %249 = vmatprep.mubr.f32.mxu0 0.0
    %250 = vmatmul.mubr.f32.gmra.mrb[0].mxu0 %v133
    %v251 = vpop.f32.mrb[0].mxu0
    %v252 = vadd.f32 0.0, %v251
    %v253 = vpop.f32.mrb[0].mxu0
    %254 = vdwg.mxu0
    %v255 = vld [vmem:[%s4] sm:$0xff]
    %v256 = vld [vmem:[%s4 + $0x8] sm:$0xff]
    %v257 = vld [vmem:[%s4 + $0x10] sm:$0xff]
    %v258 = vld [vmem:[%s4 + $0x18] sm:$0xff]
    %v259 = vld [vmem:[%s5] sm:$0x1]
    %v261 = vlaneseq
    %v262 = vshrl.u32 %v261, 7
    %v263 = vsub.s32 0, %v262
    %v264 = vrot.slane %v259, %v263
    %vm266 = vcmask 261120
    %v268 = vsel %vm266, 0.0, 0
    %270 = vmatprep.subr.mxu0 0.0
    %271 = vmatpush1.msra.mxu0 %v255
    %272 = vmatprep.subr.mxu0 0.0
    %273 = vmatpush1.msra.mxu0 %v256
    %274 = vmatprep.subr.mxu0 0.0
    %275 = vmatpush1.msra.mxu0 %v257
    %276 = vmatprep.subr.mxu0 0.0
    %277 = vmatpush1.msra.mxu0 %v258
    %278 = vmatprep.subr.mxu0 0.0
    %279 = vmatpush1.msra.mxu0 0.0
    %280 = vmatprep.subr.mxu0 0.0
    %281 = vmatpush1.msra.mxu0 0.0
    %282 = vmatprep.subr.mxu0 0.0
    %283 = vmatpush1.msra.mxu0 0.0
    %284 = vmatprep.subr.mxu0 0.0
    %285 = vmatpush1.msra.mxu0 0.0
    %286 = vmatprep.subr.mxu0 0.0
    %287 = vmatpush1.msra.mxu0 0.0
    %288 = vmatprep.subr.mxu0 0.0
    %289 = vmatpush1.msra.mxu0 0.0
    %290 = vmatprep.subr.mxu0 0.0
    %291 = vmatpush1.msra.mxu0 0.0
    %292 = vmatprep.subr.mxu0 0.0
    %293 = vmatpush1.msra.mxu0 0.0
    %294 = vmatprep.subr.mxu0 0.0
    %295 = vmatpush1.msra.mxu0 0.0
    %296 = vmatprep.subr.mxu0 0.0
    %297 = vmatpush1.msra.mxu0 0.0
    %298 = vmatprep.subr.mxu0 0.0
    %299 = vmatpush1.msra.mxu0 0.0
    %300 = vmatprep.subr.mxu0 0.0
    %301 = vmatpush1.msra.mxu0 0.0
    %302 = vmatprep.subr.mxu0 0.0
    %303 = vmatpush1.msra.mxu0 0.0
    %304 = vmatprep.subr.mxu0 0.0
    %305 = vmatpush1.msra.mxu0 0.0
    %306 = vmatprep.subr.mxu0 0.0
    %307 = vmatpush1.msra.mxu0 0.0
    %308 = vmatprep.subr.mxu0 0.0
    %309 = vmatpush1.msra.mxu0 0.0
    %310 = vmatprep.subr.mxu0 0.0
    %311 = vmatpush1.msra.mxu0 0.0
    %312 = vmatprep.subr.mxu0 0.0
    %313 = vmatpush1.msra.mxu0 0.0
    %314 = vmatprep.subr.mxu0 0.0
    %315 = vmatpush1.msra.mxu0 0.0
    %316 = vmatprep.subr.mxu0 0.0
    %317 = vmatpush1.msra.mxu0 0.0
    %318 = vmatprep.subr.mxu0 0.0
    %319 = vmatpush1.msra.mxu0 0.0
    %320 = vmatprep.subr.mxu0 0.0
    %321 = vmatpush1.msra.mxu0 0.0
    %322 = vmatprep.subr.mxu0 0.0
    %323 = vmatpush1.msra.mxu0 0.0
    %324 = vmatprep.subr.mxu0 0.0
    %325 = vmatpush1.msra.mxu0 0.0
    %326 = vmatprep.subr.mxu0 0.0
    %327 = vmatpush1.msra.mxu0 0.0
    %328 = vmatprep.subr.mxu0 0.0
    %329 = vmatpush1.msra.mxu0 0.0
    %330 = vmatprep.subr.mxu0 0.0
    %331 = vmatpush1.msra.mxu0 0.0
    %332 = vmatprep.subr.mxu0 0.0
    %333 = vmatpush1.msra.mxu0 0.0
    %334 = vmatprep.mubr.f32.mxu0 0.0
    %335 = vmatmul.mubr.f32.gmra.mrb[0].mxu0 %v268
    %v336 = vpop.f32.mrb[0].mxu0
    %v337 = vadd.f32 %v264, %v336
    %v338 = vpop.f32.mrb[0].mxu0
    %339 = vdwg.mxu0
    %v340 = vadd.f32 %v217, %v337
    %v341 = vxor.u32 %v340, 2147483648
    %v342 = vmul.f32 %v341, 1.442695
    %v343 = vpow.pop %v342
    %v344 = vadd.f32 %v343, 1.0
    %v345 = vrcp.pop %v344
    %v346 = vmul.f32 1.0, %v345
    %348 = vrot.lane.b32.xlu0 %v337, 64
    %v349 = vpop.permute.xlu0 %348
    %v351 = vmul.f32 %v346, %v349
    %353 = vrot.lane.b32.xlu0 %v351, 64
    %v354 = vpop.permute.xlu0 %353
    %v356 = vadd.f32 %v217, %v354
    %v357 = vtanh.pop %v356
    %v358 = vsub.f32 1.0, %v346
    %360 = vrot.lane.b32.xlu0 %v357, 96
    %v361 = vpop.permute.xlu0 %360
    %v363 = vmul.f32 %v358, %v361
    %v364 = vmul.f32 %v346, 0.0
    %v365 = vadd.f32 %v363, %v364
    %367 = vrot.lane.b32.xlu0 %v365, 96
    %v368 = vpop.permute.xlu0 %367
    %v369 = vsel %vm266, %v368, 0
    %371 = vmatprep.subr.mxu0 0.0
    %372 = vmatpush1.msra.mxu0 %v255
    %373 = vmatprep.subr.mxu0 0.0
    %374 = vmatpush1.msra.mxu0 %v256
    %375 = vmatprep.subr.mxu0 0.0
    %376 = vmatpush1.msra.mxu0 %v257
    %377 = vmatprep.subr.mxu0 0.0
    %378 = vmatpush1.msra.mxu0 %v258
    %379 = vmatprep.subr.mxu0 0.0
    %380 = vmatpush1.msra.mxu0 0.0
    %381 = vmatprep.subr.mxu0 0.0
    %382 = vmatpush1.msra.mxu0 0.0
    %383 = vmatprep.subr.mxu0 0.0
    %384 = vmatpush1.msra.mxu0 0.0
    %385 = vmatprep.subr.mxu0 0.0
    %386 = vmatpush1.msra.mxu0 0.0
    %387 = vmatprep.subr.mxu0 0.0
    %388 = vmatpush1.msra.mxu0 0.0
    %389 = vmatprep.subr.mxu0 0.0
    %390 = vmatpush1.msra.mxu0 0.0
    %391 = vmatprep.subr.mxu0 0.0
    %392 = vmatpush1.msra.mxu0 0.0
    %393 = vmatprep.subr.mxu0 0.0
    %394 = vmatpush1.msra.mxu0 0.0
    %395 = vmatprep.subr.mxu0 0.0
    %396 = vmatpush1.msra.mxu0 0.0
    %397 = vmatprep.subr.mxu0 0.0
    %398 = vmatpush1.msra.mxu0 0.0
    %399 = vmatprep.subr.mxu0 0.0
    %400 = vmatpush1.msra.mxu0 0.0
    %401 = vmatprep.subr.mxu0 0.0
    %402 = vmatpush1.msra.mxu0 0.0
    %403 = vmatprep.subr.mxu0 0.0
    %404 = vmatpush1.msra.mxu0 0.0
    %405 = vmatprep.subr.mxu0 0.0
    %406 = vmatpush1.msra.mxu0 0.0
    %407 = vmatprep.subr.mxu0 0.0
    %408 = vmatpush1.msra.mxu0 0.0
    %409 = vmatprep.subr.mxu0 0.0
    %410 = vmatpush1.msra.mxu0 0.0
    %411 = vmatprep.subr.mxu0 0.0
    %412 = vmatpush1.msra.mxu0 0.0
    %413 = vmatprep.subr.mxu0 0.0
    %414 = vmatpush1.msra.mxu0 0.0
    %415 = vmatprep.subr.mxu0 0.0
    %416 = vmatpush1.msra.mxu0 0.0
    %417 = vmatprep.subr.mxu0 0.0
    %418 = vmatpush1.msra.mxu0 0.0
    %419 = vmatprep.subr.mxu0 0.0
    %420 = vmatpush1.msra.mxu0 0.0
    %421 = vmatprep.subr.mxu0 0.0
    %422 = vmatpush1.msra.mxu0 0.0
    %423 = vmatprep.subr.mxu0 0.0
    %424 = vmatpush1.msra.mxu0 0.0
    %425 = vmatprep.subr.mxu0 0.0
    %426 = vmatpush1.msra.mxu0 0.0
    %427 = vmatprep.subr.mxu0 0.0
    %428 = vmatpush1.msra.mxu0 0.0
    %429 = vmatprep.subr.mxu0 0.0
    %430 = vmatpush1.msra.mxu0 0.0
    %431 = vmatprep.subr.mxu0 0.0
    %432 = vmatpush1.msra.mxu0 0.0
    %433 = vmatprep.subr.mxu0 0.0
    %434 = vmatpush1.msra.mxu0 0.0
    %435 = vmatprep.mubr.f32.mxu0 0.0
    %436 = vmatmul.mubr.f32.gmra.mrb[0].mxu0 %v369
    %v437 = vpop.f32.mrb[0].mxu0
    %v438 = vadd.f32 %v264, %v437
    %v439 = vpop.f32.mrb[0].mxu0
    %440 = vdwg.mxu0
    %v441 = vadd.f32 %v222, %v438
    %v442 = vxor.u32 %v441, 2147483648
    %v443 = vmul.f32 %v442, 1.442695
    %v444 = vpow.pop %v443
    %v445 = vadd.f32 %v444, 1.0
    %v446 = vrcp.pop %v445
    %v447 = vmul.f32 1.0, %v446
    %449 = vrot.lane.b32.xlu0 %v438, 64
    %v450 = vpop.permute.xlu0 %449
    %v452 = vmul.f32 %v447, %v450
    %454 = vrot.lane.b32.xlu0 %v452, 64
    %v455 = vpop.permute.xlu0 %454
    %v457 = vadd.f32 %v222, %v455
    %v458 = vtanh.pop %v457
    %v459 = vsub.f32 1.0, %v447
    %461 = vrot.lane.b32.xlu0 %v458, 96
    %v462 = vpop.permute.xlu0 %461
    %v464 = vmul.f32 %v459, %v462
    %v465 = vmul.f32 %v447, %v365
    %v466 = vadd.f32 %v464, %v465
    %468 = vrot.lane.b32.xlu0 %v466, 96
    %v469 = vpop.permute.xlu0 %468
    %v470 = vsel %vm266, %v469, 0
    %472 = vmatprep.subr.mxu0 0.0
    %473 = vmatpush1.msra.mxu0 %v255
    %474 = vmatprep.subr.mxu0 0.0
    %475 = vmatpush1.msra.mxu0 %v256
    %476 = vmatprep.subr.mxu0 0.0
    %477 = vmatpush1.msra.mxu0 %v257
    %478 = vmatprep.subr.mxu0 0.0
    %479 = vmatpush1.msra.mxu0 %v258
    %480 = vmatprep.subr.mxu0 0.0
    %481 = vmatpush1.msra.mxu0 0.0
    %482 = vmatprep.subr.mxu0 0.0
    %483 = vmatpush1.msra.mxu0 0.0
    %484 = vmatprep.subr.mxu0 0.0
    %485 = vmatpush1.msra.mxu0 0.0
    %486 = vmatprep.subr.mxu0 0.0
    %487 = vmatpush1.msra.mxu0 0.0
    %488 = vmatprep.subr.mxu0 0.0
    %489 = vmatpush1.msra.mxu0 0.0
    %490 = vmatprep.subr.mxu0 0.0
    %491 = vmatpush1.msra.mxu0 0.0
    %492 = vmatprep.subr.mxu0 0.0
    %493 = vmatpush1.msra.mxu0 0.0
    %494 = vmatprep.subr.mxu0 0.0
    %495 = vmatpush1.msra.mxu0 0.0
    %496 = vmatprep.subr.mxu0 0.0
    %497 = vmatpush1.msra.mxu0 0.0
    %498 = vmatprep.subr.mxu0 0.0
    %499 = vmatpush1.msra.mxu0 0.0
    %500 = vmatprep.subr.mxu0 0.0
    %501 = vmatpush1.msra.mxu0 0.0
    %502 = vmatprep.subr.mxu0 0.0
    %503 = vmatpush1.msra.mxu0 0.0
    %504 = vmatprep.subr.mxu0 0.0
    %505 = vmatpush1.msra.mxu0 0.0
    %506 = vmatprep.subr.mxu0 0.0
    %507 = vmatpush1.msra.mxu0 0.0
    %508 = vmatprep.subr.mxu0 0.0
    %509 = vmatpush1.msra.mxu0 0.0
    %510 = vmatprep.subr.mxu0 0.0
    %511 = vmatpush1.msra.mxu0 0.0
    %512 = vmatprep.subr.mxu0 0.0
    %513 = vmatpush1.msra.mxu0 0.0
    %514 = vmatprep.subr.mxu0 0.0
    %515 = vmatpush1.msra.mxu0 0.0
    %516 = vmatprep.subr.mxu0 0.0
    %517 = vmatpush1.msra.mxu0 0.0
    %518 = vmatprep.subr.mxu0 0.0
    %519 = vmatpush1.msra.mxu0 0.0
    %520 = vmatprep.subr.mxu0 0.0
    %521 = vmatpush1.msra.mxu0 0.0
    %522 = vmatprep.subr.mxu0 0.0
    %523 = vmatpush1.msra.mxu0 0.0
    %524 = vmatprep.subr.mxu0 0.0
    %525 = vmatpush1.msra.mxu0 0.0
    %526 = vmatprep.subr.mxu0 0.0
    %527 = vmatpush1.msra.mxu0 0.0
    %528 = vmatprep.subr.mxu0 0.0
    %529 = vmatpush1.msra.mxu0 0.0
    %530 = vmatprep.subr.mxu0 0.0
    %531 = vmatpush1.msra.mxu0 0.0
    %532 = vmatprep.subr.mxu0 0.0
    %533 = vmatpush1.msra.mxu0 0.0
    %534 = vmatprep.subr.mxu0 0.0
    %535 = vmatpush1.msra.mxu0 0.0
    %536 = vmatprep.mubr.f32.mxu0 0.0
    %537 = vmatmul.mubr.f32.gmra.mrb[0].mxu0 %v470
    %v538 = vpop.f32.mrb[0].mxu0
    %v539 = vadd.f32 %v264, %v538
    %v540 = vpop.f32.mrb[0].mxu0
    %541 = vdwg.mxu0
    %v542 = vadd.f32 %v227, %v539
    %v543 = vxor.u32 %v542, 2147483648
    %v544 = vmul.f32 %v543, 1.442695
    %v545 = vpow.pop %v544
    %v546 = vadd.f32 %v545, 1.0
    %v547 = vrcp.pop %v546
    %v548 = vmul.f32 1.0, %v547
    %550 = vrot.lane.b32.xlu0 %v539, 64
    %v551 = vpop.permute.xlu0 %550
    %v553 = vmul.f32 %v548, %v551
    %555 = vrot.lane.b32.xlu0 %v553, 64
    %v556 = vpop.permute.xlu0 %555
    %v558 = vadd.f32 %v227, %v556
    %v559 = vtanh.pop %v558
    %v560 = vsub.f32 1.0, %v548
    %562 = vrot.lane.b32.xlu0 %v559, 96
    %v563 = vpop.permute.xlu0 %562
    %v565 = vmul.f32 %v560, %v563
    %v566 = vmul.f32 %v548, %v466
    %v567 = vadd.f32 %v565, %v566
    %569 = vrot.lane.b32.xlu0 %v567, 96
    %v570 = vpop.permute.xlu0 %569
    %v571 = vsel %vm266, %v570, 0
    %573 = vmatprep.subr.mxu0 0.0
    %574 = vmatpush1.msra.mxu0 %v255
    %575 = vmatprep.subr.mxu0 0.0
    %576 = vmatpush1.msra.mxu0 %v256
    %577 = vmatprep.subr.mxu0 0.0
    %578 = vmatpush1.msra.mxu0 %v257
    %579 = vmatprep.subr.mxu0 0.0
    %580 = vmatpush1.msra.mxu0 %v258
    %581 = vmatprep.subr.mxu0 0.0
    %582 = vmatpush1.msra.mxu0 0.0
    %583 = vmatprep.subr.mxu0 0.0
    %584 = vmatpush1.msra.mxu0 0.0
    %585 = vmatprep.subr.mxu0 0.0
    %586 = vmatpush1.msra.mxu0 0.0
    %587 = vmatprep.subr.mxu0 0.0
    %588 = vmatpush1.msra.mxu0 0.0
    %589 = vmatprep.subr.mxu0 0.0
    %590 = vmatpush1.msra.mxu0 0.0
    %591 = vmatprep.subr.mxu0 0.0
    %592 = vmatpush1.msra.mxu0 0.0
    %593 = vmatprep.subr.mxu0 0.0
    %594 = vmatpush1.msra.mxu0 0.0
    %595 = vmatprep.subr.mxu0 0.0
    %596 = vmatpush1.msra.mxu0 0.0
    %597 = vmatprep.subr.mxu0 0.0
    %598 = vmatpush1.msra.mxu0 0.0
    %599 = vmatprep.subr.mxu0 0.0
    %600 = vmatpush1.msra.mxu0 0.0
    %601 = vmatprep.subr.mxu0 0.0
    %602 = vmatpush1.msra.mxu0 0.0
    %603 = vmatprep.subr.mxu0 0.0
    %604 = vmatpush1.msra.mxu0 0.0
    %605 = vmatprep.subr.mxu0 0.0
    %606 = vmatpush1.msra.mxu0 0.0
    %607 = vmatprep.subr.mxu0 0.0
    %608 = vmatpush1.msra.mxu0 0.0
    %609 = vmatprep.subr.mxu0 0.0
    %610 = vmatpush1.msra.mxu0 0.0
    %611 = vmatprep.subr.mxu0 0.0
    %612 = vmatpush1.msra.mxu0 0.0
    %613 = vmatprep.subr.mxu0 0.0
    %614 = vmatpush1.msra.mxu0 0.0
    %615 = vmatprep.subr.mxu0 0.0
    %616 = vmatpush1.msra.mxu0 0.0
    %617 = vmatprep.subr.mxu0 0.0
    %618 = vmatpush1.msra.mxu0 0.0
    %619 = vmatprep.subr.mxu0 0.0
    %620 = vmatpush1.msra.mxu0 0.0
    %621 = vmatprep.subr.mxu0 0.0
    %622 = vmatpush1.msra.mxu0 0.0
    %623 = vmatprep.subr.mxu0 0.0
    %624 = vmatpush1.msra.mxu0 0.0
    %625 = vmatprep.subr.mxu0 0.0
    %626 = vmatpush1.msra.mxu0 0.0
    %627 = vmatprep.subr.mxu0 0.0
    %628 = vmatpush1.msra.mxu0 0.0
    %629 = vmatprep.subr.mxu0 0.0
    %630 = vmatpush1.msra.mxu0 0.0
    %631 = vmatprep.subr.mxu0 0.0
    %632 = vmatpush1.msra.mxu0 0.0
    %633 = vmatprep.subr.mxu0 0.0
    %634 = vmatpush1.msra.mxu0 0.0
    %635 = vmatprep.subr.mxu0 0.0
    %636 = vmatpush1.msra.mxu0 0.0
    %637 = vmatprep.mubr.f32.mxu0 0.0
    %638 = vmatmul.mubr.f32.gmra.mrb[0].mxu0 %v571
    %v639 = vpop.f32.mrb[0].mxu0
    %v640 = vadd.f32 %v264, %v639
    %v641 = vpop.f32.mrb[0].mxu0
    %642 = vdwg.mxu0
    %v643 = vadd.f32 %v232, %v640
    %v644 = vxor.u32 %v643, 2147483648
    %v645 = vmul.f32 %v644, 1.442695
    %v646 = vpow.pop %v645
    %v647 = vadd.f32 %v646, 1.0
    %v648 = vrcp.pop %v647
    %v649 = vmul.f32 1.0, %v648
    %651 = vrot.lane.b32.xlu0 %v640, 64
    %v652 = vpop.permute.xlu0 %651
    %v654 = vmul.f32 %v649, %v652
    %656 = vrot.lane.b32.xlu0 %v654, 64
    %v657 = vpop.permute.xlu0 %656
    %v659 = vadd.f32 %v232, %v657
    %v660 = vtanh.pop %v659
    %v661 = vsub.f32 1.0, %v649
    %663 = vrot.lane.b32.xlu0 %v660, 96
    %v664 = vpop.permute.xlu0 %663
    %v666 = vmul.f32 %v661, %v664
    %v667 = vmul.f32 %v649, %v567
    %v668 = vadd.f32 %v666, %v667
    %670 = vrot.lane.b32.xlu0 %v668, 96
    %v671 = vpop.permute.xlu0 %670
    %v672 = vsel %vm266, %v671, 0
    %674 = vmatprep.subr.mxu0 0.0
    %675 = vmatpush1.msra.mxu0 %v255
    %676 = vmatprep.subr.mxu0 0.0
    %677 = vmatpush1.msra.mxu0 %v256
    %678 = vmatprep.subr.mxu0 0.0
    %679 = vmatpush1.msra.mxu0 %v257
    %680 = vmatprep.subr.mxu0 0.0
    %681 = vmatpush1.msra.mxu0 %v258
    %682 = vmatprep.subr.mxu0 0.0
    %683 = vmatpush1.msra.mxu0 0.0
    %684 = vmatprep.subr.mxu0 0.0
    %685 = vmatpush1.msra.mxu0 0.0
    %686 = vmatprep.subr.mxu0 0.0
    %687 = vmatpush1.msra.mxu0 0.0
    %688 = vmatprep.subr.mxu0 0.0
    %689 = vmatpush1.msra.mxu0 0.0
    %690 = vmatprep.subr.mxu0 0.0
    %691 = vmatpush1.msra.mxu0 0.0
    %692 = vmatprep.subr.mxu0 0.0
    %693 = vmatpush1.msra.mxu0 0.0
    %694 = vmatprep.subr.mxu0 0.0
    %695 = vmatpush1.msra.mxu0 0.0
    %696 = vmatprep.subr.mxu0 0.0
    %697 = vmatpush1.msra.mxu0 0.0
    %698 = vmatprep.subr.mxu0 0.0
    %699 = vmatpush1.msra.mxu0 0.0
    %700 = vmatprep.subr.mxu0 0.0
    %701 = vmatpush1.msra.mxu0 0.0
    %702 = vmatprep.subr.mxu0 0.0
    %703 = vmatpush1.msra.mxu0 0.0
    %704 = vmatprep.subr.mxu0 0.0
    %705 = vmatpush1.msra.mxu0 0.0
    %706 = vmatprep.subr.mxu0 0.0
    %707 = vmatpush1.msra.mxu0 0.0
    %708 = vmatprep.subr.mxu0 0.0
    %709 = vmatpush1.msra.mxu0 0.0
    %710 = vmatprep.subr.mxu0 0.0
    %711 = vmatpush1.msra.mxu0 0.0
    %712 = vmatprep.subr.mxu0 0.0
    %713 = vmatpush1.msra.mxu0 0.0
    %714 = vmatprep.subr.mxu0 0.0
    %715 = vmatpush1.msra.mxu0 0.0
    %716 = vmatprep.subr.mxu0 0.0
    %717 = vmatpush1.msra.mxu0 0.0
    %718 = vmatprep.subr.mxu0 0.0
    %719 = vmatpush1.msra.mxu0 0.0
    %720 = vmatprep.subr.mxu0 0.0
    %721 = vmatpush1.msra.mxu0 0.0
    %722 = vmatprep.subr.mxu0 0.0
    %723 = vmatpush1.msra.mxu0 0.0
    %724 = vmatprep.subr.mxu0 0.0
    %725 = vmatpush1.msra.mxu0 0.0
    %726 = vmatprep.subr.mxu0 0.0
    %727 = vmatpush1.msra.mxu0 0.0
    %728 = vmatprep.subr.mxu0 0.0
    %729 = vmatpush1.msra.mxu0 0.0
    %730 = vmatprep.subr.mxu0 0.0
    %731 = vmatpush1.msra.mxu0 0.0
    %732 = vmatprep.subr.mxu0 0.0
    %733 = vmatpush1.msra.mxu0 0.0
    %734 = vmatprep.subr.mxu0 0.0
    %735 = vmatpush1.msra.mxu0 0.0
    %736 = vmatprep.subr.mxu0 0.0
    %737 = vmatpush1.msra.mxu0 0.0
    %738 = vmatprep.mubr.f32.mxu0 0.0
    %739 = vmatmul.mubr.f32.gmra.mrb[0].mxu0 %v672
    %v740 = vpop.f32.mrb[0].mxu0
    %v741 = vadd.f32 %v264, %v740
    %v742 = vpop.f32.mrb[0].mxu0
    %743 = vdwg.mxu0
    %v744 = vadd.f32 %v237, %v741
    %v745 = vxor.u32 %v744, 2147483648
    %v746 = vmul.f32 %v745, 1.442695
    %v747 = vpow.pop %v746
    %v748 = vadd.f32 %v747, 1.0
    %v749 = vrcp.pop %v748
    %v750 = vmul.f32 1.0, %v749
    %752 = vrot.lane.b32.xlu0 %v741, 64
    %v753 = vpop.permute.xlu0 %752
    %v755 = vmul.f32 %v750, %v753
    %757 = vrot.lane.b32.xlu0 %v755, 64
    %v758 = vpop.permute.xlu0 %757
    %v760 = vadd.f32 %v237, %v758
    %v761 = vtanh.pop %v760
    %v762 = vsub.f32 1.0, %v750
    %764 = vrot.lane.b32.xlu0 %v761, 96
    %v765 = vpop.permute.xlu0 %764
    %v767 = vmul.f32 %v762, %v765
    %v768 = vmul.f32 %v750, %v668
    %v769 = vadd.f32 %v767, %v768
    %771 = vrot.lane.b32.xlu0 %v769, 96
    %v772 = vpop.permute.xlu0 %771
    %v773 = vsel %vm266, %v772, 0
    %775 = vmatprep.subr.mxu0 0.0
    %776 = vmatpush1.msra.mxu0 %v255
    %777 = vmatprep.subr.mxu0 0.0
    %778 = vmatpush1.msra.mxu0 %v256
    %779 = vmatprep.subr.mxu0 0.0
    %780 = vmatpush1.msra.mxu0 %v257
    %781 = vmatprep.subr.mxu0 0.0
    %782 = vmatpush1.msra.mxu0 %v258
    %783 = vmatprep.subr.mxu0 0.0
    %784 = vmatpush1.msra.mxu0 0.0
    %785 = vmatprep.subr.mxu0 0.0
    %786 = vmatpush1.msra.mxu0 0.0
    %787 = vmatprep.subr.mxu0 0.0
    %788 = vmatpush1.msra.mxu0 0.0
    %789 = vmatprep.subr.mxu0 0.0
    %790 = vmatpush1.msra.mxu0 0.0
    %791 = vmatprep.subr.mxu0 0.0
    %792 = vmatpush1.msra.mxu0 0.0
    %793 = vmatprep.subr.mxu0 0.0
    %794 = vmatpush1.msra.mxu0 0.0
    %795 = vmatprep.subr.mxu0 0.0
    %796 = vmatpush1.msra.mxu0 0.0
    %797 = vmatprep.subr.mxu0 0.0
    %798 = vmatpush1.msra.mxu0 0.0
    %799 = vmatprep.subr.mxu0 0.0
    %800 = vmatpush1.msra.mxu0 0.0
    %801 = vmatprep.subr.mxu0 0.0
    %802 = vmatpush1.msra.mxu0 0.0
    %803 = vmatprep.subr.mxu0 0.0
    %804 = vmatpush1.msra.mxu0 0.0
    %805 = vmatprep.subr.mxu0 0.0
    %806 = vmatpush1.msra.mxu0 0.0
    %807 = vmatprep.subr.mxu0 0.0
    %808 = vmatpush1.msra.mxu0 0.0
    %809 = vmatprep.subr.mxu0 0.0
    %810 = vmatpush1.msra.mxu0 0.0
    %811 = vmatprep.subr.mxu0 0.0
    %812 = vmatpush1.msra.mxu0 0.0
    %813 = vmatprep.subr.mxu0 0.0
    %814 = vmatpush1.msra.mxu0 0.0
    %815 = vmatprep.subr.mxu0 0.0
    %816 = vmatpush1.msra.mxu0 0.0
    %817 = vmatprep.subr.mxu0 0.0
    %818 = vmatpush1.msra.mxu0 0.0
    %819 = vmatprep.subr.mxu0 0.0
    %820 = vmatpush1.msra.mxu0 0.0
    %821 = vmatprep.subr.mxu0 0.0
    %822 = vmatpush1.msra.mxu0 0.0
    %823 = vmatprep.subr.mxu0 0.0
    %824 = vmatpush1.msra.mxu0 0.0
    %825 = vmatprep.subr.mxu0 0.0
    %826 = vmatpush1.msra.mxu0 0.0
    %827 = vmatprep.subr.mxu0 0.0
    %828 = vmatpush1.msra.mxu0 0.0
    %829 = vmatprep.subr.mxu0 0.0
    %830 = vmatpush1.msra.mxu0 0.0
    %831 = vmatprep.subr.mxu0 0.0
    %832 = vmatpush1.msra.mxu0 0.0
    %833 = vmatprep.subr.mxu0 0.0
    %834 = vmatpush1.msra.mxu0 0.0
    %835 = vmatprep.subr.mxu0 0.0
    %836 = vmatpush1.msra.mxu0 0.0
    %837 = vmatprep.subr.mxu0 0.0
    %838 = vmatpush1.msra.mxu0 0.0
    %839 = vmatprep.mubr.f32.mxu0 0.0
    %840 = vmatmul.mubr.f32.gmra.mrb[0].mxu0 %v773
    %v841 = vpop.f32.mrb[0].mxu0
    %v842 = vadd.f32 %v264, %v841
    %v843 = vpop.f32.mrb[0].mxu0
    %844 = vdwg.mxu0
    %v845 = vadd.f32 %v242, %v842
    %v846 = vxor.u32 %v845, 2147483648
    %v847 = vmul.f32 %v846, 1.442695
    %v848 = vpow.pop %v847
    %v849 = vadd.f32 %v848, 1.0
    %v850 = vrcp.pop %v849
    %v851 = vmul.f32 1.0, %v850
    %853 = vrot.lane.b32.xlu0 %v842, 64
    %v854 = vpop.permute.xlu0 %853
    %v856 = vmul.f32 %v851, %v854
    %858 = vrot.lane.b32.xlu0 %v856, 64
    %v859 = vpop.permute.xlu0 %858
    %v861 = vadd.f32 %v242, %v859
    %v862 = vtanh.pop %v861
    %v863 = vsub.f32 1.0, %v851
    %865 = vrot.lane.b32.xlu0 %v862, 96
    %v866 = vpop.permute.xlu0 %865
    %v868 = vmul.f32 %v863, %v866
    %v869 = vmul.f32 %v851, %v769
    %v870 = vadd.f32 %v868, %v869
    %872 = vrot.lane.b32.xlu0 %v870, 96
    %v873 = vpop.permute.xlu0 %872
    %v874 = vsel %vm266, %v873, 0
    %876 = vmatprep.subr.mxu0 0.0
    %877 = vmatpush1.msra.mxu0 %v255
    %878 = vmatprep.subr.mxu0 0.0
    %879 = vmatpush1.msra.mxu0 %v256
    %880 = vmatprep.subr.mxu0 0.0
    %881 = vmatpush1.msra.mxu0 %v257
    %882 = vmatprep.subr.mxu0 0.0
    %883 = vmatpush1.msra.mxu0 %v258
    %884 = vmatprep.subr.mxu0 0.0
    %885 = vmatpush1.msra.mxu0 0.0
    %886 = vmatprep.subr.mxu0 0.0
    %887 = vmatpush1.msra.mxu0 0.0
    %888 = vmatprep.subr.mxu0 0.0
    %889 = vmatpush1.msra.mxu0 0.0
    %890 = vmatprep.subr.mxu0 0.0
    %891 = vmatpush1.msra.mxu0 0.0
    %892 = vmatprep.subr.mxu0 0.0
    %893 = vmatpush1.msra.mxu0 0.0
    %894 = vmatprep.subr.mxu0 0.0
    %895 = vmatpush1.msra.mxu0 0.0
    %896 = vmatprep.subr.mxu0 0.0
    %897 = vmatpush1.msra.mxu0 0.0
    %898 = vmatprep.subr.mxu0 0.0
    %899 = vmatpush1.msra.mxu0 0.0
    %900 = vmatprep.subr.mxu0 0.0
    %901 = vmatpush1.msra.mxu0 0.0
    %902 = vmatprep.subr.mxu0 0.0
    %903 = vmatpush1.msra.mxu0 0.0
    %904 = vmatprep.subr.mxu0 0.0
    %905 = vmatpush1.msra.mxu0 0.0
    %906 = vmatprep.subr.mxu0 0.0
    %907 = vmatpush1.msra.mxu0 0.0
    %908 = vmatprep.subr.mxu0 0.0
    %909 = vmatpush1.msra.mxu0 0.0
    %910 = vmatprep.subr.mxu0 0.0
    %911 = vmatpush1.msra.mxu0 0.0
    %912 = vmatprep.subr.mxu0 0.0
    %913 = vmatpush1.msra.mxu0 0.0
    %914 = vmatprep.subr.mxu0 0.0
    %915 = vmatpush1.msra.mxu0 0.0
    %916 = vmatprep.subr.mxu0 0.0
    %917 = vmatpush1.msra.mxu0 0.0
    %918 = vmatprep.subr.mxu0 0.0
    %919 = vmatpush1.msra.mxu0 0.0
    %920 = vmatprep.subr.mxu0 0.0
    %921 = vmatpush1.msra.mxu0 0.0
    %922 = vmatprep.subr.mxu0 0.0
    %923 = vmatpush1.msra.mxu0 0.0
    %924 = vmatprep.subr.mxu0 0.0
    %925 = vmatpush1.msra.mxu0 0.0
    %926 = vmatprep.subr.mxu0 0.0
    %927 = vmatpush1.msra.mxu0 0.0
    %928 = vmatprep.subr.mxu0 0.0
    %929 = vmatpush1.msra.mxu0 0.0
    %930 = vmatprep.subr.mxu0 0.0
    %931 = vmatpush1.msra.mxu0 0.0
    %932 = vmatprep.subr.mxu0 0.0
    %933 = vmatpush1.msra.mxu0 0.0
    %934 = vmatprep.subr.mxu0 0.0
    %935 = vmatpush1.msra.mxu0 0.0
    %936 = vmatprep.subr.mxu0 0.0
    %937 = vmatpush1.msra.mxu0 0.0
    %938 = vmatprep.subr.mxu0 0.0
    %939 = vmatpush1.msra.mxu0 0.0
    %940 = vmatprep.mubr.f32.mxu0 0.0
    %941 = vmatmul.mubr.f32.gmra.mrb[0].mxu0 %v874
    %v942 = vpop.f32.mrb[0].mxu0
    %v943 = vadd.f32 %v264, %v942
    %v944 = vpop.f32.mrb[0].mxu0
    %945 = vdwg.mxu0
    %v946 = vadd.f32 %v247, %v943
    %v947 = vxor.u32 %v946, 2147483648
    %v948 = vmul.f32 %v947, 1.442695
    %v949 = vpow.pop %v948
    %v950 = vadd.f32 %v949, 1.0
    %v951 = vrcp.pop %v950
    %v952 = vmul.f32 1.0, %v951
    %954 = vrot.lane.b32.xlu0 %v943, 64
    %v955 = vpop.permute.xlu0 %954
    %v957 = vmul.f32 %v952, %v955
    %959 = vrot.lane.b32.xlu0 %v957, 64
    %v960 = vpop.permute.xlu0 %959
    %v962 = vadd.f32 %v247, %v960
    %v963 = vtanh.pop %v962
    %v964 = vsub.f32 1.0, %v952
    %966 = vrot.lane.b32.xlu0 %v963, 96
    %v967 = vpop.permute.xlu0 %966
    %v969 = vmul.f32 %v964, %v967
    %v970 = vmul.f32 %v952, %v870
    %v971 = vadd.f32 %v969, %v970
    %973 = vrot.lane.b32.xlu0 %v971, 96
    %v974 = vpop.permute.xlu0 %973
    %v975 = vsel %vm266, %v974, 0
    %977 = vmatprep.subr.mxu0 0.0
    %978 = vmatpush1.msra.mxu0 %v255
    %979 = vmatprep.subr.mxu0 0.0
    %980 = vmatpush1.msra.mxu0 %v256
    %981 = vmatprep.subr.mxu0 0.0
    %982 = vmatpush1.msra.mxu0 %v257
    %983 = vmatprep.subr.mxu0 0.0
    %984 = vmatpush1.msra.mxu0 %v258
    %985 = vmatprep.subr.mxu0 0.0
    %986 = vmatpush1.msra.mxu0 0.0
    %987 = vmatprep.subr.mxu0 0.0
    %988 = vmatpush1.msra.mxu0 0.0
    %989 = vmatprep.subr.mxu0 0.0
    %990 = vmatpush1.msra.mxu0 0.0
    %991 = vmatprep.subr.mxu0 0.0
    %992 = vmatpush1.msra.mxu0 0.0
    %993 = vmatprep.subr.mxu0 0.0
    %994 = vmatpush1.msra.mxu0 0.0
    %995 = vmatprep.subr.mxu0 0.0
    %996 = vmatpush1.msra.mxu0 0.0
    %997 = vmatprep.subr.mxu0 0.0
    %998 = vmatpush1.msra.mxu0 0.0
    %999 = vmatprep.subr.mxu0 0.0
    %1000 = vmatpush1.msra.mxu0 0.0
    %1001 = vmatprep.subr.mxu0 0.0
    %1002 = vmatpush1.msra.mxu0 0.0
    %1003 = vmatprep.subr.mxu0 0.0
    %1004 = vmatpush1.msra.mxu0 0.0
    %1005 = vmatprep.subr.mxu0 0.0
    %1006 = vmatpush1.msra.mxu0 0.0
    %1007 = vmatprep.subr.mxu0 0.0
    %1008 = vmatpush1.msra.mxu0 0.0
    %1009 = vmatprep.subr.mxu0 0.0
    %1010 = vmatpush1.msra.mxu0 0.0
    %1011 = vmatprep.subr.mxu0 0.0
    %1012 = vmatpush1.msra.mxu0 0.0
    %1013 = vmatprep.subr.mxu0 0.0
    %1014 = vmatpush1.msra.mxu0 0.0
    %1015 = vmatprep.subr.mxu0 0.0
    %1016 = vmatpush1.msra.mxu0 0.0
    %1017 = vmatprep.subr.mxu0 0.0
    %1018 = vmatpush1.msra.mxu0 0.0
    %1019 = vmatprep.subr.mxu0 0.0
    %1020 = vmatpush1.msra.mxu0 0.0
    %1021 = vmatprep.subr.mxu0 0.0
    %1022 = vmatpush1.msra.mxu0 0.0
    %1023 = vmatprep.subr.mxu0 0.0
    %1024 = vmatpush1.msra.mxu0 0.0
    %1025 = vmatprep.subr.mxu0 0.0
    %1026 = vmatpush1.msra.mxu0 0.0
    %1027 = vmatprep.subr.mxu0 0.0
    %1028 = vmatpush1.msra.mxu0 0.0
    %1029 = vmatprep.subr.mxu0 0.0
    %1030 = vmatpush1.msra.mxu0 0.0
    %1031 = vmatprep.subr.mxu0 0.0
    %1032 = vmatpush1.msra.mxu0 0.0
    %1033 = vmatprep.subr.mxu0 0.0
    %1034 = vmatpush1.msra.mxu0 0.0
    %1035 = vmatprep.subr.mxu0 0.0
    %1036 = vmatpush1.msra.mxu0 0.0
    %1037 = vmatprep.subr.mxu0 0.0
    %1038 = vmatpush1.msra.mxu0 0.0
    %1039 = vmatprep.subr.mxu0 0.0
    %1040 = vmatpush1.msra.mxu0 0.0
    %1041 = vmatprep.mubr.f32.mxu0 0.0
    %1042 = vmatmul.mubr.f32.gmra.mrb[0].mxu0 %v975
    %v1043 = vpop.f32.mrb[0].mxu0
    %v1044 = vadd.f32 %v264, %v1043
    %v1045 = vpop.f32.mrb[0].mxu0
    %1046 = vdwg.mxu0
    %v1047 = vadd.f32 %v252, %v1044
    %v1048 = vxor.u32 %v1047, 2147483648
    %v1049 = vmul.f32 %v1048, 1.442695
    %v1050 = vpow.pop %v1049
    %v1051 = vadd.f32 %v1050, 1.0
    %v1052 = vrcp.pop %v1051
    %v1053 = vmul.f32 1.0, %v1052
    %1055 = vrot.lane.b32.xlu0 %v1044, 64
    %v1056 = vpop.permute.xlu0 %1055
    %v1058 = vmul.f32 %v1053, %v1056
    %1060 = vrot.lane.b32.xlu0 %v1058, 64
    %v1061 = vpop.permute.xlu0 %1060
    %v1063 = vadd.f32 %v252, %v1061
    %v1064 = vtanh.pop %v1063
    %v1065 = vsub.f32 1.0, %v1053
    %1067 = vrot.lane.b32.xlu0 %v1064, 96
    %v1068 = vpop.permute.xlu0 %1067
    %v1070 = vmul.f32 %v1065, %v1068
    %v1071 = vmul.f32 %v1053, %v971
    %v1072 = vadd.f32 %v1070, %v1071
    %v1073 = vld [vmem:[#allocation5] sm:$0xff]
    %v1074 = vld [vmem:[#allocation5 + $0x8] sm:$0xff]
    %v1075 = vld [vmem:[#allocation5 + $0x10] sm:$0xff]
    %v1076 = vld [vmem:[#allocation5 + $0x18] sm:$0xff]
    %v1077 = vld [vmem:[#allocation5 + $0x20] sm:$0xff]
    %v1078 = vld [vmem:[#allocation5 + $0x28] sm:$0xff]
    %v1079 = vld [vmem:[#allocation5 + $0x30] sm:$0xff]
    %v1080 = vld [vmem:[#allocation5 + $0x38] sm:$0xff]
    %v1081 = vld [vmem:[#allocation5 + $0x40] sm:$0xff]
    %v1082 = vld [vmem:[#allocation5 + $0x48] sm:$0xff]
    %v1083 = vld [vmem:[#allocation5 + $0x50] sm:$0xff]
    %v1084 = vld [vmem:[#allocation5 + $0x58] sm:$0xff]
    %v1085 = vld [vmem:[#allocation5 + $0x60] sm:$0xff]
    %v1086 = vld [vmem:[#allocation5 + $0x68] sm:$0xff]
    %v1087 = vld [vmem:[#allocation5 + $0x70] sm:$0xff]
    %v1088 = vld [vmem:[#allocation5 + $0x78] sm:$0xff]
    %v1089 = vld [vmem:[#allocation5 + $0x80] sm:$0xff]
    %v1090 = vld [vmem:[#allocation5 + $0x88] sm:$0xff]
    %v1091 = vld [vmem:[#allocation5 + $0x90] sm:$0xff]
    %v1092 = vld [vmem:[#allocation5 + $0x98] sm:$0xff]
    %v1093 = vld [vmem:[#allocation5 + $0xa0] sm:$0xff]
    %v1094 = vld [vmem:[#allocation5 + $0xa8] sm:$0xff]
    %v1095 = vld [vmem:[#allocation5 + $0xb0] sm:$0xff]
    %v1096 = vld [vmem:[#allocation5 + $0xb8] sm:$0xff]
    %v1097 = vld [vmem:[#allocation5 + $0xc0] sm:$0xff]
    %v1098 = vld [vmem:[#allocation5 + $0xc8] sm:$0xff]
    %v1099 = vld [vmem:[#allocation5 + $0xd0] sm:$0xff]
    %v1100 = vld [vmem:[#allocation5 + $0xd8] sm:$0xff]
    %v1101 = vld [vmem:[#allocation5 + $0xe0] sm:$0xff]
    %v1102 = vld [vmem:[#allocation5 + $0xe8] sm:$0xff]
    %v1103 = vld [vmem:[#allocation5 + $0xf0] sm:$0xff]
    %v1104 = vld [vmem:[#allocation5 + $0xf8] sm:$0xff]
    %v1105 = vld [vmem:[#allocation5 + $0x100] sm:$0xff]
    %v1106 = vld [vmem:[#allocation5 + $0x108] sm:$0xff]
    %v1107 = vld [vmem:[#allocation5 + $0x110] sm:$0xff]
    %v1108 = vld [vmem:[#allocation5 + $0x118] sm:$0xff]
    %v1109 = vld [vmem:[#allocation5 + $0x120] sm:$0xff]
    %v1110 = vld [vmem:[#allocation5 + $0x128] sm:$0xff]
    %v1111 = vld [vmem:[#allocation5 + $0x130] sm:$0xff]
    %v1112 = vld [vmem:[#allocation5 + $0x138] sm:$0xff]
    %v1113 = vld [vmem:[#allocation5 + $0x140] sm:$0xff]
    %v1114 = vld [vmem:[#allocation5 + $0x148] sm:$0xff]
    %v1115 = vld [vmem:[#allocation5 + $0x150] sm:$0xff]
    %v1116 = vld [vmem:[#allocation5 + $0x158] sm:$0xff]
    %v1117 = vld [vmem:[#allocation5 + $0x160] sm:$0xff]
    %v1118 = vld [vmem:[#allocation5 + $0x168] sm:$0xff]
    %v1119 = vld [vmem:[#allocation5 + $0x170] sm:$0xff]
    %v1120 = vld [vmem:[#allocation5 + $0x178] sm:$0xff]
    %v1121 = vld [vmem:[#allocation5 + $0x180] sm:$0xff]
    %v1122 = vld [vmem:[#allocation5 + $0x188] sm:$0xff]
    %v1123 = vld [vmem:[#allocation5 + $0x190] sm:$0xff]
    %v1124 = vld [vmem:[#allocation5 + $0x198] sm:$0xff]
    %v1125 = vld [vmem:[#allocation5 + $0x1a0] sm:$0xff]
    %v1126 = vld [vmem:[#allocation5 + $0x1a8] sm:$0xff]
    %v1127 = vld [vmem:[#allocation5 + $0x1b0] sm:$0xff]
    %v1128 = vld [vmem:[#allocation5 + $0x1b8] sm:$0xff]
    %v1129 = vld [vmem:[#allocation5 + $0x1c0] sm:$0xff]
    %v1130 = vld [vmem:[#allocation5 + $0x1c8] sm:$0xff]
    %v1131 = vld [vmem:[#allocation5 + $0x1d0] sm:$0xff]
    %v1132 = vld [vmem:[#allocation5 + $0x1d8] sm:$0xff]
    %v1133 = vld [vmem:[#allocation6] sm:$0xff]
    %v1134 = vld [vmem:[#allocation6 + $0x8] sm:$0xff]
    %v1135 = vld [vmem:[#allocation6 + $0x10] sm:$0xff]
    %v1136 = vld [vmem:[#allocation6 + $0x18] sm:$0xff]
    %v1137 = vld [vmem:[%s7] sm:$0xff]
    %v1138 = vld [vmem:[%s7 + $0x8] sm:$0xff]
    %v1139 = vld [vmem:[%s7 + $0x10] sm:$0xff]
    %v1140 = vld [vmem:[%s7 + $0x18] sm:$0xff]
    %1142 = vrot.lane.b32.xlu0 %v1072, 96
    %v1143 = vpop.permute.xlu0 %1142
    %v1144 = vsel %vm266, %v1143, 0
    %1146 = vmatprep.subr.mxu0 0.0
    %1147 = vmatpush1.msra.mxu0 %v1137
    %1148 = vmatprep.subr.mxu0 0.0
    %1149 = vmatpush1.msra.mxu0 %v1138
    %1150 = vmatprep.subr.mxu0 0.0
    %1151 = vmatpush1.msra.mxu0 %v1139
    %1152 = vmatprep.subr.mxu0 0.0
    %1153 = vmatpush1.msra.mxu0 %v1140
    %1154 = vmatprep.subr.mxu0 0.0
    %1155 = vmatpush1.msra.mxu0 0.0
    %1156 = vmatprep.subr.mxu0 0.0
    %1157 = vmatpush1.msra.mxu0 0.0
    %1158 = vmatprep.subr.mxu0 0.0
    %1159 = vmatpush1.msra.mxu0 0.0
    %1160 = vmatprep.subr.mxu0 0.0
    %1161 = vmatpush1.msra.mxu0 0.0
    %1162 = vmatprep.subr.mxu0 0.0
    %1163 = vmatpush1.msra.mxu0 0.0
    %1164 = vmatprep.subr.mxu0 0.0
    %1165 = vmatpush1.msra.mxu0 0.0
    %1166 = vmatprep.subr.mxu0 0.0
    %1167 = vmatpush1.msra.mxu0 0.0
    %1168 = vmatprep.subr.mxu0 0.0
    %1169 = vmatpush1.msra.mxu0 0.0
    %1170 = vmatprep.subr.mxu0 0.0
    %1171 = vmatpush1.msra.mxu0 0.0
    %1172 = vmatprep.subr.mxu0 0.0
    %1173 = vmatpush1.msra.mxu0 0.0
    %1174 = vmatprep.subr.mxu0 0.0
    %1175 = vmatpush1.msra.mxu0 0.0
    %1176 = vmatprep.subr.mxu0 0.0
    %1177 = vmatpush1.msra.mxu0 0.0
    %1178 = vmatprep.subr.mxu0 0.0
    %1179 = vmatpush1.msra.mxu0 0.0
    %1180 = vmatprep.subr.mxu0 0.0
    %1181 = vmatpush1.msra.mxu0 0.0
    %1182 = vmatprep.subr.mxu0 0.0
    %1183 = vmatpush1.msra.mxu0 0.0
    %1184 = vmatprep.subr.mxu0 0.0
    %1185 = vmatpush1.msra.mxu0 0.0
    %1186 = vmatprep.subr.mxu0 0.0
    %1187 = vmatpush1.msra.mxu0 0.0
    %1188 = vmatprep.subr.mxu0 0.0
    %1189 = vmatpush1.msra.mxu0 0.0
    %1190 = vmatprep.subr.mxu0 0.0
    %1191 = vmatpush1.msra.mxu0 0.0
    %1192 = vmatprep.subr.mxu0 0.0
    %1193 = vmatpush1.msra.mxu0 0.0
    %1194 = vmatprep.subr.mxu0 0.0
    %1195 = vmatpush1.msra.mxu0 0.0
    %1196 = vmatprep.subr.mxu0 0.0
    %1197 = vmatpush1.msra.mxu0 0.0
    %1198 = vmatprep.subr.mxu0 0.0
    %1199 = vmatpush1.msra.mxu0 0.0
    %1200 = vmatprep.subr.mxu0 0.0
    %1201 = vmatpush1.msra.mxu0 0.0
    %1202 = vmatprep.subr.mxu0 0.0
    %1203 = vmatpush1.msra.mxu0 0.0
    %1204 = vmatprep.subr.mxu0 0.0
    %1205 = vmatpush1.msra.mxu0 0.0
    %1206 = vmatprep.subr.mxu0 0.0
    %1207 = vmatpush1.msra.mxu0 0.0
    %1208 = vmatprep.subr.mxu0 0.0
    %1209 = vmatpush1.msra.mxu0 0.0
    %1210 = vmatprep.mubr.f32.mxu0 0.0
    %1211 = vmatmul.mubr.f32.gmra.mrb[0].mxu0 %v1144
    %v1212 = vpop.f32.mrb[0].mxu0
    %v1213 = vadd.f32 0.0, %v1212
    %v1214 = vpop.f32.mrb[0].mxu0
    %1215 = vdwg.mxu0
    %v1216 = vld [vmem:[%s8] sm:$0xff]
    %v1217 = vld [vmem:[%s8 + $0x8] sm:$0xff]
    %v1218 = vld [vmem:[%s8 + $0x10] sm:$0xff]
    %v1219 = vld [vmem:[%s8 + $0x18] sm:$0xff]
    %1220 = vmatprep.subr.mxu0 0.0
    %1221 = vmatpush1.msra.mxu0 %v1216
    %1222 = vmatprep.subr.mxu0 0.0
    %1223 = vmatpush1.msra.mxu0 %v1217
    %1224 = vmatprep.subr.mxu0 0.0
    %1225 = vmatpush1.msra.mxu0 %v1218
    %1226 = vmatprep.subr.mxu0 0.0
    %1227 = vmatpush1.msra.mxu0 %v1219
    %1228 = vmatprep.subr.mxu0 0.0
    %1229 = vmatpush1.msra.mxu0 0.0
    %1230 = vmatprep.subr.mxu0 0.0
    %1231 = vmatpush1.msra.mxu0 0.0
    %1232 = vmatprep.subr.mxu0 0.0
    %1233 = vmatpush1.msra.mxu0 0.0
    %1234 = vmatprep.subr.mxu0 0.0
    %1235 = vmatpush1.msra.mxu0 0.0
    %1236 = vmatprep.subr.mxu0 0.0
    %1237 = vmatpush1.msra.mxu0 0.0
    %1238 = vmatprep.subr.mxu0 0.0
    %1239 = vmatpush1.msra.mxu0 0.0
    %1240 = vmatprep.subr.mxu0 0.0
    %1241 = vmatpush1.msra.mxu0 0.0
    %1242 = vmatprep.subr.mxu0 0.0
    %1243 = vmatpush1.msra.mxu0 0.0
    %1244 = vmatprep.subr.mxu0 0.0
    %1245 = vmatpush1.msra.mxu0 0.0
    %1246 = vmatprep.subr.mxu0 0.0
    %1247 = vmatpush1.msra.mxu0 0.0
    %1248 = vmatprep.subr.mxu0 0.0
    %1249 = vmatpush1.msra.mxu0 0.0
    %1250 = vmatprep.subr.mxu0 0.0
    %1251 = vmatpush1.msra.mxu0 0.0
    %1252 = vmatprep.subr.mxu0 0.0
    %1253 = vmatpush1.msra.mxu0 0.0
    %1254 = vmatprep.subr.mxu0 0.0
    %1255 = vmatpush1.msra.mxu0 0.0
    %1256 = vmatprep.subr.mxu0 0.0
    %1257 = vmatpush1.msra.mxu0 0.0
    %1258 = vmatprep.subr.mxu0 0.0
    %1259 = vmatpush1.msra.mxu0 0.0
    %1260 = vmatprep.subr.mxu0 0.0
    %1261 = vmatpush1.msra.mxu0 0.0
    %1262 = vmatprep.subr.mxu0 0.0
    %1263 = vmatpush1.msra.mxu0 0.0
    %1264 = vmatprep.subr.mxu0 0.0
    %1265 = vmatpush1.msra.mxu0 0.0
    %1266 = vmatprep.subr.mxu0 0.0
    %1267 = vmatpush1.msra.mxu0 0.0
    %1268 = vmatprep.subr.mxu0 0.0
    %1269 = vmatpush1.msra.mxu0 0.0
    %1270 = vmatprep.subr.mxu0 0.0
    %1271 = vmatpush1.msra.mxu0 0.0
    %1272 = vmatprep.subr.mxu0 0.0
    %1273 = vmatpush1.msra.mxu0 0.0
    %1274 = vmatprep.subr.mxu0 0.0
    %1275 = vmatpush1.msra.mxu0 0.0
    %1276 = vmatprep.subr.mxu0 0.0
    %1277 = vmatpush1.msra.mxu0 0.0
    %1278 = vmatprep.subr.mxu0 0.0
    %1279 = vmatpush1.msra.mxu0 0.0
    %1280 = vmatprep.subr.mxu0 0.0
    %1281 = vmatpush1.msra.mxu0 0.0
    %1282 = vmatprep.subr.mxu0 0.0
    %1283 = vmatpush1.msra.mxu0 0.0
    %1284 = vmatprep.mubr.f32.mxu0 0.0
    %1285 = vmatmul.mubr.f32.gmra.mrb[0].mxu0 %v1144
    %v1286 = vpop.f32.mrb[0].mxu0
    %v1287 = vadd.f32 0.0, %v1286
    %v1288 = vpop.f32.mrb[0].mxu0
    %1289 = vdwg.mxu0
    %v1290 = vld [vmem:[%s2] sm:$0xff]
    %1291 = vset.pattern.permute.xlu0 0
    %1292 = vperm.xlu0 %1291, %v1290
    %v1293 = vpop.permute.xlu0 %1292
    %vm1294 = vcmp.eq.s32.totalorder %v77, %v1293
    %v1295 = vsel %vm1294, 1, 0
    %v1296 = vcvt.s32.f32 %v1295
    %1297 = vmatprep.subr.mxu0 %v1074
    %1298 = vmatpush1.msra.mxu0 %v1073
    %1299 = vmatprep.subr.mxu0 %v1077
    %1300 = vmatpush1.msra.mxu0 %v1076
    %1301 = vmatprep.subr.mxu0 %v1080
    %1302 = vmatpush1.msra.mxu0 %v1079
    %1303 = vmatprep.subr.mxu0 %v1083
    %1304 = vmatpush1.msra.mxu0 %v1082
    %1305 = vmatprep.subr.mxu0 %v1086
    %1306 = vmatpush1.msra.mxu0 %v1085
    %1307 = vmatprep.subr.mxu0 %v1089
    %1308 = vmatpush1.msra.mxu0 %v1088
    %1309 = vmatprep.subr.mxu0 %v1092
    %1310 = vmatpush1.msra.mxu0 %v1091
    %1311 = vmatprep.subr.mxu0 %v1095
    %1312 = vmatpush1.msra.mxu0 %v1094
    %1313 = vmatprep.subr.mxu0 %v1098
    %1314 = vmatpush1.msra.mxu0 %v1097
    %1315 = vmatprep.subr.mxu0 %v1101
    %1316 = vmatpush1.msra.mxu0 %v1100
    %1317 = vmatprep.subr.mxu0 %v1104
    %1318 = vmatpush1.msra.mxu0 %v1103
    %1319 = vmatprep.subr.mxu0 %v1107
    %1320 = vmatpush1.msra.mxu0 %v1106
    %1321 = vmatprep.subr.mxu0 %v1110
    %1322 = vmatpush1.msra.mxu0 %v1109
    %1323 = vmatprep.subr.mxu0 %v1113
    %1324 = vmatpush1.msra.mxu0 %v1112
    %1325 = vmatprep.subr.mxu0 %v1116
    %1326 = vmatpush1.msra.mxu0 %v1115
    %1327 = vmatprep.subr.mxu0 %v1119
    %1328 = vmatpush1.msra.mxu0 %v1118
    %1329 = vmatprep.subr.mxu0 %v1122
    %1330 = vmatpush1.msra.mxu0 %v1121
    %1331 = vmatprep.subr.mxu0 %v1125
    %1332 = vmatpush1.msra.mxu0 %v1124
    %1333 = vmatprep.subr.mxu0 %v1128
    %1334 = vmatpush1.msra.mxu0 %v1127
    %1335 = vmatprep.subr.mxu0 %v1131
    %1336 = vmatpush1.msra.mxu0 %v1130
    %1337 = vmatprep.subr.mxu0 0.0
    %1338 = vmatpush1.msra.mxu0 0.0
    %1339 = vmatprep.subr.mxu0 0.0
    %1340 = vmatpush1.msra.mxu0 0.0
    %1341 = vmatprep.subr.mxu0 0.0
    %1342 = vmatpush1.msra.mxu0 0.0
    %1343 = vmatprep.subr.mxu0 0.0
    %1344 = vmatpush1.msra.mxu0 0.0
    %1345 = vmatprep.subr.mxu0 0.0
    %1346 = vmatpush1.msra.mxu0 0.0
    %1347 = vmatprep.subr.mxu0 0.0
    %1348 = vmatpush1.msra.mxu0 0.0
    %1349 = vmatprep.subr.mxu0 0.0
    %1350 = vmatpush1.msra.mxu0 0.0
    %1351 = vmatprep.subr.mxu0 0.0
    %1352 = vmatpush1.msra.mxu0 0.0
    %1353 = vmatprep.subr.mxu0 0.0
    %1354 = vmatpush1.msra.mxu0 0.0
    %1355 = vmatprep.subr.mxu0 0.0
    %1356 = vmatpush1.msra.mxu0 0.0
    %1357 = vmatprep.subr.mxu0 0.0
    %1358 = vmatpush1.msra.mxu0 0.0
    %1359 = vmatprep.subr.mxu0 0.0
    %1360 = vmatpush1.msra.mxu0 0.0
    %1361 = vmatprep.mubr.f32.mxu0 %v1144
    %1362 = vmatmul.mubr.f32.gmra.mrb[0].mxu0 %v1296
    %v1363 = vpop.f32.mrb[0].mxu0
    %v1364 = vadd.f32 0.0, %v1363
    %v1365 = vpop.f32.mrb[0].mxu0
    %v1366 = vadd.f32 0.0, %v1365
    %1367 = vdwg.mxu0
    %1368 = vmatprep.subr.mxu0 0.0
    %1369 = vmatpush1.msra.mxu0 %v1075
    %1370 = vmatprep.subr.mxu0 0.0
    %1371 = vmatpush1.msra.mxu0 %v1078
    %1372 = vmatprep.subr.mxu0 0.0
    %1373 = vmatpush1.msra.mxu0 %v1081
    %1374 = vmatprep.subr.mxu0 0.0
    %1375 = vmatpush1.msra.mxu0 %v1084
    %1376 = vmatprep.subr.mxu0 0.0
    %1377 = vmatpush1.msra.mxu0 %v1087
    %1378 = vmatprep.subr.mxu0 0.0
    %1379 = vmatpush1.msra.mxu0 %v1090
    %1380 = vmatprep.subr.mxu0 0.0
    %1381 = vmatpush1.msra.mxu0 %v1093
    %1382 = vmatprep.subr.mxu0 0.0
    %1383 = vmatpush1.msra.mxu0 %v1096
    %1384 = vmatprep.subr.mxu0 0.0
    %1385 = vmatpush1.msra.mxu0 %v1099
    %1386 = vmatprep.subr.mxu0 0.0
    %1387 = vmatpush1.msra.mxu0 %v1102
    %1388 = vmatprep.subr.mxu0 0.0
    %1389 = vmatpush1.msra.mxu0 %v1105
    %1390 = vmatprep.subr.mxu0 0.0
    %1391 = vmatpush1.msra.mxu0 %v1108
    %1392 = vmatprep.subr.mxu0 0.0
    %1393 = vmatpush1.msra.mxu0 %v1111
    %1394 = vmatprep.subr.mxu0 0.0
    %1395 = vmatpush1.msra.mxu0 %v1114
    %1396 = vmatprep.subr.mxu0 0.0
    %1397 = vmatpush1.msra.mxu0 %v1117
    %1398 = vmatprep.subr.mxu0 0.0
    %1399 = vmatpush1.msra.mxu0 %v1120
    %1400 = vmatprep.subr.mxu0 0.0
    %1401 = vmatpush1.msra.mxu0 %v1123
    %1402 = vmatprep.subr.mxu0 0.0
    %1403 = vmatpush1.msra.mxu0 %v1126
    %1404 = vmatprep.subr.mxu0 0.0
    %1405 = vmatpush1.msra.mxu0 %v1129
    %1406 = vmatprep.subr.mxu0 0.0
    %1407 = vmatpush1.msra.mxu0 %v1132
    %1408 = vmatprep.subr.mxu0 0.0
    %1409 = vmatpush1.msra.mxu0 0.0
    %1410 = vmatprep.subr.mxu0 0.0
    %1411 = vmatpush1.msra.mxu0 0.0
    %1412 = vmatprep.subr.mxu0 0.0
    %1413 = vmatpush1.msra.mxu0 0.0
    %1414 = vmatprep.subr.mxu0 0.0
    %1415 = vmatpush1.msra.mxu0 0.0
    %1416 = vmatprep.subr.mxu0 0.0
    %1417 = vmatpush1.msra.mxu0 0.0
    %1418 = vmatprep.subr.mxu0 0.0
    %1419 = vmatpush1.msra.mxu0 0.0
    %1420 = vmatprep.subr.mxu0 0.0
    %1421 = vmatpush1.msra.mxu0 0.0
    %1422 = vmatprep.subr.mxu0 0.0
    %1423 = vmatpush1.msra.mxu0 0.0
    %1424 = vmatprep.subr.mxu0 0.0
    %1425 = vmatpush1.msra.mxu0 0.0
    %1426 = vmatprep.subr.mxu0 0.0
    %1427 = vmatpush1.msra.mxu0 0.0
    %1428 = vmatprep.subr.mxu0 0.0
    %1429 = vmatpush1.msra.mxu0 0.0
    %1430 = vmatprep.subr.mxu0 0.0
    %1431 = vmatpush1.msra.mxu0 0.0
    %1432 = vmatprep.mubr.f32.mxu0 %v1144
    %1433 = vmatmul.mubr.f32.gmra.mrb[0].mxu0 %v1296
    %v1434 = vpop.f32.mrb[0].mxu0
    %v1435 = vadd.f32 0.0, %v1434
    %v1436 = vpop.f32.mrb[0].mxu0
    %1437 = vdwg.mxu0
    %v1438 = vadd.f32 %v1364, %v1213
    %v1439 = vadd.f32 %v1438, %v1366
    %v1440 = vxor.u32 %v1439, 2147483648
    %v1441 = vmul.f32 %v1440, 1.442695
    %v1442 = vpow.pop %v1441
    %v1443 = vadd.f32 %v1442, 1.0
    %v1444 = vrcp.pop %v1443
    %v1445 = vmul.f32 1.0, %v1444
    %1447 = vrot.lane.b32.xlu0 %v1366, 64
    %v1448 = vpop.permute.xlu0 %1447
    %v1450 = vmul.f32 %v1445, %v1448
    %1452 = vrot.lane.b32.xlu0 %v1450, 64
    %v1453 = vpop.permute.xlu0 %1452
    %v1455 = vadd.f32 %v1438, %v1453
    %v1456 = vtanh.pop %v1455
    %v1457 = vsub.f32 1.0, %v1445
    %1459 = vrot.lane.b32.xlu0 %v1456, 96
    %v1460 = vpop.permute.xlu0 %1459
    %v1462 = vmul.f32 %v1457, %v1460
    %v1463 = vmul.f32 %v1445, %v1072
    %v1464 = vadd.f32 %v1462, %v1463
    %1466 = vrot.lane.b32.xlu0 %v1464, 96
    %v1467 = vpop.permute.xlu0 %1466
    %v1468 = vsel %vm266, %v1467, 0
    %1470 = vmatprep.subr.mxu0 0.0
    %1471 = vmatpush1.msra.mxu0 %v1133
    %1472 = vmatprep.subr.mxu0 0.0
    %1473 = vmatpush1.msra.mxu0 %v1134
    %1474 = vmatprep.subr.mxu0 0.0
    %1475 = vmatpush1.msra.mxu0 %v1135
    %1476 = vmatprep.subr.mxu0 0.0
    %1477 = vmatpush1.msra.mxu0 %v1136
    %1478 = vmatprep.subr.mxu0 0.0
    %1479 = vmatpush1.msra.mxu0 0.0
    %1480 = vmatprep.subr.mxu0 0.0
    %1481 = vmatpush1.msra.mxu0 0.0
    %1482 = vmatprep.subr.mxu0 0.0
    %1483 = vmatpush1.msra.mxu0 0.0
    %1484 = vmatprep.subr.mxu0 0.0
    %1485 = vmatpush1.msra.mxu0 0.0
    %1486 = vmatprep.subr.mxu0 0.0
    %1487 = vmatpush1.msra.mxu0 0.0
    %1488 = vmatprep.subr.mxu0 0.0
    %1489 = vmatpush1.msra.mxu0 0.0
    %1490 = vmatprep.subr.mxu0 0.0
    %1491 = vmatpush1.msra.mxu0 0.0
    %1492 = vmatprep.subr.mxu0 0.0
    %1493 = vmatpush1.msra.mxu0 0.0
    %1494 = vmatprep.subr.mxu0 0.0
    %1495 = vmatpush1.msra.mxu0 0.0
    %1496 = vmatprep.subr.mxu0 0.0
    %1497 = vmatpush1.msra.mxu0 0.0
    %1498 = vmatprep.subr.mxu0 0.0
    %1499 = vmatpush1.msra.mxu0 0.0
    %1500 = vmatprep.subr.mxu0 0.0
    %1501 = vmatpush1.msra.mxu0 0.0
    %1502 = vmatprep.subr.mxu0 0.0
    %1503 = vmatpush1.msra.mxu0 0.0
    %1504 = vmatprep.subr.mxu0 0.0
    %1505 = vmatpush1.msra.mxu0 0.0
    %1506 = vmatprep.subr.mxu0 0.0
    %1507 = vmatpush1.msra.mxu0 0.0
    %1508 = vmatprep.subr.mxu0 0.0
    %1509 = vmatpush1.msra.mxu0 0.0
    %1510 = vmatprep.subr.mxu0 0.0
    %1511 = vmatpush1.msra.mxu0 0.0
    %1512 = vmatprep.subr.mxu0 0.0
    %1513 = vmatpush1.msra.mxu0 0.0
    %1514 = vmatprep.subr.mxu0 0.0
    %1515 = vmatpush1.msra.mxu0 0.0
    %1516 = vmatprep.subr.mxu0 0.0
    %1517 = vmatpush1.msra.mxu0 0.0
    %1518 = vmatprep.subr.mxu0 0.0
    %1519 = vmatpush1.msra.mxu0 0.0
    %1520 = vmatprep.subr.mxu0 0.0
    %1521 = vmatpush1.msra.mxu0 0.0
    %1522 = vmatprep.subr.mxu0 0.0
    %1523 = vmatpush1.msra.mxu0 0.0
    %1524 = vmatprep.subr.mxu0 0.0
    %1525 = vmatpush1.msra.mxu0 0.0
    %1526 = vmatprep.subr.mxu0 0.0
    %1527 = vmatpush1.msra.mxu0 0.0
    %1528 = vmatprep.subr.mxu0 0.0
    %1529 = vmatpush1.msra.mxu0 0.0
    %1530 = vmatprep.subr.mxu0 0.0
    %1531 = vmatpush1.msra.mxu0 0.0
    %1532 = vmatprep.subr.mxu0 0.0
    %1533 = vmatpush1.msra.mxu0 0.0
    %1534 = vmatprep.mubr.f32.mxu0 0.0
    %1535 = vmatmul.mubr.f32.gmra.mrb[0].mxu0 %v1468
    %v1536 = vpop.f32.mrb[0].mxu0
    %v1537 = vadd.f32 %v1435, %v1536
    %v1538 = vpop.f32.mrb[0].mxu0
    %1539 = vdwg.mxu0
    %v1540 = vadd.f32 %v1537, %v1287
    %vm1541 = vcmp.lt.s32.totalorder %v77, 16
    %v1542 = vsel %vm1541, %v1540, -inf
    %1543 = vmax.xlane.f32.xlu0 %v1542
    %v1544 = vpop.xlane.xlu0 %1543
    %vm1545 = vcmp.ge.f32.partialorder %v1542, %v1544
    %v1546 = vsel %vm1545, %v77, 128
    %v1547 = vand.u32 %v1546, 65535
    %v1548 = vshra.s32 %v1546, 16
    %v1549 = vcvt.s32.f32 %v1547
    %v1550 = vcvt.s32.f32 %v1548
    %1551 = vmin.xlane.f32.xlu0 %v1550
    %v1552 = vpop.xlane.xlu0 %1551
    %vm1553 = vcmp.eq.f32.partialorder %v1550, %v1552
    %v1554 = vsel %vm1553, %v1549, inf
    %1555 = vmin.xlane.f32.xlu0 %v1554
    %v1556 = vpop.xlane.xlu0 %1555
    %v1557 = vcvt.f32.s32 %v1556
    %v1558 = vcvt.f32.s32 %v1552
    %v1559 = vshll.u32 %v1558, 16
    %v1560 = vadd.s32 %v1559, %v1557
    %vm1561 = vcmp.eq.s32.totalorder %v77, %v1560
    %v1562 = vsel %vm1561, 1, 0
    %v1563 = vcvt.s32.f32 %v1562
    %s1564 = scalar_lea.vmem %s2, 8
    %v1565 = vld [vmem:[%s1564] sm:$0xff]
    %1566 = vset.pattern.permute.xlu0 0
    %1567 = vperm.xlu0 %1566, %v1565
    %v1568 = vpop.permute.xlu0 %1567
    %vm1569 = vcmp.eq.s32.totalorder %v77, %v1568
    %v1570 = vsel %vm1569, 1, 0
    %v1571 = vcvt.s32.f32 %v1570
    %s1572 = sld [smem:[#allocation2 + $0x1]]
    %p1573 = scmp.gt.s32.totalorder %s1572, 0
    %s1574 = scalar_select %p1573, 1, 0
    %v1575 = vstv %s1574
    %vm1576 = vcmp.eq.s32.totalorder %v1575, 1
    %v1577 = vsel %vm1576, %v1571, %v1563
    %1578 = vmatprep.subr.mxu0 %v1074
    %1579 = vmatpush1.msra.mxu0 %v1073
    %1580 = vmatprep.subr.mxu0 %v1077
    %1581 = vmatpush1.msra.mxu0 %v1076
    %1582 = vmatprep.subr.mxu0 %v1080
    %1583 = vmatpush1.msra.mxu0 %v1079
    %1584 = vmatprep.subr.mxu0 %v1083
    %1585 = vmatpush1.msra.mxu0 %v1082
    %1586 = vmatprep.subr.mxu0 %v1086
    %1587 = vmatpush1.msra.mxu0 %v1085
    %1588 = vmatprep.subr.mxu0 %v1089
    %1589 = vmatpush1.msra.mxu0 %v1088
    %1590 = vmatprep.subr.mxu0 %v1092
    %1591 = vmatpush1.msra.mxu0 %v1091
    %1592 = vmatprep.subr.mxu0 %v1095
    %1593 = vmatpush1.msra.mxu0 %v1094
    %1594 = vmatprep.subr.mxu0 %v1098
    %1595 = vmatpush1.msra.mxu0 %v1097
    %1596 = vmatprep.subr.mxu0 %v1101
    %1597 = vmatpush1.msra.mxu0 %v1100
    %1598 = vmatprep.subr.mxu0 %v1104
    %1599 = vmatpush1.msra.mxu0 %v1103
    %1600 = vmatprep.subr.mxu0 %v1107
    %1601 = vmatpush1.msra.mxu0 %v1106
    %1602 = vmatprep.subr.mxu0 %v1110
    %1603 = vmatpush1.msra.mxu0 %v1109
    %1604 = vmatprep.subr.mxu0 %v1113
    %1605 = vmatpush1.msra.mxu0 %v1112
    %1606 = vmatprep.subr.mxu0 %v1116
    %1607 = vmatpush1.msra.mxu0 %v1115
    %1608 = vmatprep.subr.mxu0 %v1119
    %1609 = vmatpush1.msra.mxu0 %v1118
    %1610 = vmatprep.subr.mxu0 %v1122
    %1611 = vmatpush1.msra.mxu0 %v1121
    %1612 = vmatprep.subr.mxu0 %v1125
    %1613 = vmatpush1.msra.mxu0 %v1124
    %1614 = vmatprep.subr.mxu0 %v1128
    %1615 = vmatpush1.msra.mxu0 %v1127
    %1616 = vmatprep.subr.mxu0 %v1131
    %1617 = vmatpush1.msra.mxu0 %v1130
    %1618 = vmatprep.subr.mxu0 0.0
    %1619 = vmatpush1.msra.mxu0 0.0
    %1620 = vmatprep.subr.mxu0 0.0
    %1621 = vmatpush1.msra.mxu0 0.0
    %1622 = vmatprep.subr.mxu0 0.0
    %1623 = vmatpush1.msra.mxu0 0.0
    %1624 = vmatprep.subr.mxu0 0.0
    %1625 = vmatpush1.msra.mxu0 0.0
    %1626 = vmatprep.subr.mxu0 0.0
    %1627 = vmatpush1.msra.mxu0 0.0
    %1628 = vmatprep.subr.mxu0 0.0
    %1629 = vmatpush1.msra.mxu0 0.0
    %1630 = vmatprep.subr.mxu0 0.0
    %1631 = vmatpush1.msra.mxu0 0.0
    %1632 = vmatprep.subr.mxu0 0.0
    %1633 = vmatpush1.msra.mxu0 0.0
    %1634 = vmatprep.subr.mxu0 0.0
    %1635 = vmatpush1.msra.mxu0 0.0
    %1636 = vmatprep.subr.mxu0 0.0
    %1637 = vmatpush1.msra.mxu0 0.0
    %1638 = vmatprep.subr.mxu0 0.0
    %1639 = vmatpush1.msra.mxu0 0.0
    %1640 = vmatprep.subr.mxu0 0.0
    %1641 = vmatpush1.msra.mxu0 0.0
    %1642 = vmatprep.mubr.f32.mxu0 %v1468
    %1643 = vmatmul.mubr.f32.gmra.mrb[0].mxu0 %v1577
    %v1644 = vpop.f32.mrb[0].mxu0
    %v1645 = vadd.f32 0.0, %v1644
    %v1646 = vpop.f32.mrb[0].mxu0
    %v1647 = vadd.f32 0.0, %v1646
    %1648 = vdwg.mxu0
    %1649 = vmatprep.subr.mxu0 0.0
    %1650 = vmatpush1.msra.mxu0 %v1075
    %1651 = vmatprep.subr.mxu0 0.0
    %1652 = vmatpush1.msra.mxu0 %v1078
    %1653 = vmatprep.subr.mxu0 0.0
    %1654 = vmatpush1.msra.mxu0 %v1081
    %1655 = vmatprep.subr.mxu0 0.0
    %1656 = vmatpush1.msra.mxu0 %v1084
    %1657 = vmatprep.subr.mxu0 0.0
    %1658 = vmatpush1.msra.mxu0 %v1087
    %1659 = vmatprep.subr.mxu0 0.0
    %1660 = vmatpush1.msra.mxu0 %v1090
    %1661 = vmatprep.subr.mxu0 0.0
    %1662 = vmatpush1.msra.mxu0 %v1093
    %1663 = vmatprep.subr.mxu0 0.0
    %1664 = vmatpush1.msra.mxu0 %v1096
    %1665 = vmatprep.subr.mxu0 0.0
    %1666 = vmatpush1.msra.mxu0 %v1099
    %1667 = vmatprep.subr.mxu0 0.0
    %1668 = vmatpush1.msra.mxu0 %v1102
    %1669 = vmatprep.subr.mxu0 0.0
    %1670 = vmatpush1.msra.mxu0 %v1105
    %1671 = vmatprep.subr.mxu0 0.0
    %1672 = vmatpush1.msra.mxu0 %v1108
    %1673 = vmatprep.subr.mxu0 0.0
    %1674 = vmatpush1.msra.mxu0 %v1111
    %1675 = vmatprep.subr.mxu0 0.0
    %1676 = vmatpush1.msra.mxu0 %v1114
    %1677 = vmatprep.subr.mxu0 0.0
    %1678 = vmatpush1.msra.mxu0 %v1117
    %1679 = vmatprep.subr.mxu0 0.0
    %1680 = vmatpush1.msra.mxu0 %v1120
    %1681 = vmatprep.subr.mxu0 0.0
    %1682 = vmatpush1.msra.mxu0 %v1123
    %1683 = vmatprep.subr.mxu0 0.0
    %1684 = vmatpush1.msra.mxu0 %v1126
    %1685 = vmatprep.subr.mxu0 0.0
    %1686 = vmatpush1.msra.mxu0 %v1129
    %1687 = vmatprep.subr.mxu0 0.0
    %1688 = vmatpush1.msra.mxu0 %v1132
    %1689 = vmatprep.subr.mxu0 0.0
    %1690 = vmatpush1.msra.mxu0 0.0
    %1691 = vmatprep.subr.mxu0 0.0
    %1692 = vmatpush1.msra.mxu0 0.0
    %1693 = vmatprep.subr.mxu0 0.0
    %1694 = vmatpush1.msra.mxu0 0.0
    %1695 = vmatprep.subr.mxu0 0.0
    %1696 = vmatpush1.msra.mxu0 0.0
    %1697 = vmatprep.subr.mxu0 0.0
    %1698 = vmatpush1.msra.mxu0 0.0
    %1699 = vmatprep.subr.mxu0 0.0
    %1700 = vmatpush1.msra.mxu0 0.0
    %1701 = vmatprep.subr.mxu0 0.0
    %1702 = vmatpush1.msra.mxu0 0.0
    %1703 = vmatprep.subr.mxu0 0.0
    %1704 = vmatpush1.msra.mxu0 0.0
    %1705 = vmatprep.subr.mxu0 0.0
    %1706 = vmatpush1.msra.mxu0 0.0
    %1707 = vmatprep.subr.mxu0 0.0
    %1708 = vmatpush1.msra.mxu0 0.0
    %1709 = vmatprep.subr.mxu0 0.0
    %1710 = vmatpush1.msra.mxu0 0.0
    %1711 = vmatprep.subr.mxu0 0.0
    %1712 = vmatpush1.msra.mxu0 0.0
    %1713 = vmatprep.mubr.f32.mxu0 %v1468
    %1714 = vmatmul.mubr.f32.gmra.mrb[0].mxu0 %v1577
    %v1715 = vpop.f32.mrb[0].mxu0
    %v1716 = vadd.f32 0.0, %v1715
    %v1717 = vpop.f32.mrb[0].mxu0
    %1718 = vdwg.mxu0
    %v1719 = vadd.f32 %v1645, %v1213
    %v1720 = vadd.f32 %v1719, %v1647
    %v1721 = vxor.u32 %v1720, 2147483648
    %v1722 = vmul.f32 %v1721, 1.442695
    %v1723 = vpow.pop %v1722
    %v1724 = vadd.f32 %v1723, 1.0
    %v1725 = vrcp.pop %v1724
    %v1726 = vmul.f32 1.0, %v1725
    %1728 = vrot.lane.b32.xlu0 %v1647, 64
    %v1729 = vpop.permute.xlu0 %1728
    %v1731 = vmul.f32 %v1726, %v1729
    %1733 = vrot.lane.b32.xlu0 %v1731, 64
    %v1734 = vpop.permute.xlu0 %1733
    %v1736 = vadd.f32 %v1719, %v1734
    %v1737 = vtanh.pop %v1736
    %v1738 = vsub.f32 1.0, %v1726
    %1740 = vrot.lane.b32.xlu0 %v1737, 96
    %v1741 = vpop.permute.xlu0 %1740
    %v1743 = vmul.f32 %v1738, %v1741
    %v1744 = vmul.f32 %v1726, %v1464
    %v1745 = vadd.f32 %v1743, %v1744
    %1747 = vrot.lane.b32.xlu0 %v1745, 96
    %v1748 = vpop.permute.xlu0 %1747
    %v1749 = vsel %vm266, %v1748, 0
    %1751 = vmatprep.subr.mxu0 0.0
    %1752 = vmatpush1.msra.mxu0 %v1133
    %1753 = vmatprep.subr.mxu0 0.0
    %1754 = vmatpush1.msra.mxu0 %v1134
    %1755 = vmatprep.subr.mxu0 0.0
    %1756 = vmatpush1.msra.mxu0 %v1135
    %1757 = vmatprep.subr.mxu0 0.0
    %1758 = vmatpush1.msra.mxu0 %v1136
    %1759 = vmatprep.subr.mxu0 0.0
    %1760 = vmatpush1.msra.mxu0 0.0
    %1761 = vmatprep.subr.mxu0 0.0
    %1762 = vmatpush1.msra.mxu0 0.0
    %1763 = vmatprep.subr.mxu0 0.0
    %1764 = vmatpush1.msra.mxu0 0.0
    %1765 = vmatprep.subr.mxu0 0.0
    %1766 = vmatpush1.msra.mxu0 0.0
    %1767 = vmatprep.subr.mxu0 0.0
    %1768 = vmatpush1.msra.mxu0 0.0
    %1769 = vmatprep.subr.mxu0 0.0
    %1770 = vmatpush1.msra.mxu0 0.0
    %1771 = vmatprep.subr.mxu0 0.0
    %1772 = vmatpush1.msra.mxu0 0.0
    %1773 = vmatprep.subr.mxu0 0.0
    %1774 = vmatpush1.msra.mxu0 0.0
    %1775 = vmatprep.subr.mxu0 0.0
    %1776 = vmatpush1.msra.mxu0 0.0
    %1777 = vmatprep.subr.mxu0 0.0
    %1778 = vmatpush1.msra.mxu0 0.0
    %1779 = vmatprep.subr.mxu0 0.0
    %1780 = vmatpush1.msra.mxu0 0.0
    %1781 = vmatprep.subr.mxu0 0.0
    %1782 = vmatpush1.msra.mxu0 0.0
    %1783 = vmatprep.subr.mxu0 0.0
    %1784 = vmatpush1.msra.mxu0 0.0
    %1785 = vmatprep.subr.mxu0 0.0
    %1786 = vmatpush1.msra.mxu0 0.0
    %1787 = vmatprep.subr.mxu0 0.0
    %1788 = vmatpush1.msra.mxu0 0.0
    %1789 = vmatprep.subr.mxu0 0.0
    %1790 = vmatpush1.msra.mxu0 0.0
    %1791 = vmatprep.subr.mxu0 0.0
    %1792 = vmatpush1.msra.mxu0 0.0
    %1793 = vmatprep.subr.mxu0 0.0
    %1794 = vmatpush1.msra.mxu0 0.0
    %1795 = vmatprep.subr.mxu0 0.0
    %1796 = vmatpush1.msra.mxu0 0.0
    %1797 = vmatprep.subr.mxu0 0.0
    %1798 = vmatpush1.msra.mxu0 0.0
    %1799 = vmatprep.subr.mxu0 0.0
    %1800 = vmatpush1.msra.mxu0 0.0
    %1801 = vmatprep.subr.mxu0 0.0
    %1802 = vmatpush1.msra.mxu0 0.0
    %1803 = vmatprep.subr.mxu0 0.0
    %1804 = vmatpush1.msra.mxu0 0.0
    %1805 = vmatprep.subr.mxu0 0.0
    %1806 = vmatpush1.msra.mxu0 0.0
    %1807 = vmatprep.subr.mxu0 0.0
    %1808 = vmatpush1.msra.mxu0 0.0
    %1809 = vmatprep.subr.mxu0 0.0
    %1810 = vmatpush1.msra.mxu0 0.0
    %1811 = vmatprep.subr.mxu0 0.0
    %1812 = vmatpush1.msra.mxu0 0.0
    %1813 = vmatprep.subr.mxu0 0.0
    %1814 = vmatpush1.msra.mxu0 0.0
    %1815 = vmatprep.mubr.f32.mxu0 0.0
    %1816 = vmatmul.mubr.f32.gmra.mrb[0].mxu0 %v1749
    %v1817 = vpop.f32.mrb[0].mxu0
    %v1818 = vadd.f32 %v1716, %v1817
    %v1819 = vpop.f32.mrb[0].mxu0
    %1820 = vdwg.mxu0
    %v1821 = vadd.f32 %v1818, %v1287
    %v1822 = vsel %vm1541, %v1821, -inf
    %1823 = vmax.xlane.f32.xlu0 %v1822
    %v1824 = vpop.xlane.xlu0 %1823
    %vm1825 = vcmp.ge.f32.partialorder %v1822, %v1824
    %v1826 = vsel %vm1825, %v77, 128
    %v1827 = vand.u32 %v1826, 65535
    %v1828 = vshra.s32 %v1826, 16
    %v1829 = vcvt.s32.f32 %v1827
    %v1830 = vcvt.s32.f32 %v1828
    %1831 = vmin.xlane.f32.xlu0 %v1830
    %v1832 = vpop.xlane.xlu0 %1831
    %vm1833 = vcmp.eq.f32.partialorder %v1830, %v1832
    %v1834 = vsel %vm1833, %v1829, inf
    %1835 = vmin.xlane.f32.xlu0 %v1834
    %v1836 = vpop.xlane.xlu0 %1835
    %v1837 = vcvt.f32.s32 %v1836
    %v1838 = vcvt.f32.s32 %v1832
    %v1839 = vshll.u32 %v1838, 16
    %v1840 = vadd.s32 %v1839, %v1837
    %vm1841 = vcmp.eq.s32.totalorder %v77, %v1840
    %v1842 = vsel %vm1841, 1, 0
    %v1843 = vcvt.s32.f32 %v1842
    %s1844 = scalar_lea.vmem %s2, 16
    %v1845 = vld [vmem:[%s1844] sm:$0xff]
    %1846 = vset.pattern.permute.xlu0 0
    %1847 = vperm.xlu0 %1846, %v1845
    %v1848 = vpop.permute.xlu0 %1847
    %vm1849 = vcmp.eq.s32.totalorder %v77, %v1848
    %v1850 = vsel %vm1849, 1, 0
    %v1851 = vcvt.s32.f32 %v1850
    %s1852 = sld [smem:[#allocation2 + $0x2]]
    %p1853 = scmp.gt.s32.totalorder %s1852, 0
    %s1854 = scalar_select %p1853, 1, 0
    %v1855 = vstv %s1854
    %vm1856 = vcmp.eq.s32.totalorder %v1855, 1
    %v1857 = vsel %vm1856, %v1851, %v1843
    %1858 = vmatprep.subr.mxu0 %v1074
    %1859 = vmatpush1.msra.mxu0 %v1073
    %1860 = vmatprep.subr.mxu0 %v1077
    %1861 = vmatpush1.msra.mxu0 %v1076
    %1862 = vmatprep.subr.mxu0 %v1080
    %1863 = vmatpush1.msra.mxu0 %v1079
    %1864 = vmatprep.subr.mxu0 %v1083
    %1865 = vmatpush1.msra.mxu0 %v1082
    %1866 = vmatprep.subr.mxu0 %v1086
    %1867 = vmatpush1.msra.mxu0 %v1085
    %1868 = vmatprep.subr.mxu0 %v1089
    %1869 = vmatpush1.msra.mxu0 %v1088
    %1870 = vmatprep.subr.mxu0 %v1092
    %1871 = vmatpush1.msra.mxu0 %v1091
    %1872 = vmatprep.subr.mxu0 %v1095
    %1873 = vmatpush1.msra.mxu0 %v1094
    %1874 = vmatprep.subr.mxu0 %v1098
    %1875 = vmatpush1.msra.mxu0 %v1097
    %1876 = vmatprep.subr.mxu0 %v1101
    %1877 = vmatpush1.msra.mxu0 %v1100
    %1878 = vmatprep.subr.mxu0 %v1104
    %1879 = vmatpush1.msra.mxu0 %v1103
    %1880 = vmatprep.subr.mxu0 %v1107
    %1881 = vmatpush1.msra.mxu0 %v1106
    %1882 = vmatprep.subr.mxu0 %v1110
    %1883 = vmatpush1.msra.mxu0 %v1109
    %1884 = vmatprep.subr.mxu0 %v1113
    %1885 = vmatpush1.msra.mxu0 %v1112
    %1886 = vmatprep.subr.mxu0 %v1116
    %1887 = vmatpush1.msra.mxu0 %v1115
    %1888 = vmatprep.subr.mxu0 %v1119
    %1889 = vmatpush1.msra.mxu0 %v1118
    %1890 = vmatprep.subr.mxu0 %v1122
    %1891 = vmatpush1.msra.mxu0 %v1121
    %1892 = vmatprep.subr.mxu0 %v1125
    %1893 = vmatpush1.msra.mxu0 %v1124
    %1894 = vmatprep.subr.mxu0 %v1128
    %1895 = vmatpush1.msra.mxu0 %v1127
    %1896 = vmatprep.subr.mxu0 %v1131
    %1897 = vmatpush1.msra.mxu0 %v1130
    %1898 = vmatprep.subr.mxu0 0.0
    %1899 = vmatpush1.msra.mxu0 0.0
    %1900 = vmatprep.subr.mxu0 0.0
    %1901 = vmatpush1.msra.mxu0 0.0
    %1902 = vmatprep.subr.mxu0 0.0
    %1903 = vmatpush1.msra.mxu0 0.0
    %1904 = vmatprep.subr.mxu0 0.0
    %1905 = vmatpush1.msra.mxu0 0.0
    %1906 = vmatprep.subr.mxu0 0.0
    %1907 = vmatpush1.msra.mxu0 0.0
    %1908 = vmatprep.subr.mxu0 0.0
    %1909 = vmatpush1.msra.mxu0 0.0
    %1910 = vmatprep.subr.mxu0 0.0
    %1911 = vmatpush1.msra.mxu0 0.0
    %1912 = vmatprep.subr.mxu0 0.0
    %1913 = vmatpush1.msra.mxu0 0.0
    %1914 = vmatprep.subr.mxu0 0.0
    %1915 = vmatpush1.msra.mxu0 0.0
    %1916 = vmatprep.subr.mxu0 0.0
    %1917 = vmatpush1.msra.mxu0 0.0
    %1918 = vmatprep.subr.mxu0 0.0
    %1919 = vmatpush1.msra.mxu0 0.0
    %1920 = vmatprep.subr.mxu0 0.0
    %1921 = vmatpush1.msra.mxu0 0.0
    %1922 = vmatprep.mubr.f32.mxu0 %v1749
    %1923 = vmatmul.mubr.f32.gmra.mrb[0].mxu0 %v1857
    %v1924 = vpop.f32.mrb[0].mxu0
    %v1925 = vadd.f32 0.0, %v1924
    %v1926 = vpop.f32.mrb[0].mxu0
    %v1927 = vadd.f32 0.0, %v1926
    %1928 = vdwg.mxu0
    %1929 = vmatprep.subr.mxu0 0.0
    %1930 = vmatpush1.msra.mxu0 %v1075
    %1931 = vmatprep.subr.mxu0 0.0
    %1932 = vmatpush1.msra.mxu0 %v1078
    %1933 = vmatprep.subr.mxu0 0.0
    %1934 = vmatpush1.msra.mxu0 %v1081
    %1935 = vmatprep.subr.mxu0 0.0
    %1936 = vmatpush1.msra.mxu0 %v1084
    %1937 = vmatprep.subr.mxu0 0.0
    %1938 = vmatpush1.msra.mxu0 %v1087
    %1939 = vmatprep.subr.mxu0 0.0
    %1940 = vmatpush1.msra.mxu0 %v1090
    %1941 = vmatprep.subr.mxu0 0.0
    %1942 = vmatpush1.msra.mxu0 %v1093
    %1943 = vmatprep.subr.mxu0 0.0
    %1944 = vmatpush1.msra.mxu0 %v1096
    %1945 = vmatprep.subr.mxu0 0.0
    %1946 = vmatpush1.msra.mxu0 %v1099
    %1947 = vmatprep.subr.mxu0 0.0
    %1948 = vmatpush1.msra.mxu0 %v1102
    %1949 = vmatprep.subr.mxu0 0.0
    %1950 = vmatpush1.msra.mxu0 %v1105
    %1951 = vmatprep.subr.mxu0 0.0
    %1952 = vmatpush1.msra.mxu0 %v1108
    %1953 = vmatprep.subr.mxu0 0.0
    %1954 = vmatpush1.msra.mxu0 %v1111
    %1955 = vmatprep.subr.mxu0 0.0
    %1956 = vmatpush1.msra.mxu0 %v1114
    %1957 = vmatprep.subr.mxu0 0.0
    %1958 = vmatpush1.msra.mxu0 %v1117
    %1959 = vmatprep.subr.mxu0 0.0
    %1960 = vmatpush1.msra.mxu0 %v1120
    %1961 = vmatprep.subr.mxu0 0.0
    %1962 = vmatpush1.msra.mxu0 %v1123
    %1963 = vmatprep.subr.mxu0 0.0
    %1964 = vmatpush1.msra.mxu0 %v1126
    %1965 = vmatprep.subr.mxu0 0.0
    %1966 = vmatpush1.msra.mxu0 %v1129
    %1967 = vmatprep.subr.mxu0 0.0
    %1968 = vmatpush1.msra.mxu0 %v1132
    %1969 = vmatprep.subr.mxu0 0.0
    %1970 = vmatpush1.msra.mxu0 0.0
    %1971 = vmatprep.subr.mxu0 0.0
    %1972 = vmatpush1.msra.mxu0 0.0
    %1973 = vmatprep.subr.mxu0 0.0
    %1974 = vmatpush1.msra.mxu0 0.0
    %1975 = vmatprep.subr.mxu0 0.0
    %1976 = vmatpush1.msra.mxu0 0.0
    %1977 = vmatprep.subr.mxu0 0.0
    %1978 = vmatpush1.msra.mxu0 0.0
    %1979 = vmatprep.subr.mxu0 0.0
    %1980 = vmatpush1.msra.mxu0 0.0
    %1981 = vmatprep.subr.mxu0 0.0
    %1982 = vmatpush1.msra.mxu0 0.0
    %1983 = vmatprep.subr.mxu0 0.0
    %1984 = vmatpush1.msra.mxu0 0.0
    %1985 = vmatprep.subr.mxu0 0.0
    %1986 = vmatpush1.msra.mxu0 0.0
    %1987 = vmatprep.subr.mxu0 0.0
    %1988 = vmatpush1.msra.mxu0 0.0
    %1989 = vmatprep.subr.mxu0 0.0
    %1990 = vmatpush1.msra.mxu0 0.0
    %1991 = vmatprep.subr.mxu0 0.0
    %1992 = vmatpush1.msra.mxu0 0.0
    %1993 = vmatprep.mubr.f32.mxu0 %v1749
    %1994 = vmatmul.mubr.f32.gmra.mrb[0].mxu0 %v1857
    %v1995 = vpop.f32.mrb[0].mxu0
    %v1996 = vadd.f32 0.0, %v1995
    %v1997 = vpop.f32.mrb[0].mxu0
    %1998 = vdwg.mxu0
    %v1999 = vadd.f32 %v1925, %v1213
    %v2000 = vadd.f32 %v1999, %v1927
    %v2001 = vxor.u32 %v2000, 2147483648
    %v2002 = vmul.f32 %v2001, 1.442695
    %v2003 = vpow.pop %v2002
    %v2004 = vadd.f32 %v2003, 1.0
    %v2005 = vrcp.pop %v2004
    %v2006 = vmul.f32 1.0, %v2005
    %2008 = vrot.lane.b32.xlu0 %v1927, 64
    %v2009 = vpop.permute.xlu0 %2008
    %v2011 = vmul.f32 %v2006, %v2009
    %2013 = vrot.lane.b32.xlu0 %v2011, 64
    %v2014 = vpop.permute.xlu0 %2013
    %v2016 = vadd.f32 %v1999, %v2014
    %v2017 = vtanh.pop %v2016
    %v2018 = vsub.f32 1.0, %v2006
    %2020 = vrot.lane.b32.xlu0 %v2017, 96
    %v2021 = vpop.permute.xlu0 %2020
    %v2023 = vmul.f32 %v2018, %v2021
    %v2024 = vmul.f32 %v2006, %v1745
    %v2025 = vadd.f32 %v2023, %v2024
    %2027 = vrot.lane.b32.xlu0 %v2025, 96
    %v2028 = vpop.permute.xlu0 %2027
    %v2029 = vsel %vm266, %v2028, 0
    %2031 = vmatprep.subr.mxu0 0.0
    %2032 = vmatpush1.msra.mxu0 %v1133
    %2033 = vmatprep.subr.mxu0 0.0
    %2034 = vmatpush1.msra.mxu0 %v1134
    %2035 = vmatprep.subr.mxu0 0.0
    %2036 = vmatpush1.msra.mxu0 %v1135
    %2037 = vmatprep.subr.mxu0 0.0
    %2038 = vmatpush1.msra.mxu0 %v1136
    %2039 = vmatprep.subr.mxu0 0.0
    %2040 = vmatpush1.msra.mxu0 0.0
    %2041 = vmatprep.subr.mxu0 0.0
    %2042 = vmatpush1.msra.mxu0 0.0
    %2043 = vmatprep.subr.mxu0 0.0
    %2044 = vmatpush1.msra.mxu0 0.0
    %2045 = vmatprep.subr.mxu0 0.0
    %2046 = vmatpush1.msra.mxu0 0.0
    %2047 = vmatprep.subr.mxu0 0.0
    %2048 = vmatpush1.msra.mxu0 0.0
    %2049 = vmatprep.subr.mxu0 0.0
    %2050 = vmatpush1.msra.mxu0 0.0
    %2051 = vmatprep.subr.mxu0 0.0
    %2052 = vmatpush1.msra.mxu0 0.0
    %2053 = vmatprep.subr.mxu0 0.0
    %2054 = vmatpush1.msra.mxu0 0.0
    %2055 = vmatprep.subr.mxu0 0.0
    %2056 = vmatpush1.msra.mxu0 0.0
    %2057 = vmatprep.subr.mxu0 0.0
    %2058 = vmatpush1.msra.mxu0 0.0
    %2059 = vmatprep.subr.mxu0 0.0
    %2060 = vmatpush1.msra.mxu0 0.0
    %2061 = vmatprep.subr.mxu0 0.0
    %2062 = vmatpush1.msra.mxu0 0.0
    %2063 = vmatprep.subr.mxu0 0.0
    %2064 = vmatpush1.msra.mxu0 0.0
    %2065 = vmatprep.subr.mxu0 0.0
    %2066 = vmatpush1.msra.mxu0 0.0
    %2067 = vmatprep.subr.mxu0 0.0
    %2068 = vmatpush1.msra.mxu0 0.0
    %2069 = vmatprep.subr.mxu0 0.0
    %2070 = vmatpush1.msra.mxu0 0.0
    %2071 = vmatprep.subr.mxu0 0.0
    %2072 = vmatpush1.msra.mxu0 0.0
    %2073 = vmatprep.subr.mxu0 0.0
    %2074 = vmatpush1.msra.mxu0 0.0
    %2075 = vmatprep.subr.mxu0 0.0
    %2076 = vmatpush1.msra.mxu0 0.0
    %2077 = vmatprep.subr.mxu0 0.0
    %2078 = vmatpush1.msra.mxu0 0.0
    %2079 = vmatprep.subr.mxu0 0.0
    %2080 = vmatpush1.msra.mxu0 0.0
    %2081 = vmatprep.subr.mxu0 0.0
    %2082 = vmatpush1.msra.mxu0 0.0
    %2083 = vmatprep.subr.mxu0 0.0
    %2084 = vmatpush1.msra.mxu0 0.0
    %2085 = vmatprep.subr.mxu0 0.0
    %2086 = vmatpush1.msra.mxu0 0.0
    %2087 = vmatprep.subr.mxu0 0.0
    %2088 = vmatpush1.msra.mxu0 0.0
    %2089 = vmatprep.subr.mxu0 0.0
    %2090 = vmatpush1.msra.mxu0 0.0
    %2091 = vmatprep.subr.mxu0 0.0
    %2092 = vmatpush1.msra.mxu0 0.0
    %2093 = vmatprep.subr.mxu0 0.0
    %2094 = vmatpush1.msra.mxu0 0.0
    %2095 = vmatprep.mubr.f32.mxu0 0.0
    %2096 = vmatmul.mubr.f32.gmra.mrb[0].mxu0 %v2029
    %v2097 = vpop.f32.mrb[0].mxu0
    %v2098 = vadd.f32 %v1996, %v2097
    %v2099 = vpop.f32.mrb[0].mxu0
    %2100 = vdwg.mxu0
    %v2101 = vadd.f32 %v2098, %v1287
    %v2102 = vsel %vm1541, %v2101, -inf
    %2103 = vmax.xlane.f32.xlu0 %v2102
    %v2104 = vpop.xlane.xlu0 %2103
    %vm2105 = vcmp.ge.f32.partialorder %v2102, %v2104
    %v2106 = vsel %vm2105, %v77, 128
    %v2107 = vand.u32 %v2106, 65535
    %v2108 = vshra.s32 %v2106, 16
    %v2109 = vcvt.s32.f32 %v2107
    %v2110 = vcvt.s32.f32 %v2108
    %2111 = vmin.xlane.f32.xlu0 %v2110
    %v2112 = vpop.xlane.xlu0 %2111
    %vm2113 = vcmp.eq.f32.partialorder %v2110, %v2112
    %v2114 = vsel %vm2113, %v2109, inf
    %2115 = vmin.xlane.f32.xlu0 %v2114
    %v2116 = vpop.xlane.xlu0 %2115
    %v2117 = vcvt.f32.s32 %v2116
    %v2118 = vcvt.f32.s32 %v2112
    %v2119 = vshll.u32 %v2118, 16
    %v2120 = vadd.s32 %v2119, %v2117
    %vm2121 = vcmp.eq.s32.totalorder %v77, %v2120
    %v2122 = vsel %vm2121, 1, 0
    %v2123 = vcvt.s32.f32 %v2122
    %s2124 = scalar_lea.vmem %s2, 24
    %v2125 = vld [vmem:[%s2124] sm:$0xff]
    %2126 = vset.pattern.permute.xlu0 0
    %2127 = vperm.xlu0 %2126, %v2125
    %v2128 = vpop.permute.xlu0 %2127
    %vm2129 = vcmp.eq.s32.totalorder %v77, %v2128
    %v2130 = vsel %vm2129, 1, 0
    %v2131 = vcvt.s32.f32 %v2130
    %s2132 = sld [smem:[#allocation2 + $0x3]]
    %p2133 = scmp.gt.s32.totalorder %s2132, 0
    %s2134 = scalar_select %p2133, 1, 0
    %v2135 = vstv %s2134
    %vm2136 = vcmp.eq.s32.totalorder %v2135, 1
    %v2137 = vsel %vm2136, %v2131, %v2123
    %2138 = vmatprep.subr.mxu0 %v1074
    %2139 = vmatpush1.msra.mxu0 %v1073
    %2140 = vmatprep.subr.mxu0 %v1077
    %2141 = vmatpush1.msra.mxu0 %v1076
    %2142 = vmatprep.subr.mxu0 %v1080
    %2143 = vmatpush1.msra.mxu0 %v1079
    %2144 = vmatprep.subr.mxu0 %v1083
    %2145 = vmatpush1.msra.mxu0 %v1082
    %2146 = vmatprep.subr.mxu0 %v1086
    %2147 = vmatpush1.msra.mxu0 %v1085
    %2148 = vmatprep.subr.mxu0 %v1089
    %2149 = vmatpush1.msra.mxu0 %v1088
    %2150 = vmatprep.subr.mxu0 %v1092
    %2151 = vmatpush1.msra.mxu0 %v1091
    %2152 = vmatprep.subr.mxu0 %v1095
    %2153 = vmatpush1.msra.mxu0 %v1094
    %2154 = vmatprep.subr.mxu0 %v1098
    %2155 = vmatpush1.msra.mxu0 %v1097
    %2156 = vmatprep.subr.mxu0 %v1101
    %2157 = vmatpush1.msra.mxu0 %v1100
    %2158 = vmatprep.subr.mxu0 %v1104
    %2159 = vmatpush1.msra.mxu0 %v1103
    %2160 = vmatprep.subr.mxu0 %v1107
    %2161 = vmatpush1.msra.mxu0 %v1106
    %2162 = vmatprep.subr.mxu0 %v1110
    %2163 = vmatpush1.msra.mxu0 %v1109
    %2164 = vmatprep.subr.mxu0 %v1113
    %2165 = vmatpush1.msra.mxu0 %v1112
    %2166 = vmatprep.subr.mxu0 %v1116
    %2167 = vmatpush1.msra.mxu0 %v1115
    %2168 = vmatprep.subr.mxu0 %v1119
    %2169 = vmatpush1.msra.mxu0 %v1118
    %2170 = vmatprep.subr.mxu0 %v1122
    %2171 = vmatpush1.msra.mxu0 %v1121
    %2172 = vmatprep.subr.mxu0 %v1125
    %2173 = vmatpush1.msra.mxu0 %v1124
    %2174 = vmatprep.subr.mxu0 %v1128
    %2175 = vmatpush1.msra.mxu0 %v1127
    %2176 = vmatprep.subr.mxu0 %v1131
    %2177 = vmatpush1.msra.mxu0 %v1130
    %2178 = vmatprep.subr.mxu0 0.0
    %2179 = vmatpush1.msra.mxu0 0.0
    %2180 = vmatprep.subr.mxu0 0.0
    %2181 = vmatpush1.msra.mxu0 0.0
    %2182 = vmatprep.subr.mxu0 0.0
    %2183 = vmatpush1.msra.mxu0 0.0
    %2184 = vmatprep.subr.mxu0 0.0
    %2185 = vmatpush1.msra.mxu0 0.0
    %2186 = vmatprep.subr.mxu0 0.0
    %2187 = vmatpush1.msra.mxu0 0.0
    %2188 = vmatprep.subr.mxu0 0.0
    %2189 = vmatpush1.msra.mxu0 0.0
    %2190 = vmatprep.subr.mxu0 0.0
    %2191 = vmatpush1.msra.mxu0 0.0
    %2192 = vmatprep.subr.mxu0 0.0
    %2193 = vmatpush1.msra.mxu0 0.0
    %2194 = vmatprep.subr.mxu0 0.0
    %2195 = vmatpush1.msra.mxu0 0.0
    %2196 = vmatprep.subr.mxu0 0.0
    %2197 = vmatpush1.msra.mxu0 0.0
    %2198 = vmatprep.subr.mxu0 0.0
    %2199 = vmatpush1.msra.mxu0 0.0
    %2200 = vmatprep.subr.mxu0 0.0
    %2201 = vmatpush1.msra.mxu0 0.0
    %2202 = vmatprep.mubr.f32.mxu0 %v2029
    %2203 = vmatmul.mubr.f32.gmra.mrb[0].mxu0 %v2137
    %v2204 = vpop.f32.mrb[0].mxu0
    %v2205 = vadd.f32 0.0, %v2204
    %v2206 = vpop.f32.mrb[0].mxu0
    %v2207 = vadd.f32 0.0, %v2206
    %2208 = vdwg.mxu0
    %2209 = vmatprep.subr.mxu0 0.0
    %2210 = vmatpush1.msra.mxu0 %v1075
    %2211 = vmatprep.subr.mxu0 0.0
    %2212 = vmatpush1.msra.mxu0 %v1078
    %2213 = vmatprep.subr.mxu0 0.0
    %2214 = vmatpush1.msra.mxu0 %v1081
    %2215 = vmatprep.subr.mxu0 0.0
    %2216 = vmatpush1.msra.mxu0 %v1084
    %2217 = vmatprep.subr.mxu0 0.0
    %2218 = vmatpush1.msra.mxu0 %v1087
    %2219 = vmatprep.subr.mxu0 0.0
    %2220 = vmatpush1.msra.mxu0 %v1090
    %2221 = vmatprep.subr.mxu0 0.0
    %2222 = vmatpush1.msra.mxu0 %v1093
    %2223 = vmatprep.subr.mxu0 0.0
    %2224 = vmatpush1.msra.mxu0 %v1096
    %2225 = vmatprep.subr.mxu0 0.0
    %2226 = vmatpush1.msra.mxu0 %v1099
    %2227 = vmatprep.subr.mxu0 0.0
    %2228 = vmatpush1.msra.mxu0 %v1102
    %2229 = vmatprep.subr.mxu0 0.0
    %2230 = vmatpush1.msra.mxu0 %v1105
    %2231 = vmatprep.subr.mxu0 0.0
    %2232 = vmatpush1.msra.mxu0 %v1108
    %2233 = vmatprep.subr.mxu0 0.0
    %2234 = vmatpush1.msra.mxu0 %v1111
    %2235 = vmatprep.subr.mxu0 0.0
    %2236 = vmatpush1.msra.mxu0 %v1114
    %2237 = vmatprep.subr.mxu0 0.0
    %2238 = vmatpush1.msra.mxu0 %v1117
    %2239 = vmatprep.subr.mxu0 0.0
    %2240 = vmatpush1.msra.mxu0 %v1120
    %2241 = vmatprep.subr.mxu0 0.0
    %2242 = vmatpush1.msra.mxu0 %v1123
    %2243 = vmatprep.subr.mxu0 0.0
    %2244 = vmatpush1.msra.mxu0 %v1126
    %2245 = vmatprep.subr.mxu0 0.0
    %2246 = vmatpush1.msra.mxu0 %v1129
    %2247 = vmatprep.subr.mxu0 0.0
    %2248 = vmatpush1.msra.mxu0 %v1132
    %2249 = vmatprep.subr.mxu0 0.0
    %2250 = vmatpush1.msra.mxu0 0.0
    %2251 = vmatprep.subr.mxu0 0.0
    %2252 = vmatpush1.msra.mxu0 0.0
    %2253 = vmatprep.subr.mxu0 0.0
    %2254 = vmatpush1.msra.mxu0 0.0
    %2255 = vmatprep.subr.mxu0 0.0
    %2256 = vmatpush1.msra.mxu0 0.0
    %2257 = vmatprep.subr.mxu0 0.0
    %2258 = vmatpush1.msra.mxu0 0.0
    %2259 = vmatprep.subr.mxu0 0.0
    %2260 = vmatpush1.msra.mxu0 0.0
    %2261 = vmatprep.subr.mxu0 0.0
    %2262 = vmatpush1.msra.mxu0 0.0
    %2263 = vmatprep.subr.mxu0 0.0
    %2264 = vmatpush1.msra.mxu0 0.0
    %2265 = vmatprep.subr.mxu0 0.0
    %2266 = vmatpush1.msra.mxu0 0.0
    %2267 = vmatprep.subr.mxu0 0.0
    %2268 = vmatpush1.msra.mxu0 0.0
    %2269 = vmatprep.subr.mxu0 0.0
    %2270 = vmatpush1.msra.mxu0 0.0
    %2271 = vmatprep.subr.mxu0 0.0
    %2272 = vmatpush1.msra.mxu0 0.0
    %2273 = vmatprep.mubr.f32.mxu0 %v2029
    %2274 = vmatmul.mubr.f32.gmra.mrb[0].mxu0 %v2137
    %v2275 = vpop.f32.mrb[0].mxu0
    %v2276 = vadd.f32 0.0, %v2275
    %v2277 = vpop.f32.mrb[0].mxu0
    %2278 = vdwg.mxu0
    %v2279 = vadd.f32 %v2205, %v1213
    %v2280 = vadd.f32 %v2279, %v2207
    %v2281 = vxor.u32 %v2280, 2147483648
    %v2282 = vmul.f32 %v2281, 1.442695
    %v2283 = vpow.pop %v2282
    %v2284 = vadd.f32 %v2283, 1.0
    %v2285 = vrcp.pop %v2284
    %v2286 = vmul.f32 1.0, %v2285
    %2288 = vrot.lane.b32.xlu0 %v2207, 64
    %v2289 = vpop.permute.xlu0 %2288
    %v2291 = vmul.f32 %v2286, %v2289
    %2293 = vrot.lane.b32.xlu0 %v2291, 64
    %v2294 = vpop.permute.xlu0 %2293
    %v2296 = vadd.f32 %v2279, %v2294
    %v2297 = vtanh.pop %v2296
    %v2298 = vsub.f32 1.0, %v2286
    %2300 = vrot.lane.b32.xlu0 %v2297, 96
    %v2301 = vpop.permute.xlu0 %2300
    %v2303 = vmul.f32 %v2298, %v2301
    %v2304 = vmul.f32 %v2286, %v2025
    %v2305 = vadd.f32 %v2303, %v2304
    %2307 = vrot.lane.b32.xlu0 %v2305, 96
    %v2308 = vpop.permute.xlu0 %2307
    %v2309 = vsel %vm266, %v2308, 0
    %2311 = vmatprep.subr.mxu0 0.0
    %2312 = vmatpush1.msra.mxu0 %v1133
    %2313 = vmatprep.subr.mxu0 0.0
    %2314 = vmatpush1.msra.mxu0 %v1134
    %2315 = vmatprep.subr.mxu0 0.0
    %2316 = vmatpush1.msra.mxu0 %v1135
    %2317 = vmatprep.subr.mxu0 0.0
    %2318 = vmatpush1.msra.mxu0 %v1136
    %2319 = vmatprep.subr.mxu0 0.0
    %2320 = vmatpush1.msra.mxu0 0.0
    %2321 = vmatprep.subr.mxu0 0.0
    %2322 = vmatpush1.msra.mxu0 0.0
    %2323 = vmatprep.subr.mxu0 0.0
    %2324 = vmatpush1.msra.mxu0 0.0
    %2325 = vmatprep.subr.mxu0 0.0
    %2326 = vmatpush1.msra.mxu0 0.0
    %2327 = vmatprep.subr.mxu0 0.0
    %2328 = vmatpush1.msra.mxu0 0.0
    %2329 = vmatprep.subr.mxu0 0.0
    %2330 = vmatpush1.msra.mxu0 0.0
    %2331 = vmatprep.subr.mxu0 0.0
    %2332 = vmatpush1.msra.mxu0 0.0
    %2333 = vmatprep.subr.mxu0 0.0
    %2334 = vmatpush1.msra.mxu0 0.0
    %2335 = vmatprep.subr.mxu0 0.0
    %2336 = vmatpush1.msra.mxu0 0.0
    %2337 = vmatprep.subr.mxu0 0.0
    %2338 = vmatpush1.msra.mxu0 0.0
    %2339 = vmatprep.subr.mxu0 0.0
    %2340 = vmatpush1.msra.mxu0 0.0
    %2341 = vmatprep.subr.mxu0 0.0
    %2342 = vmatpush1.msra.mxu0 0.0
    %2343 = vmatprep.subr.mxu0 0.0
    %2344 = vmatpush1.msra.mxu0 0.0
    %2345 = vmatprep.subr.mxu0 0.0
    %2346 = vmatpush1.msra.mxu0 0.0
    %2347 = vmatprep.subr.mxu0 0.0
    %2348 = vmatpush1.msra.mxu0 0.0
    %2349 = vmatprep.subr.mxu0 0.0
    %2350 = vmatpush1.msra.mxu0 0.0
    %2351 = vmatprep.subr.mxu0 0.0
    %2352 = vmatpush1.msra.mxu0 0.0
    %2353 = vmatprep.subr.mxu0 0.0
    %2354 = vmatpush1.msra.mxu0 0.0
    %2355 = vmatprep.subr.mxu0 0.0
    %2356 = vmatpush1.msra.mxu0 0.0
    %2357 = vmatprep.subr.mxu0 0.0
    %2358 = vmatpush1.msra.mxu0 0.0
    %2359 = vmatprep.subr.mxu0 0.0
    %2360 = vmatpush1.msra.mxu0 0.0
    %2361 = vmatprep.subr.mxu0 0.0
    %2362 = vmatpush1.msra.mxu0 0.0
    %2363 = vmatprep.subr.mxu0 0.0
    %2364 = vmatpush1.msra.mxu0 0.0
    %2365 = vmatprep.subr.mxu0 0.0
    %2366 = vmatpush1.msra.mxu0 0.0
    %2367 = vmatprep.subr.mxu0 0.0
    %2368 = vmatpush1.msra.mxu0 0.0
    %2369 = vmatprep.subr.mxu0 0.0
    %2370 = vmatpush1.msra.mxu0 0.0
    %2371 = vmatprep.subr.mxu0 0.0
    %2372 = vmatpush1.msra.mxu0 0.0
    %2373 = vmatprep.subr.mxu0 0.0
    %2374 = vmatpush1.msra.mxu0 0.0
    %2375 = vmatprep.mubr.f32.mxu0 0.0
    %2376 = vmatmul.mubr.f32.gmra.mrb[0].mxu0 %v2309
    %v2377 = vpop.f32.mrb[0].mxu0
    %v2378 = vadd.f32 %v2276, %v2377
    %v2379 = vpop.f32.mrb[0].mxu0
    %2380 = vdwg.mxu0
    %v2381 = vadd.f32 %v2378, %v1287
    %v2382 = vsel %vm1541, %v2381, -inf
    %2383 = vmax.xlane.f32.xlu0 %v2382
    %v2384 = vpop.xlane.xlu0 %2383
    %vm2385 = vcmp.ge.f32.partialorder %v2382, %v2384
    %v2386 = vsel %vm2385, %v77, 128
    %v2387 = vand.u32 %v2386, 65535
    %v2388 = vshra.s32 %v2386, 16
    %v2389 = vcvt.s32.f32 %v2387
    %v2390 = vcvt.s32.f32 %v2388
    %2391 = vmin.xlane.f32.xlu0 %v2390
    %v2392 = vpop.xlane.xlu0 %2391
    %vm2393 = vcmp.eq.f32.partialorder %v2390, %v2392
    %v2394 = vsel %vm2393, %v2389, inf
    %2395 = vmin.xlane.f32.xlu0 %v2394
    %v2396 = vpop.xlane.xlu0 %2395
    %v2397 = vcvt.f32.s32 %v2396
    %v2398 = vcvt.f32.s32 %v2392
    %v2399 = vshll.u32 %v2398, 16
    %v2400 = vadd.s32 %v2399, %v2397
    %vm2401 = vcmp.eq.s32.totalorder %v77, %v2400
    %v2402 = vsel %vm2401, 1, 0
    %v2403 = vcvt.s32.f32 %v2402
    %s2404 = scalar_lea.vmem %s2, 32
    %v2405 = vld [vmem:[%s2404] sm:$0xff]
    %2406 = vset.pattern.permute.xlu0 0
    %2407 = vperm.xlu0 %2406, %v2405
    %v2408 = vpop.permute.xlu0 %2407
    %vm2409 = vcmp.eq.s32.totalorder %v77, %v2408
    %v2410 = vsel %vm2409, 1, 0
    %v2411 = vcvt.s32.f32 %v2410
    %s2412 = sld [smem:[#allocation2 + $0x4]]
    %p2413 = scmp.gt.s32.totalorder %s2412, 0
    %s2414 = scalar_select %p2413, 1, 0
    %v2415 = vstv %s2414
    %vm2416 = vcmp.eq.s32.totalorder %v2415, 1
    %v2417 = vsel %vm2416, %v2411, %v2403
    %2418 = vmatprep.subr.mxu0 %v1074
    %2419 = vmatpush1.msra.mxu0 %v1073
    %2420 = vmatprep.subr.mxu0 %v1077
    %2421 = vmatpush1.msra.mxu0 %v1076
    %2422 = vmatprep.subr.mxu0 %v1080
    %2423 = vmatpush1.msra.mxu0 %v1079
    %2424 = vmatprep.subr.mxu0 %v1083
    %2425 = vmatpush1.msra.mxu0 %v1082
    %2426 = vmatprep.subr.mxu0 %v1086
    %2427 = vmatpush1.msra.mxu0 %v1085
    %2428 = vmatprep.subr.mxu0 %v1089
    %2429 = vmatpush1.msra.mxu0 %v1088
    %2430 = vmatprep.subr.mxu0 %v1092
    %2431 = vmatpush1.msra.mxu0 %v1091
    %2432 = vmatprep.subr.mxu0 %v1095
    %2433 = vmatpush1.msra.mxu0 %v1094
    %2434 = vmatprep.subr.mxu0 %v1098
    %2435 = vmatpush1.msra.mxu0 %v1097
    %2436 = vmatprep.subr.mxu0 %v1101
    %2437 = vmatpush1.msra.mxu0 %v1100
    %2438 = vmatprep.subr.mxu0 %v1104
    %2439 = vmatpush1.msra.mxu0 %v1103
    %2440 = vmatprep.subr.mxu0 %v1107
    %2441 = vmatpush1.msra.mxu0 %v1106
    %2442 = vmatprep.subr.mxu0 %v1110
    %2443 = vmatpush1.msra.mxu0 %v1109
    %2444 = vmatprep.subr.mxu0 %v1113
    %2445 = vmatpush1.msra.mxu0 %v1112
    %2446 = vmatprep.subr.mxu0 %v1116
    %2447 = vmatpush1.msra.mxu0 %v1115
    %2448 = vmatprep.subr.mxu0 %v1119
    %2449 = vmatpush1.msra.mxu0 %v1118
    %2450 = vmatprep.subr.mxu0 %v1122
    %2451 = vmatpush1.msra.mxu0 %v1121
    %2452 = vmatprep.subr.mxu0 %v1125
    %2453 = vmatpush1.msra.mxu0 %v1124
    %2454 = vmatprep.subr.mxu0 %v1128
    %2455 = vmatpush1.msra.mxu0 %v1127
    %2456 = vmatprep.subr.mxu0 %v1131
    %2457 = vmatpush1.msra.mxu0 %v1130
    %2458 = vmatprep.subr.mxu0 0.0
    %2459 = vmatpush1.msra.mxu0 0.0
    %2460 = vmatprep.subr.mxu0 0.0
    %2461 = vmatpush1.msra.mxu0 0.0
    %2462 = vmatprep.subr.mxu0 0.0
    %2463 = vmatpush1.msra.mxu0 0.0
    %2464 = vmatprep.subr.mxu0 0.0
    %2465 = vmatpush1.msra.mxu0 0.0
    %2466 = vmatprep.subr.mxu0 0.0
    %2467 = vmatpush1.msra.mxu0 0.0
    %2468 = vmatprep.subr.mxu0 0.0
    %2469 = vmatpush1.msra.mxu0 0.0
    %2470 = vmatprep.subr.mxu0 0.0
    %2471 = vmatpush1.msra.mxu0 0.0
    %2472 = vmatprep.subr.mxu0 0.0
    %2473 = vmatpush1.msra.mxu0 0.0
    %2474 = vmatprep.subr.mxu0 0.0
    %2475 = vmatpush1.msra.mxu0 0.0
    %2476 = vmatprep.subr.mxu0 0.0
    %2477 = vmatpush1.msra.mxu0 0.0
    %2478 = vmatprep.subr.mxu0 0.0
    %2479 = vmatpush1.msra.mxu0 0.0
    %2480 = vmatprep.subr.mxu0 0.0
    %2481 = vmatpush1.msra.mxu0 0.0
    %2482 = vmatprep.mubr.f32.mxu0 %v2309
    %2483 = vmatmul.mubr.f32.gmra.mrb[0].mxu0 %v2417
    %v2484 = vpop.f32.mrb[0].mxu0
    %v2485 = vadd.f32 0.0, %v2484
    %v2486 = vpop.f32.mrb[0].mxu0
    %v2487 = vadd.f32 0.0, %v2486
    %2488 = vdwg.mxu0
    %2489 = vmatprep.subr.mxu0 0.0
    %2490 = vmatpush1.msra.mxu0 %v1075
    %2491 = vmatprep.subr.mxu0 0.0
    %2492 = vmatpush1.msra.mxu0 %v1078
    %2493 = vmatprep.subr.mxu0 0.0
    %2494 = vmatpush1.msra.mxu0 %v1081
    %2495 = vmatprep.subr.mxu0 0.0
    %2496 = vmatpush1.msra.mxu0 %v1084
    %2497 = vmatprep.subr.mxu0 0.0
    %2498 = vmatpush1.msra.mxu0 %v1087
    %2499 = vmatprep.subr.mxu0 0.0
    %2500 = vmatpush1.msra.mxu0 %v1090
    %2501 = vmatprep.subr.mxu0 0.0
    %2502 = vmatpush1.msra.mxu0 %v1093
    %2503 = vmatprep.subr.mxu0 0.0
    %2504 = vmatpush1.msra.mxu0 %v1096
    %2505 = vmatprep.subr.mxu0 0.0
    %2506 = vmatpush1.msra.mxu0 %v1099
    %2507 = vmatprep.subr.mxu0 0.0
    %2508 = vmatpush1.msra.mxu0 %v1102
    %2509 = vmatprep.subr.mxu0 0.0
    %2510 = vmatpush1.msra.mxu0 %v1105
    %2511 = vmatprep.subr.mxu0 0.0
    %2512 = vmatpush1.msra.mxu0 %v1108
    %2513 = vmatprep.subr.mxu0 0.0
    %2514 = vmatpush1.msra.mxu0 %v1111
    %2515 = vmatprep.subr.mxu0 0.0
    %2516 = vmatpush1.msra.mxu0 %v1114
    %2517 = vmatprep.subr.mxu0 0.0
    %2518 = vmatpush1.msra.mxu0 %v1117
    %2519 = vmatprep.subr.mxu0 0.0
    %2520 = vmatpush1.msra.mxu0 %v1120
    %2521 = vmatprep.subr.mxu0 0.0
    %2522 = vmatpush1.msra.mxu0 %v1123
    %2523 = vmatprep.subr.mxu0 0.0
    %2524 = vmatpush1.msra.mxu0 %v1126
    %2525 = vmatprep.subr.mxu0 0.0
    %2526 = vmatpush1.msra.mxu0 %v1129
    %2527 = vmatprep.subr.mxu0 0.0
    %2528 = vmatpush1.msra.mxu0 %v1132
    %2529 = vmatprep.subr.mxu0 0.0
    %2530 = vmatpush1.msra.mxu0 0.0
    %2531 = vmatprep.subr.mxu0 0.0
    %2532 = vmatpush1.msra.mxu0 0.0
    %2533 = vmatprep.subr.mxu0 0.0
    %2534 = vmatpush1.msra.mxu0 0.0
    %2535 = vmatprep.subr.mxu0 0.0
    %2536 = vmatpush1.msra.mxu0 0.0
    %2537 = vmatprep.subr.mxu0 0.0
    %2538 = vmatpush1.msra.mxu0 0.0
    %2539 = vmatprep.subr.mxu0 0.0
    %2540 = vmatpush1.msra.mxu0 0.0
    %2541 = vmatprep.subr.mxu0 0.0
    %2542 = vmatpush1.msra.mxu0 0.0
    %2543 = vmatprep.subr.mxu0 0.0
    %2544 = vmatpush1.msra.mxu0 0.0
    %2545 = vmatprep.subr.mxu0 0.0
    %2546 = vmatpush1.msra.mxu0 0.0
    %2547 = vmatprep.subr.mxu0 0.0
    %2548 = vmatpush1.msra.mxu0 0.0
    %2549 = vmatprep.subr.mxu0 0.0
    %2550 = vmatpush1.msra.mxu0 0.0
    %2551 = vmatprep.subr.mxu0 0.0
    %2552 = vmatpush1.msra.mxu0 0.0
    %2553 = vmatprep.mubr.f32.mxu0 %v2309
    %2554 = vmatmul.mubr.f32.gmra.mrb[0].mxu0 %v2417
    %v2555 = vpop.f32.mrb[0].mxu0
    %v2556 = vadd.f32 0.0, %v2555
    %v2557 = vpop.f32.mrb[0].mxu0
    %2558 = vdwg.mxu0
    %v2559 = vadd.f32 %v2485, %v1213
    %v2560 = vadd.f32 %v2559, %v2487
    %v2561 = vxor.u32 %v2560, 2147483648
    %v2562 = vmul.f32 %v2561, 1.442695
    %v2563 = vpow.pop %v2562
    %v2564 = vadd.f32 %v2563, 1.0
    %v2565 = vrcp.pop %v2564
    %v2566 = vmul.f32 1.0, %v2565
    %2568 = vrot.lane.b32.xlu0 %v2487, 64
    %v2569 = vpop.permute.xlu0 %2568
    %v2571 = vmul.f32 %v2566, %v2569
    %2573 = vrot.lane.b32.xlu0 %v2571, 64
    %v2574 = vpop.permute.xlu0 %2573
    %v2576 = vadd.f32 %v2559, %v2574
    %v2577 = vtanh.pop %v2576
    %v2578 = vsub.f32 1.0, %v2566
    %2580 = vrot.lane.b32.xlu0 %v2577, 96
    %v2581 = vpop.permute.xlu0 %2580
    %v2583 = vmul.f32 %v2578, %v2581
    %v2584 = vmul.f32 %v2566, %v2305
    %v2585 = vadd.f32 %v2583, %v2584
    %2587 = vrot.lane.b32.xlu0 %v2585, 96
    %v2588 = vpop.permute.xlu0 %2587
    %v2589 = vsel %vm266, %v2588, 0
    %2591 = vmatprep.subr.mxu0 0.0
    %2592 = vmatpush1.msra.mxu0 %v1133
    %2593 = vmatprep.subr.mxu0 0.0
    %2594 = vmatpush1.msra.mxu0 %v1134
    %2595 = vmatprep.subr.mxu0 0.0
    %2596 = vmatpush1.msra.mxu0 %v1135
    %2597 = vmatprep.subr.mxu0 0.0
    %2598 = vmatpush1.msra.mxu0 %v1136
    %2599 = vmatprep.subr.mxu0 0.0
    %2600 = vmatpush1.msra.mxu0 0.0
    %2601 = vmatprep.subr.mxu0 0.0
    %2602 = vmatpush1.msra.mxu0 0.0
    %2603 = vmatprep.subr.mxu0 0.0
    %2604 = vmatpush1.msra.mxu0 0.0
    %2605 = vmatprep.subr.mxu0 0.0
    %2606 = vmatpush1.msra.mxu0 0.0
    %2607 = vmatprep.subr.mxu0 0.0
    %2608 = vmatpush1.msra.mxu0 0.0
    %2609 = vmatprep.subr.mxu0 0.0
    %2610 = vmatpush1.msra.mxu0 0.0
    %2611 = vmatprep.subr.mxu0 0.0
    %2612 = vmatpush1.msra.mxu0 0.0
    %2613 = vmatprep.subr.mxu0 0.0
    %2614 = vmatpush1.msra.mxu0 0.0
    %2615 = vmatprep.subr.mxu0 0.0
    %2616 = vmatpush1.msra.mxu0 0.0
    %2617 = vmatprep.subr.mxu0 0.0
    %2618 = vmatpush1.msra.mxu0 0.0
    %2619 = vmatprep.subr.mxu0 0.0
    %2620 = vmatpush1.msra.mxu0 0.0
    %2621 = vmatprep.subr.mxu0 0.0
    %2622 = vmatpush1.msra.mxu0 0.0
    %2623 = vmatprep.subr.mxu0 0.0
    %2624 = vmatpush1.msra.mxu0 0.0
    %2625 = vmatprep.subr.mxu0 0.0
    %2626 = vmatpush1.msra.mxu0 0.0
    %2627 = vmatprep.subr.mxu0 0.0
    %2628 = vmatpush1.msra.mxu0 0.0
    %2629 = vmatprep.subr.mxu0 0.0
    %2630 = vmatpush1.msra.mxu0 0.0
    %2631 = vmatprep.subr.mxu0 0.0
    %2632 = vmatpush1.msra.mxu0 0.0
    %2633 = vmatprep.subr.mxu0 0.0
    %2634 = vmatpush1.msra.mxu0 0.0
    %2635 = vmatprep.subr.mxu0 0.0
    %2636 = vmatpush1.msra.mxu0 0.0
    %2637 = vmatprep.subr.mxu0 0.0
    %2638 = vmatpush1.msra.mxu0 0.0
    %2639 = vmatprep.subr.mxu0 0.0
    %2640 = vmatpush1.msra.mxu0 0.0
    %2641 = vmatprep.subr.mxu0 0.0
    %2642 = vmatpush1.msra.mxu0 0.0
    %2643 = vmatprep.subr.mxu0 0.0
    %2644 = vmatpush1.msra.mxu0 0.0
    %2645 = vmatprep.subr.mxu0 0.0
    %2646 = vmatpush1.msra.mxu0 0.0
    %2647 = vmatprep.subr.mxu0 0.0
    %2648 = vmatpush1.msra.mxu0 0.0
    %2649 = vmatprep.subr.mxu0 0.0
    %2650 = vmatpush1.msra.mxu0 0.0
    %2651 = vmatprep.subr.mxu0 0.0
    %2652 = vmatpush1.msra.mxu0 0.0
    %2653 = vmatprep.subr.mxu0 0.0
    %2654 = vmatpush1.msra.mxu0 0.0
    %2655 = vmatprep.mubr.f32.mxu0 0.0
    %2656 = vmatmul.mubr.f32.gmra.mrb[0].mxu0 %v2589
    %v2657 = vpop.f32.mrb[0].mxu0
    %v2658 = vadd.f32 %v2556, %v2657
    %v2659 = vpop.f32.mrb[0].mxu0
    %2660 = vdwg.mxu0
    %v2661 = vadd.f32 %v2658, %v1287
    %v2662 = vsel %vm1541, %v2661, -inf
    %2663 = vmax.xlane.f32.xlu0 %v2662
    %v2664 = vpop.xlane.xlu0 %2663
    %vm2665 = vcmp.ge.f32.partialorder %v2662, %v2664
    %v2666 = vsel %vm2665, %v77, 128
    %v2667 = vand.u32 %v2666, 65535
    %v2668 = vshra.s32 %v2666, 16
    %v2669 = vcvt.s32.f32 %v2667
    %v2670 = vcvt.s32.f32 %v2668
    %2671 = vmin.xlane.f32.xlu0 %v2670
    %v2672 = vpop.xlane.xlu0 %2671
    %vm2673 = vcmp.eq.f32.partialorder %v2670, %v2672
    %v2674 = vsel %vm2673, %v2669, inf
    %2675 = vmin.xlane.f32.xlu0 %v2674
    %v2676 = vpop.xlane.xlu0 %2675
    %v2677 = vcvt.f32.s32 %v2676
    %v2678 = vcvt.f32.s32 %v2672
    %v2679 = vshll.u32 %v2678, 16
    %v2680 = vadd.s32 %v2679, %v2677
    %vm2681 = vcmp.eq.s32.totalorder %v77, %v2680
    %v2682 = vsel %vm2681, 1, 0
    %v2683 = vcvt.s32.f32 %v2682
    %s2684 = scalar_lea.vmem %s2, 40
    %v2685 = vld [vmem:[%s2684] sm:$0xff]
    %2686 = vset.pattern.permute.xlu0 0
    %2687 = vperm.xlu0 %2686, %v2685
    %v2688 = vpop.permute.xlu0 %2687
    %vm2689 = vcmp.eq.s32.totalorder %v77, %v2688
    %v2690 = vsel %vm2689, 1, 0
    %v2691 = vcvt.s32.f32 %v2690
    %s2692 = sld [smem:[#allocation2 + $0x5]]
    %p2693 = scmp.gt.s32.totalorder %s2692, 0
    %s2694 = scalar_select %p2693, 1, 0
    %v2695 = vstv %s2694
    %vm2696 = vcmp.eq.s32.totalorder %v2695, 1
    %v2697 = vsel %vm2696, %v2691, %v2683
    %2698 = vmatprep.subr.mxu0 %v1074
    %2699 = vmatpush1.msra.mxu0 %v1073
    %2700 = vmatprep.subr.mxu0 %v1077
    %2701 = vmatpush1.msra.mxu0 %v1076
    %2702 = vmatprep.subr.mxu0 %v1080
    %2703 = vmatpush1.msra.mxu0 %v1079
    %2704 = vmatprep.subr.mxu0 %v1083
    %2705 = vmatpush1.msra.mxu0 %v1082
    %2706 = vmatprep.subr.mxu0 %v1086
    %2707 = vmatpush1.msra.mxu0 %v1085
    %2708 = vmatprep.subr.mxu0 %v1089
    %2709 = vmatpush1.msra.mxu0 %v1088
    %2710 = vmatprep.subr.mxu0 %v1092
    %2711 = vmatpush1.msra.mxu0 %v1091
    %2712 = vmatprep.subr.mxu0 %v1095
    %2713 = vmatpush1.msra.mxu0 %v1094
    %2714 = vmatprep.subr.mxu0 %v1098
    %2715 = vmatpush1.msra.mxu0 %v1097
    %2716 = vmatprep.subr.mxu0 %v1101
    %2717 = vmatpush1.msra.mxu0 %v1100
    %2718 = vmatprep.subr.mxu0 %v1104
    %2719 = vmatpush1.msra.mxu0 %v1103
    %2720 = vmatprep.subr.mxu0 %v1107
    %2721 = vmatpush1.msra.mxu0 %v1106
    %2722 = vmatprep.subr.mxu0 %v1110
    %2723 = vmatpush1.msra.mxu0 %v1109
    %2724 = vmatprep.subr.mxu0 %v1113
    %2725 = vmatpush1.msra.mxu0 %v1112
    %2726 = vmatprep.subr.mxu0 %v1116
    %2727 = vmatpush1.msra.mxu0 %v1115
    %2728 = vmatprep.subr.mxu0 %v1119
    %2729 = vmatpush1.msra.mxu0 %v1118
    %2730 = vmatprep.subr.mxu0 %v1122
    %2731 = vmatpush1.msra.mxu0 %v1121
    %2732 = vmatprep.subr.mxu0 %v1125
    %2733 = vmatpush1.msra.mxu0 %v1124
    %2734 = vmatprep.subr.mxu0 %v1128
    %2735 = vmatpush1.msra.mxu0 %v1127
    %2736 = vmatprep.subr.mxu0 %v1131
    %2737 = vmatpush1.msra.mxu0 %v1130
    %2738 = vmatprep.subr.mxu0 0.0
    %2739 = vmatpush1.msra.mxu0 0.0
    %2740 = vmatprep.subr.mxu0 0.0
    %2741 = vmatpush1.msra.mxu0 0.0
    %2742 = vmatprep.subr.mxu0 0.0
    %2743 = vmatpush1.msra.mxu0 0.0
    %2744 = vmatprep.subr.mxu0 0.0
    %2745 = vmatpush1.msra.mxu0 0.0
    %2746 = vmatprep.subr.mxu0 0.0
    %2747 = vmatpush1.msra.mxu0 0.0
    %2748 = vmatprep.subr.mxu0 0.0
    %2749 = vmatpush1.msra.mxu0 0.0
    %2750 = vmatprep.subr.mxu0 0.0
    %2751 = vmatpush1.msra.mxu0 0.0
    %2752 = vmatprep.subr.mxu0 0.0
    %2753 = vmatpush1.msra.mxu0 0.0
    %2754 = vmatprep.subr.mxu0 0.0
    %2755 = vmatpush1.msra.mxu0 0.0
    %2756 = vmatprep.subr.mxu0 0.0
    %2757 = vmatpush1.msra.mxu0 0.0
    %2758 = vmatprep.subr.mxu0 0.0
    %2759 = vmatpush1.msra.mxu0 0.0
    %2760 = vmatprep.subr.mxu0 0.0
    %2761 = vmatpush1.msra.mxu0 0.0
    %2762 = vmatprep.mubr.f32.mxu0 %v2589
    %2763 = vmatmul.mubr.f32.gmra.mrb[0].mxu0 %v2697
    %v2764 = vpop.f32.mrb[0].mxu0
    %v2765 = vadd.f32 0.0, %v2764
    %v2766 = vpop.f32.mrb[0].mxu0
    %v2767 = vadd.f32 0.0, %v2766
    %2768 = vdwg.mxu0
    %2769 = vmatprep.subr.mxu0 0.0
    %2770 = vmatpush1.msra.mxu0 %v1075
    %2771 = vmatprep.subr.mxu0 0.0
    %2772 = vmatpush1.msra.mxu0 %v1078
    %2773 = vmatprep.subr.mxu0 0.0
    %2774 = vmatpush1.msra.mxu0 %v1081
    %2775 = vmatprep.subr.mxu0 0.0
    %2776 = vmatpush1.msra.mxu0 %v1084
    %2777 = vmatprep.subr.mxu0 0.0
    %2778 = vmatpush1.msra.mxu0 %v1087
    %2779 = vmatprep.subr.mxu0 0.0
    %2780 = vmatpush1.msra.mxu0 %v1090
    %2781 = vmatprep.subr.mxu0 0.0
    %2782 = vmatpush1.msra.mxu0 %v1093
    %2783 = vmatprep.subr.mxu0 0.0
    %2784 = vmatpush1.msra.mxu0 %v1096
    %2785 = vmatprep.subr.mxu0 0.0
    %2786 = vmatpush1.msra.mxu0 %v1099
    %2787 = vmatprep.subr.mxu0 0.0
    %2788 = vmatpush1.msra.mxu0 %v1102
    %2789 = vmatprep.subr.mxu0 0.0
    %2790 = vmatpush1.msra.mxu0 %v1105
    %2791 = vmatprep.subr.mxu0 0.0
    %2792 = vmatpush1.msra.mxu0 %v1108
    %2793 = vmatprep.subr.mxu0 0.0
    %2794 = vmatpush1.msra.mxu0 %v1111
    %2795 = vmatprep.subr.mxu0 0.0
    %2796 = vmatpush1.msra.mxu0 %v1114
    %2797 = vmatprep.subr.mxu0 0.0
    %2798 = vmatpush1.msra.mxu0 %v1117
    %2799 = vmatprep.subr.mxu0 0.0
    %2800 = vmatpush1.msra.mxu0 %v1120
    %2801 = vmatprep.subr.mxu0 0.0
    %2802 = vmatpush1.msra.mxu0 %v1123
    %2803 = vmatprep.subr.mxu0 0.0
    %2804 = vmatpush1.msra.mxu0 %v1126
    %2805 = vmatprep.subr.mxu0 0.0
    %2806 = vmatpush1.msra.mxu0 %v1129
    %2807 = vmatprep.subr.mxu0 0.0
    %2808 = vmatpush1.msra.mxu0 %v1132
    %2809 = vmatprep.subr.mxu0 0.0
    %2810 = vmatpush1.msra.mxu0 0.0
    %2811 = vmatprep.subr.mxu0 0.0
    %2812 = vmatpush1.msra.mxu0 0.0
    %2813 = vmatprep.subr.mxu0 0.0
    %2814 = vmatpush1.msra.mxu0 0.0
    %2815 = vmatprep.subr.mxu0 0.0
    %2816 = vmatpush1.msra.mxu0 0.0
    %2817 = vmatprep.subr.mxu0 0.0
    %2818 = vmatpush1.msra.mxu0 0.0
    %2819 = vmatprep.subr.mxu0 0.0
    %2820 = vmatpush1.msra.mxu0 0.0
    %2821 = vmatprep.subr.mxu0 0.0
    %2822 = vmatpush1.msra.mxu0 0.0
    %2823 = vmatprep.subr.mxu0 0.0
    %2824 = vmatpush1.msra.mxu0 0.0
    %2825 = vmatprep.subr.mxu0 0.0
    %2826 = vmatpush1.msra.mxu0 0.0
    %2827 = vmatprep.subr.mxu0 0.0
    %2828 = vmatpush1.msra.mxu0 0.0
    %2829 = vmatprep.subr.mxu0 0.0
    %2830 = vmatpush1.msra.mxu0 0.0
    %2831 = vmatprep.subr.mxu0 0.0
    %2832 = vmatpush1.msra.mxu0 0.0
    %2833 = vmatprep.mubr.f32.mxu0 %v2589
    %2834 = vmatmul.mubr.f32.gmra.mrb[0].mxu0 %v2697
    %v2835 = vpop.f32.mrb[0].mxu0
    %v2836 = vadd.f32 0.0, %v2835
    %v2837 = vpop.f32.mrb[0].mxu0
    %2838 = vdwg.mxu0
    %v2839 = vadd.f32 %v2765, %v1213
    %v2840 = vadd.f32 %v2839, %v2767
    %v2841 = vxor.u32 %v2840, 2147483648
    %v2842 = vmul.f32 %v2841, 1.442695
    %v2843 = vpow.pop %v2842
    %v2844 = vadd.f32 %v2843, 1.0
    %v2845 = vrcp.pop %v2844
    %v2846 = vmul.f32 1.0, %v2845
    %2848 = vrot.lane.b32.xlu0 %v2767, 64
    %v2849 = vpop.permute.xlu0 %2848
    %v2851 = vmul.f32 %v2846, %v2849
    %2853 = vrot.lane.b32.xlu0 %v2851, 64
    %v2854 = vpop.permute.xlu0 %2853
    %v2856 = vadd.f32 %v2839, %v2854
    %v2857 = vtanh.pop %v2856
    %v2858 = vsub.f32 1.0, %v2846
    %2860 = vrot.lane.b32.xlu0 %v2857, 96
    %v2861 = vpop.permute.xlu0 %2860
    %v2863 = vmul.f32 %v2858, %v2861
    %v2864 = vmul.f32 %v2846, %v2585
    %v2865 = vadd.f32 %v2863, %v2864
    %2867 = vrot.lane.b32.xlu0 %v2865, 96
    %v2868 = vpop.permute.xlu0 %2867
    %v2869 = vsel %vm266, %v2868, 0
    %2871 = vmatprep.subr.mxu0 0.0
    %2872 = vmatpush1.msra.mxu0 %v1133
    %2873 = vmatprep.subr.mxu0 0.0
    %2874 = vmatpush1.msra.mxu0 %v1134
    %2875 = vmatprep.subr.mxu0 0.0
    %2876 = vmatpush1.msra.mxu0 %v1135
    %2877 = vmatprep.subr.mxu0 0.0
    %2878 = vmatpush1.msra.mxu0 %v1136
    %2879 = vmatprep.subr.mxu0 0.0
    %2880 = vmatpush1.msra.mxu0 0.0
    %2881 = vmatprep.subr.mxu0 0.0
    %2882 = vmatpush1.msra.mxu0 0.0
    %2883 = vmatprep.subr.mxu0 0.0
    %2884 = vmatpush1.msra.mxu0 0.0
    %2885 = vmatprep.subr.mxu0 0.0
    %2886 = vmatpush1.msra.mxu0 0.0
    %2887 = vmatprep.subr.mxu0 0.0
    %2888 = vmatpush1.msra.mxu0 0.0
    %2889 = vmatprep.subr.mxu0 0.0
    %2890 = vmatpush1.msra.mxu0 0.0
    %2891 = vmatprep.subr.mxu0 0.0
    %2892 = vmatpush1.msra.mxu0 0.0
    %2893 = vmatprep.subr.mxu0 0.0
    %2894 = vmatpush1.msra.mxu0 0.0
    %2895 = vmatprep.subr.mxu0 0.0
    %2896 = vmatpush1.msra.mxu0 0.0
    %2897 = vmatprep.subr.mxu0 0.0
    %2898 = vmatpush1.msra.mxu0 0.0
    %2899 = vmatprep.subr.mxu0 0.0
    %2900 = vmatpush1.msra.mxu0 0.0
    %2901 = vmatprep.subr.mxu0 0.0
    %2902 = vmatpush1.msra.mxu0 0.0
    %2903 = vmatprep.subr.mxu0 0.0
    %2904 = vmatpush1.msra.mxu0 0.0
    %2905 = vmatprep.subr.mxu0 0.0
    %2906 = vmatpush1.msra.mxu0 0.0
    %2907 = vmatprep.subr.mxu0 0.0
    %2908 = vmatpush1.msra.mxu0 0.0
    %2909 = vmatprep.subr.mxu0 0.0
    %2910 = vmatpush1.msra.mxu0 0.0
    %2911 = vmatprep.subr.mxu0 0.0
    %2912 = vmatpush1.msra.mxu0 0.0
    %2913 = vmatprep.subr.mxu0 0.0
    %2914 = vmatpush1.msra.mxu0 0.0
    %2915 = vmatprep.subr.mxu0 0.0
    %2916 = vmatpush1.msra.mxu0 0.0
    %2917 = vmatprep.subr.mxu0 0.0
    %2918 = vmatpush1.msra.mxu0 0.0
    %2919 = vmatprep.subr.mxu0 0.0
    %2920 = vmatpush1.msra.mxu0 0.0
    %2921 = vmatprep.subr.mxu0 0.0
    %2922 = vmatpush1.msra.mxu0 0.0
    %2923 = vmatprep.subr.mxu0 0.0
    %2924 = vmatpush1.msra.mxu0 0.0
    %2925 = vmatprep.subr.mxu0 0.0
    %2926 = vmatpush1.msra.mxu0 0.0
    %2927 = vmatprep.subr.mxu0 0.0
    %2928 = vmatpush1.msra.mxu0 0.0
    %2929 = vmatprep.subr.mxu0 0.0
    %2930 = vmatpush1.msra.mxu0 0.0
    %2931 = vmatprep.subr.mxu0 0.0
    %2932 = vmatpush1.msra.mxu0 0.0
    %2933 = vmatprep.subr.mxu0 0.0
    %2934 = vmatpush1.msra.mxu0 0.0
    %2935 = vmatprep.mubr.f32.mxu0 0.0
    %2936 = vmatmul.mubr.f32.gmra.mrb[0].mxu0 %v2869
    %v2937 = vpop.f32.mrb[0].mxu0
    %v2938 = vadd.f32 %v2836, %v2937
    %v2939 = vpop.f32.mrb[0].mxu0
    %2940 = vdwg.mxu0
    %v2941 = vadd.f32 %v2938, %v1287
    %v2942 = vsel %vm1541, %v2941, -inf
    %2943 = vmax.xlane.f32.xlu0 %v2942
    %v2944 = vpop.xlane.xlu0 %2943
    %vm2945 = vcmp.ge.f32.partialorder %v2942, %v2944
    %v2946 = vsel %vm2945, %v77, 128
    %v2947 = vand.u32 %v2946, 65535
    %v2948 = vshra.s32 %v2946, 16
    %v2949 = vcvt.s32.f32 %v2947
    %v2950 = vcvt.s32.f32 %v2948
    %2951 = vmin.xlane.f32.xlu0 %v2950
    %v2952 = vpop.xlane.xlu0 %2951
    %vm2953 = vcmp.eq.f32.partialorder %v2950, %v2952
    %v2954 = vsel %vm2953, %v2949, inf
    %2955 = vmin.xlane.f32.xlu0 %v2954
    %v2956 = vpop.xlane.xlu0 %2955
    %v2957 = vcvt.f32.s32 %v2956
    %v2958 = vcvt.f32.s32 %v2952
    %v2959 = vshll.u32 %v2958, 16
    %v2960 = vadd.s32 %v2959, %v2957
    %vm2961 = vcmp.eq.s32.totalorder %v77, %v2960
    %v2962 = vsel %vm2961, 1, 0
    %v2963 = vcvt.s32.f32 %v2962
    %s2964 = scalar_lea.vmem %s2, 48
    %v2965 = vld [vmem:[%s2964] sm:$0xff]
    %2966 = vset.pattern.permute.xlu0 0
    %2967 = vperm.xlu0 %2966, %v2965
    %v2968 = vpop.permute.xlu0 %2967
    %vm2969 = vcmp.eq.s32.totalorder %v77, %v2968
    %v2970 = vsel %vm2969, 1, 0
    %v2971 = vcvt.s32.f32 %v2970
    %s2972 = sld [smem:[#allocation2 + $0x6]]
    %p2973 = scmp.gt.s32.totalorder %s2972, 0
    %s2974 = scalar_select %p2973, 1, 0
    %v2975 = vstv %s2974
    %vm2976 = vcmp.eq.s32.totalorder %v2975, 1
    %v2977 = vsel %vm2976, %v2971, %v2963
    %2978 = vmatprep.subr.mxu0 %v1074
    %2979 = vmatpush1.msra.mxu0 %v1073
    %2980 = vmatprep.subr.mxu0 %v1077
    %2981 = vmatpush1.msra.mxu0 %v1076
    %2982 = vmatprep.subr.mxu0 %v1080
    %2983 = vmatpush1.msra.mxu0 %v1079
    %2984 = vmatprep.subr.mxu0 %v1083
    %2985 = vmatpush1.msra.mxu0 %v1082
    %2986 = vmatprep.subr.mxu0 %v1086
    %2987 = vmatpush1.msra.mxu0 %v1085
    %2988 = vmatprep.subr.mxu0 %v1089
    %2989 = vmatpush1.msra.mxu0 %v1088
    %2990 = vmatprep.subr.mxu0 %v1092
    %2991 = vmatpush1.msra.mxu0 %v1091
    %2992 = vmatprep.subr.mxu0 %v1095
    %2993 = vmatpush1.msra.mxu0 %v1094
    %2994 = vmatprep.subr.mxu0 %v1098
    %2995 = vmatpush1.msra.mxu0 %v1097
    %2996 = vmatprep.subr.mxu0 %v1101
    %2997 = vmatpush1.msra.mxu0 %v1100
    %2998 = vmatprep.subr.mxu0 %v1104
    %2999 = vmatpush1.msra.mxu0 %v1103
    %3000 = vmatprep.subr.mxu0 %v1107
    %3001 = vmatpush1.msra.mxu0 %v1106
    %3002 = vmatprep.subr.mxu0 %v1110
    %3003 = vmatpush1.msra.mxu0 %v1109
    %3004 = vmatprep.subr.mxu0 %v1113
    %3005 = vmatpush1.msra.mxu0 %v1112
    %3006 = vmatprep.subr.mxu0 %v1116
    %3007 = vmatpush1.msra.mxu0 %v1115
    %3008 = vmatprep.subr.mxu0 %v1119
    %3009 = vmatpush1.msra.mxu0 %v1118
    %3010 = vmatprep.subr.mxu0 %v1122
    %3011 = vmatpush1.msra.mxu0 %v1121
    %3012 = vmatprep.subr.mxu0 %v1125
    %3013 = vmatpush1.msra.mxu0 %v1124
    %3014 = vmatprep.subr.mxu0 %v1128
    %3015 = vmatpush1.msra.mxu0 %v1127
    %3016 = vmatprep.subr.mxu0 %v1131
    %3017 = vmatpush1.msra.mxu0 %v1130
    %3018 = vmatprep.subr.mxu0 0.0
    %3019 = vmatpush1.msra.mxu0 0.0
    %3020 = vmatprep.subr.mxu0 0.0
    %3021 = vmatpush1.msra.mxu0 0.0
    %3022 = vmatprep.subr.mxu0 0.0
    %3023 = vmatpush1.msra.mxu0 0.0
    %3024 = vmatprep.subr.mxu0 0.0
    %3025 = vmatpush1.msra.mxu0 0.0
    %3026 = vmatprep.subr.mxu0 0.0
    %3027 = vmatpush1.msra.mxu0 0.0
    %3028 = vmatprep.subr.mxu0 0.0
    %3029 = vmatpush1.msra.mxu0 0.0
    %3030 = vmatprep.subr.mxu0 0.0
    %3031 = vmatpush1.msra.mxu0 0.0
    %3032 = vmatprep.subr.mxu0 0.0
    %3033 = vmatpush1.msra.mxu0 0.0
    %3034 = vmatprep.subr.mxu0 0.0
    %3035 = vmatpush1.msra.mxu0 0.0
    %3036 = vmatprep.subr.mxu0 0.0
    %3037 = vmatpush1.msra.mxu0 0.0
    %3038 = vmatprep.subr.mxu0 0.0
    %3039 = vmatpush1.msra.mxu0 0.0
    %3040 = vmatprep.subr.mxu0 0.0
    %3041 = vmatpush1.msra.mxu0 0.0
    %3042 = vmatprep.mubr.f32.mxu0 %v2869
    %3043 = vmatmul.mubr.f32.gmra.mrb[0].mxu0 %v2977
    %v3044 = vpop.f32.mrb[0].mxu0
    %v3045 = vadd.f32 0.0, %v3044
    %v3046 = vpop.f32.mrb[0].mxu0
    %v3047 = vadd.f32 0.0, %v3046
    %3048 = vdwg.mxu0
    %3049 = vmatprep.subr.mxu0 0.0
    %3050 = vmatpush1.msra.mxu0 %v1075
    %3051 = vmatprep.subr.mxu0 0.0
    %3052 = vmatpush1.msra.mxu0 %v1078
    %3053 = vmatprep.subr.mxu0 0.0
    %3054 = vmatpush1.msra.mxu0 %v1081
    %3055 = vmatprep.subr.mxu0 0.0
    %3056 = vmatpush1.msra.mxu0 %v1084
    %3057 = vmatprep.subr.mxu0 0.0
    %3058 = vmatpush1.msra.mxu0 %v1087
    %3059 = vmatprep.subr.mxu0 0.0
    %3060 = vmatpush1.msra.mxu0 %v1090
    %3061 = vmatprep.subr.mxu0 0.0
    %3062 = vmatpush1.msra.mxu0 %v1093
    %3063 = vmatprep.subr.mxu0 0.0
    %3064 = vmatpush1.msra.mxu0 %v1096
    %3065 = vmatprep.subr.mxu0 0.0
    %3066 = vmatpush1.msra.mxu0 %v1099
    %3067 = vmatprep.subr.mxu0 0.0
    %3068 = vmatpush1.msra.mxu0 %v1102
    %3069 = vmatprep.subr.mxu0 0.0
    %3070 = vmatpush1.msra.mxu0 %v1105
    %3071 = vmatprep.subr.mxu0 0.0
    %3072 = vmatpush1.msra.mxu0 %v1108
    %3073 = vmatprep.subr.mxu0 0.0
    %3074 = vmatpush1.msra.mxu0 %v1111
    %3075 = vmatprep.subr.mxu0 0.0
    %3076 = vmatpush1.msra.mxu0 %v1114
    %3077 = vmatprep.subr.mxu0 0.0
    %3078 = vmatpush1.msra.mxu0 %v1117
    %3079 = vmatprep.subr.mxu0 0.0
    %3080 = vmatpush1.msra.mxu0 %v1120
    %3081 = vmatprep.subr.mxu0 0.0
    %3082 = vmatpush1.msra.mxu0 %v1123
    %3083 = vmatprep.subr.mxu0 0.0
    %3084 = vmatpush1.msra.mxu0 %v1126
    %3085 = vmatprep.subr.mxu0 0.0
    %3086 = vmatpush1.msra.mxu0 %v1129
    %3087 = vmatprep.subr.mxu0 0.0
    %3088 = vmatpush1.msra.mxu0 %v1132
    %3089 = vmatprep.subr.mxu0 0.0
    %3090 = vmatpush1.msra.mxu0 0.0
    %3091 = vmatprep.subr.mxu0 0.0
    %3092 = vmatpush1.msra.mxu0 0.0
    %3093 = vmatprep.subr.mxu0 0.0
    %3094 = vmatpush1.msra.mxu0 0.0
    %3095 = vmatprep.subr.mxu0 0.0
    %3096 = vmatpush1.msra.mxu0 0.0
    %3097 = vmatprep.subr.mxu0 0.0
    %3098 = vmatpush1.msra.mxu0 0.0
    %3099 = vmatprep.subr.mxu0 0.0
    %3100 = vmatpush1.msra.mxu0 0.0
    %3101 = vmatprep.subr.mxu0 0.0
    %3102 = vmatpush1.msra.mxu0 0.0
    %3103 = vmatprep.subr.mxu0 0.0
    %3104 = vmatpush1.msra.mxu0 0.0
    %3105 = vmatprep.subr.mxu0 0.0
    %3106 = vmatpush1.msra.mxu0 0.0
    %3107 = vmatprep.subr.mxu0 0.0
    %3108 = vmatpush1.msra.mxu0 0.0
    %3109 = vmatprep.subr.mxu0 0.0
    %3110 = vmatpush1.msra.mxu0 0.0
    %3111 = vmatprep.subr.mxu0 0.0
    %3112 = vmatpush1.msra.mxu0 0.0
    %3113 = vmatprep.mubr.f32.mxu0 %v2869
    %3114 = vmatmul.mubr.f32.gmra.mrb[0].mxu0 %v2977
    %v3115 = vpop.f32.mrb[0].mxu0
    %v3116 = vadd.f32 0.0, %v3115
    %v3117 = vpop.f32.mrb[0].mxu0
    %3118 = vdwg.mxu0
    %v3119 = vadd.f32 %v3045, %v1213
    %v3120 = vadd.f32 %v3119, %v3047
    %v3121 = vxor.u32 %v3120, 2147483648
    %v3122 = vmul.f32 %v3121, 1.442695
    %v3123 = vpow.pop %v3122
    %v3124 = vadd.f32 %v3123, 1.0
    %v3125 = vrcp.pop %v3124
    %v3126 = vmul.f32 1.0, %v3125
    %3128 = vrot.lane.b32.xlu0 %v3047, 64
    %v3129 = vpop.permute.xlu0 %3128
    %v3131 = vmul.f32 %v3126, %v3129
    %3133 = vrot.lane.b32.xlu0 %v3131, 64
    %v3134 = vpop.permute.xlu0 %3133
    %v3136 = vadd.f32 %v3119, %v3134
    %v3137 = vtanh.pop %v3136
    %v3138 = vsub.f32 1.0, %v3126
    %3140 = vrot.lane.b32.xlu0 %v3137, 96
    %v3141 = vpop.permute.xlu0 %3140
    %v3143 = vmul.f32 %v3138, %v3141
    %v3144 = vmul.f32 %v3126, %v2865
    %v3145 = vadd.f32 %v3143, %v3144
    %3147 = vrot.lane.b32.xlu0 %v3145, 96
    %v3148 = vpop.permute.xlu0 %3147
    %v3149 = vsel %vm266, %v3148, 0
    %3151 = vmatprep.subr.mxu0 0.0
    %3152 = vmatpush1.msra.mxu0 %v1133
    %3153 = vmatprep.subr.mxu0 0.0
    %3154 = vmatpush1.msra.mxu0 %v1134
    %3155 = vmatprep.subr.mxu0 0.0
    %3156 = vmatpush1.msra.mxu0 %v1135
    %3157 = vmatprep.subr.mxu0 0.0
    %3158 = vmatpush1.msra.mxu0 %v1136
    %3159 = vmatprep.subr.mxu0 0.0
    %3160 = vmatpush1.msra.mxu0 0.0
    %3161 = vmatprep.subr.mxu0 0.0
    %3162 = vmatpush1.msra.mxu0 0.0
    %3163 = vmatprep.subr.mxu0 0.0
    %3164 = vmatpush1.msra.mxu0 0.0
    %3165 = vmatprep.subr.mxu0 0.0
    %3166 = vmatpush1.msra.mxu0 0.0
    %3167 = vmatprep.subr.mxu0 0.0
    %3168 = vmatpush1.msra.mxu0 0.0
    %3169 = vmatprep.subr.mxu0 0.0
    %3170 = vmatpush1.msra.mxu0 0.0
    %3171 = vmatprep.subr.mxu0 0.0
    %3172 = vmatpush1.msra.mxu0 0.0
    %3173 = vmatprep.subr.mxu0 0.0
    %3174 = vmatpush1.msra.mxu0 0.0
    %3175 = vmatprep.subr.mxu0 0.0
    %3176 = vmatpush1.msra.mxu0 0.0
    %3177 = vmatprep.subr.mxu0 0.0
    %3178 = vmatpush1.msra.mxu0 0.0
    %3179 = vmatprep.subr.mxu0 0.0
    %3180 = vmatpush1.msra.mxu0 0.0
    %3181 = vmatprep.subr.mxu0 0.0
    %3182 = vmatpush1.msra.mxu0 0.0
    %3183 = vmatprep.subr.mxu0 0.0
    %3184 = vmatpush1.msra.mxu0 0.0
    %3185 = vmatprep.subr.mxu0 0.0
    %3186 = vmatpush1.msra.mxu0 0.0
    %3187 = vmatprep.subr.mxu0 0.0
    %3188 = vmatpush1.msra.mxu0 0.0
    %3189 = vmatprep.subr.mxu0 0.0
    %3190 = vmatpush1.msra.mxu0 0.0
    %3191 = vmatprep.subr.mxu0 0.0
    %3192 = vmatpush1.msra.mxu0 0.0
    %3193 = vmatprep.subr.mxu0 0.0
    %3194 = vmatpush1.msra.mxu0 0.0
    %3195 = vmatprep.subr.mxu0 0.0
    %3196 = vmatpush1.msra.mxu0 0.0
    %3197 = vmatprep.subr.mxu0 0.0
    %3198 = vmatpush1.msra.mxu0 0.0
    %3199 = vmatprep.subr.mxu0 0.0
    %3200 = vmatpush1.msra.mxu0 0.0
    %3201 = vmatprep.subr.mxu0 0.0
    %3202 = vmatpush1.msra.mxu0 0.0
    %3203 = vmatprep.subr.mxu0 0.0
    %3204 = vmatpush1.msra.mxu0 0.0
    %3205 = vmatprep.subr.mxu0 0.0
    %3206 = vmatpush1.msra.mxu0 0.0
    %3207 = vmatprep.subr.mxu0 0.0
    %3208 = vmatpush1.msra.mxu0 0.0
    %3209 = vmatprep.subr.mxu0 0.0
    %3210 = vmatpush1.msra.mxu0 0.0
    %3211 = vmatprep.subr.mxu0 0.0
    %3212 = vmatpush1.msra.mxu0 0.0
    %3213 = vmatprep.subr.mxu0 0.0
    %3214 = vmatpush1.msra.mxu0 0.0
    %3215 = vmatprep.mubr.f32.mxu0 0.0
    %3216 = vmatmul.mubr.f32.gmra.mrb[0].mxu0 %v3149
    %v3217 = vpop.f32.mrb[0].mxu0
    %v3218 = vadd.f32 %v3116, %v3217
    %v3219 = vpop.f32.mrb[0].mxu0
    %3220 = vdwg.mxu0
    %v3221 = vadd.f32 %v3218, %v1287
    %3222 = vst [vmem:[%s10] sm:$0xff] 0.0
    %3223 = vst [vmem:[%s10 + $0x8] sm:$0xff] %v1540
    %3224 = vst [vmem:[%s10 + $0x10] sm:$0xff] %v1821
    %3225 = vst [vmem:[%s10 + $0x18] sm:$0xff] %v2101
    %3226 = vst [vmem:[%s10 + $0x20] sm:$0xff] %v2381
    %3227 = vst [vmem:[%s10 + $0x28] sm:$0xff] %v2661
    %3228 = vst [vmem:[%s10 + $0x30] sm:$0xff] %v2941
    %3229 = vst [vmem:[%s10 + $0x38] sm:$0xff] %v3221
    // Predicated region
    $region54: #{_seq2seq_forward.1} parent=1 // pred_check
      _
    $region55: #{_seq2seq_forward.1} parent=1 // pred_check_branch
      %3231 = sbr.rel (0) target = $region57
    $region56: #{_seq2seq_forward.1} parent=1 // pred_region
      _
    $region57: #{_seq2seq_forward.1} parent=1 // pred_fallthru
      _
    // Predicated region
    $region58: #{_seq2seq_forward.1} parent=1 // pred_check
      _
    $region59: #{_seq2seq_forward.1} parent=1 // pred_check_branch
      %3233 = sbr.rel (0) target = $region61
    $region60: #{_seq2seq_forward.1} parent=1 // pred_region
      _
    $region61: #{_seq2seq_forward.1} parent=1 // pred_fallthru
      _
    %3234 = vsyncpa [#allocation3], 1
    %3235 = vsyncpa [#allocation7], 1
    %3236 = vsyncpa [#allocation4], 1

</llo_original>
